<compile_context>
chip_gen: v7x
topology: tpu7x:2x2x1
jax: 0.10.0
libtpu: 0.0.40
codegen_flags: <defaults>
</compile_context>

<pallas_src>
import functools
import math

import jax
import jax.numpy as jnp
from jax.experimental import pallas as pl
from jax.experimental.pallas import tpu as pltpu


def mab_kernel(q_ref, k_ref, wq_ref, bq_ref, wkv_ref, bkv_ref, wo_ref, bo_ref,
               o_ref, *, num_heads, bt, nq, nk, dv, compute_dtype):
    f32 = jnp.float32
    nh = num_heads
    ds = dv // nh

    q2 = q_ref[...]                                   # (bt*nq, dQ)  compute dtype
    k2 = k_ref[...]                                   # (bt*nk, dK)

    # Input projections: Q alone, K|V fused into one wide MXU pass. f32 accumulation.
    # 1/sqrt(dV) is already folded into the K half of wkv/bkv by the wrapper.
    Qp = jnp.dot(q2, wq_ref[...], preferred_element_type=f32) + bq_ref[...]      # (bt*nq, dv)
    KVp = jnp.dot(k2, wkv_ref[...], preferred_element_type=f32) + bkv_ref[...]   # (bt*nk, 2*dv)

    Qp3 = Qp.reshape(bt, nq, dv)                      # f32, kept for the residual
    Qc3 = Qp3.astype(compute_dtype)
    Kc3 = KVp[:, :dv].reshape(bt, nk, dv).astype(compute_dtype)
    Vc3 = KVp[:, dv:].reshape(bt, nk, dv).astype(compute_dtype)

    # Stack heads into the leading batch axis (one static column slice per head per
    # tensor, merged with a leading-axis concat).  Everything downstream runs as a
    # single head-batched pass: one batched score matmul, one softmax, one batched AV.
    def head_batch(x3):                               # (bt, n, nh*ds) -> (nh*bt, n, ds)
        return jnp.concatenate(
            [x3[:, :, h * ds:(h + 1) * ds] for h in range(nh)], axis=0)

    Qh = head_batch(Qc3)                              # (nh*bt, nq, ds)
    Kh = head_batch(Kc3)                              # (nh*bt, nk, ds)
    Vh = head_batch(Vc3)                              # (nh*bt, nk, ds)

    S = jnp.einsum('bqd,bkd->bqk', Qh, Kh, preferred_element_type=f32)  # (nh*bt, nq, nk)
    S = S - jnp.max(S, axis=-1, keepdims=True)        # numerically stable softmax
    E = jnp.exp(S)
    A = E * pl.reciprocal(jnp.sum(E, axis=-1, keepdims=True), approx=True)
    AV = jnp.einsum('bqk,bkd->bqd', A.astype(compute_dtype), Vh,
                    preferred_element_type=f32)       # (nh*bt, nq, ds)

    # Reassemble heads back to the feature axis (head h lives in rows [h*bt,(h+1)*bt))
    # and add the *unscaled* f32 query projection residual (torch: O = Q_ + A @ V_).
    O3 = Qp3 + jnp.concatenate(
        [AV[h * bt:(h + 1) * bt] for h in range(nh)], axis=-1)          # (bt, nq, dv)
    O2 = O3.reshape(bt * nq, dv)

    # Output projection + ReLU residual:  O = O + relu(O @ Wo + bo)
    proj = jnp.dot(O2.astype(compute_dtype), wo_ref[...],
                   preferred_element_type=f32) + bo_ref[...]
    o_ref[...] = (O2 + jnp.maximum(proj, 0.0)).astype(o_ref.dtype)
    # TODO(synk): optional LayerNorm branch (ln=True) is not implemented.


def _tpu_generation():
    """Best-effort TPU generation from device_kind; 0 if unknown."""
    try:
        kind = jax.devices()[0].device_kind.lower()
    except Exception:
        return 0
    for g in (7, 6, 5, 4):
        if str(g) in kind:
            return g
    return 0


def _plan_tiling(B, Nq, Nk, dQ, dK, dV, num_heads, in_itemsize, gen):
    """Pick (batch_tile, dimension_semantics, vmem_limit) per TPU generation.

    Single-TC chips (v5e/v6e) get one big grid step (no per-step overhead); v7x gets a
    2-way CORE_PARALLEL split when it fits its smaller 64 MiB VMEM, else one step.
    Unknown chips use the conservative (v7x-safe) budget."""
    if gen in (5, 6):
        budget, vmem_limit = 64 << 20, 96 << 20
    else:                                             # v7x or unknown: be 64 MiB-safe
        budget, vmem_limit = 24 << 20, 48 << 20

    ds = dV // num_heads
    # Rough per-batch-row working set (double-buffered I/O blocks + f32 intermediates
    # + head-stacked compute-dtype copies + score/prob tensors).
    per_bt = (2 * in_itemsize * (Nq * dQ + Nk * dK)
              + 2 * 4 * Nq * dV
              + 4 * (3 * Nq * dV + 3 * Nk * dV)
              + in_itemsize * (Nq * dV + 2 * Nk * dV)
              + 4 * 3 * num_heads * Nq * Nk
              + 4 * num_heads * Nq * ds)
    fixed = 2 * in_itemsize * (dQ * dV + 2 * dK * dV + dV * dV) + 2 * 4 * 4 * dV

    def legal(bt):
        if B % bt:
            return False
        if bt == B:                                   # full-extent blocks always legal
            return True
        return (bt * Nq) % 8 == 0 and (bt * Nk) % 8 == 0

    def fits(bt):
        return fixed + bt * per_bt <= budget

    arb = ("arbitrary",)
    if gen >= 7 and B % 2 == 0 and B >= 2:
        half = B // 2
        if legal(half) and fits(half):
            core_par = getattr(pltpu, "CORE_PARALLEL", "parallel")
            return half, (core_par,), vmem_limit

    legal_tiles = sorted({d for d in range(1, B + 1) if legal(d)}, reverse=True)
    for bt in legal_tiles:                            # largest tile that fits budget
        if fits(bt):
            return bt, arb, vmem_limit
    return legal_tiles[-1], arb, vmem_limit           # smallest legal tile as fallback


def mab_forward(Q, K, params, num_heads, *, compute_dtype=None):
    B, Nq, dQ = Q.shape
    _, Nk, dK = K.shape
    dV = params["wq"].shape[1]
    assert dV % num_heads == 0

    gen = _tpu_generation()
    if compute_dtype is None:
        # bf16 by default on v6e/v7x (full MXU rate, half DMA); f32 on v5e / unknown.
        compute_dtype = jnp.bfloat16 if gen >= 6 else jnp.float32

    itemsize = jnp.dtype(compute_dtype).itemsize
    bt, dim_sem, vmem_limit = _plan_tiling(B, Nq, Nk, dQ, dK, dV, num_heads,
                                           itemsize, gen)
    grid = (B // bt,)

    # Collapse (batch, seq) into one row axis -> lane-dense 2-D slabs for the MXU.
    Q2 = Q.reshape(B * Nq, dQ).astype(compute_dtype)
    K2 = K.reshape(B * Nk, dK).astype(compute_dtype)

    scale = 1.0 / math.sqrt(dV)
    wq = params["wq"].astype(compute_dtype)
    wkv = jnp.concatenate([params["wk"] * scale, params["wv"]],
                          axis=-1).astype(compute_dtype)            # (dK, 2*dV)
    wo = params["wo"].astype(compute_dtype)
    bq = params["bq"].astype(jnp.float32)
    bkv = jnp.concatenate([params["bk"] * scale, params["bv"]],
                          axis=-1).astype(jnp.float32)              # (1, 2*dV)
    bo = params["bo"].astype(jnp.float32)

    kernel = functools.partial(mab_kernel, num_heads=num_heads, bt=bt, nq=Nq, nk=Nk,
                               dv=dV, compute_dtype=compute_dtype)

    w_spec = lambda shape: pl.BlockSpec(shape, lambda b: (0, 0))    # broadcast weights

    out2 = pl.pallas_call(
        kernel,
        out_shape=jax.ShapeDtypeStruct((B * Nq, dV), jnp.float32),
        grid=grid,
        in_specs=[
            pl.BlockSpec((bt * Nq, dQ), lambda b: (b, 0)),          # Q rows for this tile
            pl.BlockSpec((bt * Nk, dK), lambda b: (b, 0)),          # K rows for this tile
            w_spec((dQ, dV)), w_spec((1, dV)),                      # Wq, bq
            w_spec((dK, 2 * dV)), w_spec((1, 2 * dV)),              # Wk|Wv (K prescaled), bk|bv
            w_spec((dV, dV)), w_spec((1, dV)),                      # Wo, bo
        ],
        out_specs=pl.BlockSpec((bt * Nq, dV), lambda b: (b, 0)),
        compiler_params=pltpu.CompilerParams(
            dimension_semantics=dim_sem,
            vmem_limit_bytes=vmem_limit,
        ),
    )(Q2, K2, wq, bq, wkv, bkv, wo, bo)

    return out2.reshape(B, Nq, dV)


def mab_reference(Q, K, params, num_heads):
    """Pure-JAX reference mirroring the PyTorch forward exactly."""
    dV = params["wq"].shape[1]
    Qp = Q @ params["wq"] + params["bq"][0]
    Kp = K @ params["wk"] + params["bk"][0]
    Vp = K @ params["wv"] + params["bv"][0]
    ds = dV // num_heads
    # torch.cat(X.split(ds, 2), 0): head h -> batch block h
    split = lambda X: jnp.concatenate(
        [X[:, :, h * ds:(h + 1) * ds] for h in range(num_heads)], axis=0)
    Q_, K_, V_ = split(Qp), split(Kp), split(Vp)
    A = jax.nn.softmax(jnp.einsum("bqd,bkd->bqk", Q_, K_) / math.sqrt(dV), axis=2)
    O_ = Q_ + jnp.einsum("bqk,bkd->bqd", A, V_)
    B = Q.shape[0]
    O = jnp.concatenate([O_[h * B:(h + 1) * B] for h in range(num_heads)], axis=2)
    O = O + jax.nn.relu(O @ params["wo"] + params["bo"][0])
    return O


def init_params(key, dim_Q, dim_K, dim_V):
    ks = jax.random.split(key, 8)
    def lin(kw, kb, fan_in, fan_out):
        bound = 1.0 / math.sqrt(fan_in)
        w = jax.random.uniform(kw, (fan_in, fan_out), jnp.float32, -bound, bound)
        b = jax.random.uniform(kb, (1, fan_out), jnp.float32, -bound, bound)
        return w, b
    wq, bq = lin(ks[0], ks[1], dim_Q, dim_V)
    wk, bk = lin(ks[2], ks[3], dim_K, dim_V)
    wv, bv = lin(ks[4], ks[5], dim_K, dim_V)
    wo, bo = lin(ks[6], ks[7], dim_V, dim_V)
    return dict(wq=wq, bq=bq, wk=wk, bk=bk, wv=wv, bv=bv, wo=wo, bo=bo)


if __name__ == "__main__":
    B, Nq, Nk = 8, 8, 8
    dim_Q, dim_K, dim_V, num_heads = 32, 32, 32, 4

    key = jax.random.PRNGKey(0)
    kq, kk, kp = jax.random.split(key, 3)
    Q = jax.random.normal(kq, (B, Nq, dim_Q), jnp.float32)
    K = jax.random.normal(kk, (B, Nk, dim_K), jnp.float32)
    params = init_params(kp, dim_Q, dim_K, dim_V)

    ref = mab_reference(Q, K, params, num_heads)

    # f32 path (only the softmax reciprocal uses the fast EUP approximation).
    out_f32 = jax.block_until_ready(
        mab_forward(Q, K, params, num_heads, compute_dtype=jnp.float32))
    assert out_f32.shape == (B, Nq, dim_V)
    assert jnp.allclose(out_f32, ref, atol=5e-3, rtol=5e-3), "f32 kernel mismatch vs reference"

    # bf16 MXU path (default on v6e/v7x: full-rate MXU + halved weight/activation DMA).
    out_bf16 = jax.block_until_ready(
        mab_forward(Q, K, params, num_heads, compute_dtype=jnp.bfloat16))
    assert out_bf16.shape == (B, Nq, dim_V)
    assert jnp.allclose(out_bf16, ref, atol=5e-2, rtol=5e-2), "bf16 kernel mismatch vs reference"

    # Auto (generation-selected) dtype path.
    out_auto = jax.block_until_ready(mab_forward(Q, K, params, num_heads))
    assert out_auto.shape == (B, Nq, dim_V)
    assert jnp.allclose(out_auto, ref, atol=5e-2, rtol=5e-2), "auto kernel mismatch vs reference"

    print("KERNEL_OK")
</pallas_src>

<mosaic_0001>
module attributes {stable_mosaic.version = 11 : i64} {
  func.func @mab_kernel(%arg0: i32, %arg1: memref<64x32xf32, #tpu.memory_space<vmem>>, %arg2: memref<64x32xf32, #tpu.memory_space<vmem>>, %arg3: memref<32x32xf32, #tpu.memory_space<vmem>>, %arg4: memref<1x32xf32, #tpu.memory_space<vmem>>, %arg5: memref<32x64xf32, #tpu.memory_space<vmem>>, %arg6: memref<1x64xf32, #tpu.memory_space<vmem>>, %arg7: memref<32x32xf32, #tpu.memory_space<vmem>>, %arg8: memref<1x32xf32, #tpu.memory_space<vmem>>, %arg9: memref<64x32xf32, #tpu.memory_space<vmem>>) attributes {dimension_semantics = [#tpu.dimension_semantics<arbitrary>], iteration_bounds = array<i64: 1>, scalar_prefetch = 0 : i64, scratch_operands = 0 : i64, tpu.core_type = #tpu.core_type<tc>, window_params = [{transform_indices = @transform_0, window_bounds = array<i64: 64, 32>}, {transform_indices = @transform_1, window_bounds = array<i64: 64, 32>}, {pipeline_mode = #tpu.pipeline_mode<synchronous>, transform_indices = @transform_2, window_bounds = array<i64: 32, 32>}, {pipeline_mode = #tpu.pipeline_mode<synchronous>, transform_indices = @transform_3, window_bounds = array<i64: 1, 32>}, {pipeline_mode = #tpu.pipeline_mode<synchronous>, transform_indices = @transform_4, window_bounds = array<i64: 32, 64>}, {pipeline_mode = #tpu.pipeline_mode<synchronous>, transform_indices = @transform_5, window_bounds = array<i64: 1, 64>}, {pipeline_mode = #tpu.pipeline_mode<synchronous>, transform_indices = @transform_6, window_bounds = array<i64: 32, 32>}, {pipeline_mode = #tpu.pipeline_mode<synchronous>, transform_indices = @transform_7, window_bounds = array<i64: 1, 32>}, {transform_indices = @transform_8, window_bounds = array<i64: 64, 32>}]} {
    %c0 = arith.constant 0 : index
    %c0_0 = arith.constant 0 : index
    %0 = vector.load %arg1[%c0, %c0_0] : memref<64x32xf32, #tpu.memory_space<vmem>>, vector<64x32xf32>
    %c0_1 = arith.constant 0 : index
    %c0_2 = arith.constant 0 : index
    %1 = vector.load %arg2[%c0_1, %c0_2] : memref<64x32xf32, #tpu.memory_space<vmem>>, vector<64x32xf32>
    %c0_3 = arith.constant 0 : index
    %c0_4 = arith.constant 0 : index
    %2 = vector.load %arg3[%c0_3, %c0_4] : memref<32x32xf32, #tpu.memory_space<vmem>>, vector<32x32xf32>
    %cst = arith.constant dense<0.000000e+00> : vector<64x32xf32>
    %3 = tpu.matmul %0, %2, %cst {dimension_numbers = #tpu.dot_dimension_numbers<[1], [0], [0], [1], [0, 0, 1, 1], [], []>} : vector<64x32xf32>, vector<32x32xf32>, vector<64x32xf32> -> vector<64x32xf32>
    %c0_5 = arith.constant 0 : index
    %c0_6 = arith.constant 0 : index
    %4 = vector.load %arg4[%c0_5, %c0_6] : memref<1x32xf32, #tpu.memory_space<vmem>>, vector<1x32xf32>
    %5 = vector.broadcast %4 : vector<1x32xf32> to vector<64x32xf32>
    %6 = arith.addf %3, %5 : vector<64x32xf32>
    %c0_7 = arith.constant 0 : index
    %c0_8 = arith.constant 0 : index
    %7 = vector.load %arg5[%c0_7, %c0_8] : memref<32x64xf32, #tpu.memory_space<vmem>>, vector<32x64xf32>
    %cst_9 = arith.constant dense<0.000000e+00> : vector<64x64xf32>
    %8 = tpu.matmul %1, %7, %cst_9 {dimension_numbers = #tpu.dot_dimension_numbers<[1], [0], [0], [1], [0, 0, 1, 1], [], []>} : vector<64x32xf32>, vector<32x64xf32>, vector<64x64xf32> -> vector<64x64xf32>
    %c0_10 = arith.constant 0 : index
    %c0_11 = arith.constant 0 : index
    %9 = vector.load %arg6[%c0_10, %c0_11] : memref<1x64xf32, #tpu.memory_space<vmem>>, vector<1x64xf32>
    %10 = vector.broadcast %9 : vector<1x64xf32> to vector<64x64xf32>
    %11 = arith.addf %8, %10 : vector<64x64xf32>
    %12 = vector.shape_cast %6 : vector<64x32xf32> to vector<8x8x32xf32>
    %13 = vector.extract_strided_slice %11 {offsets = [0, 0], sizes = [64, 32], strides = [1, 1]} : vector<64x64xf32> to vector<64x32xf32>
    %14 = vector.shape_cast %13 : vector<64x32xf32> to vector<8x8x32xf32>
    %15 = vector.extract_strided_slice %11 {offsets = [0, 32], sizes = [64, 32], strides = [1, 1]} : vector<64x64xf32> to vector<64x32xf32>
    %16 = vector.shape_cast %15 : vector<64x32xf32> to vector<8x8x32xf32>
    %17 = vector.extract_strided_slice %12 {offsets = [0, 0, 0], sizes = [8, 8, 8], strides = [1, 1, 1]} : vector<8x8x32xf32> to vector<8x8x8xf32>
    %18 = vector.extract_strided_slice %12 {offsets = [0, 0, 8], sizes = [8, 8, 8], strides = [1, 1, 1]} : vector<8x8x32xf32> to vector<8x8x8xf32>
    %19 = vector.extract_strided_slice %12 {offsets = [0, 0, 16], sizes = [8, 8, 8], strides = [1, 1, 1]} : vector<8x8x32xf32> to vector<8x8x8xf32>
    %20 = vector.extract_strided_slice %12 {offsets = [0, 0, 24], sizes = [8, 8, 8], strides = [1, 1, 1]} : vector<8x8x32xf32> to vector<8x8x8xf32>
    %21 = tpu.concatenate %17, %18, %19, %20 in 0 : vector<8x8x8xf32>, vector<8x8x8xf32>, vector<8x8x8xf32>, vector<8x8x8xf32> -> vector<32x8x8xf32>
    %22 = vector.extract_strided_slice %14 {offsets = [0, 0, 0], sizes = [8, 8, 8], strides = [1, 1, 1]} : vector<8x8x32xf32> to vector<8x8x8xf32>
    %23 = vector.extract_strided_slice %14 {offsets = [0, 0, 8], sizes = [8, 8, 8], strides = [1, 1, 1]} : vector<8x8x32xf32> to vector<8x8x8xf32>
    %24 = vector.extract_strided_slice %14 {offsets = [0, 0, 16], sizes = [8, 8, 8], strides = [1, 1, 1]} : vector<8x8x32xf32> to vector<8x8x8xf32>
    %25 = vector.extract_strided_slice %14 {offsets = [0, 0, 24], sizes = [8, 8, 8], strides = [1, 1, 1]} : vector<8x8x32xf32> to vector<8x8x8xf32>
    %26 = tpu.concatenate %22, %23, %24, %25 in 0 : vector<8x8x8xf32>, vector<8x8x8xf32>, vector<8x8x8xf32>, vector<8x8x8xf32> -> vector<32x8x8xf32>
    %27 = vector.extract_strided_slice %16 {offsets = [0, 0, 0], sizes = [8, 8, 8], strides = [1, 1, 1]} : vector<8x8x32xf32> to vector<8x8x8xf32>
    %28 = vector.extract_strided_slice %16 {offsets = [0, 0, 8], sizes = [8, 8, 8], strides = [1, 1, 1]} : vector<8x8x32xf32> to vector<8x8x8xf32>
    %29 = vector.extract_strided_slice %16 {offsets = [0, 0, 16], sizes = [8, 8, 8], strides = [1, 1, 1]} : vector<8x8x32xf32> to vector<8x8x8xf32>
    %30 = vector.extract_strided_slice %16 {offsets = [0, 0, 24], sizes = [8, 8, 8], strides = [1, 1, 1]} : vector<8x8x32xf32> to vector<8x8x8xf32>
    %31 = tpu.concatenate %27, %28, %29, %30 in 0 : vector<8x8x8xf32>, vector<8x8x8xf32>, vector<8x8x8xf32>, vector<8x8x8xf32> -> vector<32x8x8xf32>
    "tpu.trace_start"() <{level = 10 : i32, message = "bqd,bkd->bqk"}> : () -> ()
    %cst_12 = arith.constant dense<0.000000e+00> : vector<32x8x8xf32>
    %32 = tpu.matmul %21, %26, %cst_12 {dimension_numbers = #tpu.dot_dimension_numbers<[2], [2], [1], [1], [0, 0, 0, 1, 1, 1], [0], [0]>} : vector<32x8x8xf32>, vector<32x8x8xf32>, vector<32x8x8xf32> -> vector<32x8x8xf32>
    "tpu.trace_stop"() : () -> ()
    %cst_13 = arith.constant dense<0xFF800000> : vector<32x8xf32>
    %33 = vector.multi_reduction <maximumf>, %32, %cst_13 [2] : vector<32x8x8xf32> to vector<32x8xf32>
    %34 = vector.shape_cast %33 : vector<32x8xf32> to vector<32x8x1xf32>
    %35 = vector.broadcast %34 : vector<32x8x1xf32> to vector<32x8x8xf32>
    %36 = arith.subf %32, %35 : vector<32x8x8xf32>
    %37 = math.exp %36 : vector<32x8x8xf32>
    %cst_14 = arith.constant dense<0.000000e+00> : vector<32x8xf32>
    %38 = vector.multi_reduction <add>, %37, %cst_14 [2] : vector<32x8x8xf32> to vector<32x8xf32>
    %39 = vector.shape_cast %38 : vector<32x8xf32> to vector<32x8x1xf32>
    %40 = tpu.reciprocal %39 {approx = true} : vector<32x8x1xf32> -> vector<32x8x1xf32>
    %41 = vector.broadcast %40 : vector<32x8x1xf32> to vector<32x8x8xf32>
    %42 = arith.mulf %37, %41 : vector<32x8x8xf32>
    "tpu.trace_start"() <{level = 10 : i32, message = "bqk,bkd->bqd"}> : () -> ()
    %cst_15 = arith.constant dense<0.000000e+00> : vector<32x8x8xf32>
    %43 = tpu.matmul %42, %31, %cst_15 {dimension_numbers = #tpu.dot_dimension_numbers<[2], [1], [1], [2], [0, 0, 0, 1, 1, 2], [0], [0]>} : vector<32x8x8xf32>, vector<32x8x8xf32>, vector<32x8x8xf32> -> vector<32x8x8xf32>
    "tpu.trace_stop"() : () -> ()
    %44 = vector.extract_strided_slice %43 {offsets = [0, 0, 0], sizes = [8, 8, 8], strides = [1, 1, 1]} : vector<32x8x8xf32> to vector<8x8x8xf32>
    %45 = vector.extract_strided_slice %43 {offsets = [8, 0, 0], sizes = [8, 8, 8], strides = [1, 1, 1]} : vector<32x8x8xf32> to vector<8x8x8xf32>
    %46 = vector.extract_strided_slice %43 {offsets = [16, 0, 0], sizes = [8, 8, 8], strides = [1, 1, 1]} : vector<32x8x8xf32> to vector<8x8x8xf32>
    %47 = vector.extract_strided_slice %43 {offsets = [24, 0, 0], sizes = [8, 8, 8], strides = [1, 1, 1]} : vector<32x8x8xf32> to vector<8x8x8xf32>
    %48 = tpu.concatenate %44, %45, %46, %47 in 2 : vector<8x8x8xf32>, vector<8x8x8xf32>, vector<8x8x8xf32>, vector<8x8x8xf32> -> vector<8x8x32xf32>
    %49 = arith.addf %12, %48 : vector<8x8x32xf32>
    %50 = vector.shape_cast %49 : vector<8x8x32xf32> to vector<64x32xf32>
    %c0_16 = arith.constant 0 : index
    %c0_17 = arith.constant 0 : index
    %51 = vector.load %arg7[%c0_16, %c0_17] : memref<32x32xf32, #tpu.memory_space<vmem>>, vector<32x32xf32>
    %cst_18 = arith.constant dense<0.000000e+00> : vector<64x32xf32>
    %52 = tpu.matmul %50, %51, %cst_18 {dimension_numbers = #tpu.dot_dimension_numbers<[1], [0], [0], [1], [0, 0, 1, 1], [], []>} : vector<64x32xf32>, vector<32x32xf32>, vector<64x32xf32> -> vector<64x32xf32>
    %c0_19 = arith.constant 0 : index
    %c0_20 = arith.constant 0 : index
    %53 = vector.load %arg8[%c0_19, %c0_20] : memref<1x32xf32, #tpu.memory_space<vmem>>, vector<1x32xf32>
    %54 = vector.broadcast %53 : vector<1x32xf32> to vector<64x32xf32>
    %55 = arith.addf %52, %54 : vector<64x32xf32>
    %cst_21 = arith.constant 0.000000e+00 : f32
    %56 = vector.broadcast %cst_21 : f32 to vector<64x32xf32>
    %57 = arith.maximumf %55, %56 : vector<64x32xf32>
    %58 = arith.addf %50, %57 : vector<64x32xf32>
    %c0_22 = arith.constant 0 : index
    %c0_23 = arith.constant 0 : index
    %59 = vector.load %arg9[%c0_22, %c0_23] : memref<64x32xf32, #tpu.memory_space<vmem>>, vector<64x32xf32>
    tpu.vector_store %arg9[%c0_22, %c0_23], %58 {strides = array<i32>} : memref<64x32xf32, #tpu.memory_space<vmem>>, vector<64x32xf32>,
    return
  }
  func.func @transform_0(%arg0: i32) -> (i32, i32) {
    %c0_i32 = arith.constant 0 : i32
    %c0_i32_0 = arith.constant 0 : i32
    return %arg0, %c0_i32 : i32, i32
  }
  func.func @transform_1(%arg0: i32) -> (i32, i32) {
    %c0_i32 = arith.constant 0 : i32
    %c0_i32_0 = arith.constant 0 : i32
    return %arg0, %c0_i32 : i32, i32
  }
  func.func @transform_2(%arg0: i32) -> (i32, i32) {
    %c0_i32 = arith.constant 0 : i32
    %c0_i32_0 = arith.constant 0 : i32
    %c0_i32_1 = arith.constant 0 : i32
    return %c0_i32, %c0_i32_0 : i32, i32
  }
  func.func @transform_3(%arg0: i32) -> (i32, i32) {
    %c0_i32 = arith.constant 0 : i32
    %c0_i32_0 = arith.constant 0 : i32
    %c0_i32_1 = arith.constant 0 : i32
    return %c0_i32, %c0_i32_0 : i32, i32
  }
  func.func @transform_4(%arg0: i32) -> (i32, i32) {
    %c0_i32 = arith.constant 0 : i32
    %c0_i32_0 = arith.constant 0 : i32
    %c0_i32_1 = arith.constant 0 : i32
    return %c0_i32, %c0_i32_0 : i32, i32
  }
  func.func @transform_5(%arg0: i32) -> (i32, i32) {
    %c0_i32 = arith.constant 0 : i32
    %c0_i32_0 = arith.constant 0 : i32
    %c0_i32_1 = arith.constant 0 : i32
    return %c0_i32, %c0_i32_0 : i32, i32
  }
  func.func @transform_6(%arg0: i32) -> (i32, i32) {
    %c0_i32 = arith.constant 0 : i32
    %c0_i32_0 = arith.constant 0 : i32
    %c0_i32_1 = arith.constant 0 : i32
    return %c0_i32, %c0_i32_0 : i32, i32
  }
  func.func @transform_7(%arg0: i32) -> (i32, i32) {
    %c0_i32 = arith.constant 0 : i32
    %c0_i32_0 = arith.constant 0 : i32
    %c0_i32_1 = arith.constant 0 : i32
    return %c0_i32, %c0_i32_0 : i32, i32
  }
  func.func @transform_8(%arg0: i32) -> (i32, i32) {
    %c0_i32 = arith.constant 0 : i32
    %c0_i32_0 = arith.constant 0 : i32
    return %arg0, %c0_i32 : i32, i32
  }
}

</mosaic_0001>

<llo_original>
// kernel: tpu_custom_call.1
$region0: #{tpu_custom_call.1}
  #allocation0 [shape = 'u32[]', space=smem, size = 0x4, offset = 0x4, fixed_abs, tag = 'smem constant byte address 0x4 - core index']
  #allocation1 [shape = 'u32[144,128]{1,0:T(1,128)}', space=vmem, size = 0x12000, scoped, tag = 'internal scratch']
  %s0 = inlined_call_operand.vmem [shape: f32[64,32], index: 0, kind: input, shape index: {}]
  %s1 = inlined_call_operand.vmem [shape: f32[64,32], index: 1, kind: input, shape index: {}]
  %s2 = inlined_call_operand.vmem [shape: f32[32,32], index: 2, kind: input, shape index: {}]
  %s3 = inlined_call_operand.vmem [shape: f32[1,32], index: 3, kind: input, shape index: {}]
  %s4 = inlined_call_operand.vmem [shape: f32[32,64], index: 4, kind: input, shape index: {}]
  %s5 = inlined_call_operand.vmem [shape: f32[1,64], index: 5, kind: input, shape index: {}]
  %s6 = inlined_call_operand.vmem [shape: f32[32,32], index: 6, kind: input, shape index: {}]
  %s7 = inlined_call_operand.vmem [shape: f32[1,32], index: 7, kind: input, shape index: {}]
  %s8 = inlined_call_operand.vmem [shape: f32[64,32], index: 8, kind: output, shape index: {}]
  %s9 = sld [smem:[#allocation0]]
  $region42: #{tpu_custom_call.1} parent=0
    _
  %s11 = ssub.s32 1, %s9
  %s12 = scalar_select 0, %s11, %s9
  // Predicated region
  $region2: #{tpu_custom_call.1} parent=0 // pred_check
    _
  $region3: #{tpu_custom_call.1} parent=0 // pred_check_branch
    %14 = sbr.rel (0) target = $region5
  $region4: #{tpu_custom_call.1} parent=0 // pred_region
    _
  $region5: #{tpu_custom_call.1} parent=0 // pred_fallthru
    _
  // Predicated region
  $region6: #{tpu_custom_call.1} parent=0 // pred_check
    _
  $region7: #{tpu_custom_call.1} parent=0 // pred_check_branch
    %16 = sbr.rel (0) target = $region9
  $region8: #{tpu_custom_call.1} parent=0 // pred_region
    _
  $region9: #{tpu_custom_call.1} parent=0 // pred_fallthru
    _
  // Predicated region
  $region10: #{tpu_custom_call.1} parent=0 // pred_check
    _
  $region11: #{tpu_custom_call.1} parent=0 // pred_check_branch
    %18 = sbr.rel (0) target = $region13
  $region12: #{tpu_custom_call.1} parent=0 // pred_region
    _
  $region13: #{tpu_custom_call.1} parent=0 // pred_fallthru
    _
  // Predicated region
  $region14: #{tpu_custom_call.1} parent=0 // pred_check
    _
  $region15: #{tpu_custom_call.1} parent=0 // pred_check_branch
    %20 = sbr.rel (0) target = $region17
  $region16: #{tpu_custom_call.1} parent=0 // pred_region
    _
  $region17: #{tpu_custom_call.1} parent=0 // pred_fallthru
    _
  // Predicated region
  $region18: #{tpu_custom_call.1} parent=0 // pred_check
    _
  $region19: #{tpu_custom_call.1} parent=0 // pred_check_branch
    %22 = sbr.rel (0) target = $region21
  $region20: #{tpu_custom_call.1} parent=0 // pred_region
    _
  $region21: #{tpu_custom_call.1} parent=0 // pred_fallthru
    _
  // Predicated region
  $region22: #{tpu_custom_call.1} parent=0 // pred_check
    _
  $region23: #{tpu_custom_call.1} parent=0 // pred_check_branch
    %24 = sbr.rel (0) target = $region25
  $region24: #{tpu_custom_call.1} parent=0 // pred_region
    _
  $region25: #{tpu_custom_call.1} parent=0 // pred_fallthru
    _
  // Predicated region
  $region26: #{tpu_custom_call.1} parent=0 // pred_check
    _
  $region27: #{tpu_custom_call.1} parent=0 // pred_check_branch
    %26 = sbr.rel (0) target = $region29
  $region28: #{tpu_custom_call.1} parent=0 // pred_region
    _
  $region29: #{tpu_custom_call.1} parent=0 // pred_fallthru
    _
  // Predicated region
  $region30: #{tpu_custom_call.1} parent=0 // pred_check
    _
  $region31: #{tpu_custom_call.1} parent=0 // pred_check_branch
    %28 = sbr.rel (0) target = $region33
  $region32: #{tpu_custom_call.1} parent=0 // pred_region
    _
  $region33: #{tpu_custom_call.1} parent=0 // pred_fallthru
    _
  %v29 = vld [vmem:[%s0] sm:$0xff]
  %v30 = vld [vmem:[%s0 + $0x8] sm:$0xff]
  %v31 = vld [vmem:[%s0 + $0x10] sm:$0xff]
  %v32 = vld [vmem:[%s0 + $0x18] sm:$0xff]
  %v33 = vld [vmem:[%s0 + $0x20] sm:$0xff]
  %v34 = vld [vmem:[%s0 + $0x28] sm:$0xff]
  %v35 = vld [vmem:[%s0 + $0x30] sm:$0xff]
  %v36 = vld [vmem:[%s0 + $0x38] sm:$0xff]
  %v37 = vld [vmem:[%s1] sm:$0xff]
  %v38 = vld [vmem:[%s1 + $0x8] sm:$0xff]
  %v39 = vld [vmem:[%s1 + $0x10] sm:$0xff]
  %v40 = vld [vmem:[%s1 + $0x18] sm:$0xff]
  %v41 = vld [vmem:[%s1 + $0x20] sm:$0xff]
  %v42 = vld [vmem:[%s1 + $0x28] sm:$0xff]
  %v43 = vld [vmem:[%s1 + $0x30] sm:$0xff]
  %v44 = vld [vmem:[%s1 + $0x38] sm:$0xff]
  %v45 = vld [vmem:[%s2] sm:$0xff]
  %v46 = vld [vmem:[%s2 + $0x8] sm:$0xff]
  %v47 = vld [vmem:[%s2 + $0x10] sm:$0xff]
  %v48 = vld [vmem:[%s2 + $0x18] sm:$0xff]
  %v49 = vld [vmem:[%s3] sm:$0x1]
  %v51 = vlaneseq
  %v52 = vshrl.u32 %v51, 7
  %v53 = vsub.s32 0, %v52
  %v54 = vrot.slane %v49, %v53
  %vm56 = vcmask 261120
  %v58 = vsel %vm56, %v29, 0
  %v61 = vsel %vm56, %v30, 0
  %v64 = vsel %vm56, %v31, 0
  %v67 = vsel %vm56, %v32, 0
  %v70 = vsel %vm56, %v33, 0
  %v73 = vsel %vm56, %v34, 0
  %v76 = vsel %vm56, %v35, 0
  %v79 = vsel %vm56, %v36, 0
  %81 = vmatprep.subr.mxu0 0.0
  %82 = vmatpush1.msra.mxu0 %v45
  %83 = vmatprep.subr.mxu0 0.0
  %84 = vmatpush1.msra.mxu0 %v46
  %85 = vmatprep.subr.mxu0 0.0
  %86 = vmatpush1.msra.mxu0 %v47
  %87 = vmatprep.subr.mxu0 0.0
  %88 = vmatpush1.msra.mxu0 %v48
  %89 = vmatprep.subr.mxu0 0.0
  %90 = vmatpush1.msra.mxu0 0.0
  %91 = vmatprep.subr.mxu0 0.0
  %92 = vmatpush1.msra.mxu0 0.0
  %93 = vmatprep.subr.mxu0 0.0
  %94 = vmatpush1.msra.mxu0 0.0
  %95 = vmatprep.subr.mxu0 0.0
  %96 = vmatpush1.msra.mxu0 0.0
  %97 = vmatprep.subr.mxu0 0.0
  %98 = vmatpush1.msra.mxu0 0.0
  %99 = vmatprep.subr.mxu0 0.0
  %100 = vmatpush1.msra.mxu0 0.0
  %101 = vmatprep.subr.mxu0 0.0
  %102 = vmatpush1.msra.mxu0 0.0
  %103 = vmatprep.subr.mxu0 0.0
  %104 = vmatpush1.msra.mxu0 0.0
  %105 = vmatprep.subr.mxu0 0.0
  %106 = vmatpush1.msra.mxu0 0.0
  %107 = vmatprep.subr.mxu0 0.0
  %108 = vmatpush1.msra.mxu0 0.0
  %109 = vmatprep.subr.mxu0 0.0
  %110 = vmatpush1.msra.mxu0 0.0
  %111 = vmatprep.subr.mxu0 0.0
  %112 = vmatpush1.msra.mxu0 0.0
  %113 = vmatprep.subr.mxu0 0.0
  %114 = vmatpush1.msra.mxu0 0.0
  %115 = vmatprep.subr.mxu0 0.0
  %116 = vmatpush1.msra.mxu0 0.0
  %117 = vmatprep.subr.mxu0 0.0
  %118 = vmatpush1.msra.mxu0 0.0
  %119 = vmatprep.subr.mxu0 0.0
  %120 = vmatpush1.msra.mxu0 0.0
  %121 = vmatprep.subr.mxu0 0.0
  %122 = vmatpush1.msra.mxu0 0.0
  %123 = vmatprep.subr.mxu0 0.0
  %124 = vmatpush1.msra.mxu0 0.0
  %125 = vmatprep.subr.mxu0 0.0
  %126 = vmatpush1.msra.mxu0 0.0
  %127 = vmatprep.subr.mxu0 0.0
  %128 = vmatpush1.msra.mxu0 0.0
  %129 = vmatprep.subr.mxu0 0.0
  %130 = vmatpush1.msra.mxu0 0.0
  %131 = vmatprep.subr.mxu0 0.0
  %132 = vmatpush1.msra.mxu0 0.0
  %133 = vmatprep.subr.mxu0 0.0
  %134 = vmatpush1.msra.mxu0 0.0
  %135 = vmatprep.subr.mxu0 0.0
  %136 = vmatpush1.msra.mxu0 0.0
  %137 = vmatprep.subr.mxu0 0.0
  %138 = vmatpush1.msra.mxu0 0.0
  %139 = vmatprep.subr.mxu0 0.0
  %140 = vmatpush1.msra.mxu0 0.0
  %141 = vmatprep.subr.mxu0 0.0
  %142 = vmatpush1.msra.mxu0 0.0
  %143 = vmatprep.subr.mxu0 0.0
  %144 = vmatpush1.msra.mxu0 0.0
  %145 = vmatprep.mubr.f32.mxu0 0.0
  %146 = vmatmul.mubr.f32.gmra.mrb[0].mxu0 %v58
  %v147 = vpop.f32.mrb[0].mxu0
  %v148 = vadd.f32 %v54, %v147
  %v149 = vpop.f32.mrb[0].mxu0
  %150 = vmatprep.mubr.f32.mxu0 0.0
  %151 = vmatmul.mubr.f32.gmra.mrb[0].mxu0 %v61
  %v152 = vpop.f32.mrb[0].mxu0
  %v153 = vadd.f32 %v54, %v152
  %v154 = vpop.f32.mrb[0].mxu0
  %155 = vmatprep.mubr.f32.mxu0 0.0
  %156 = vmatmul.mubr.f32.gmra.mrb[0].mxu0 %v64
  %v157 = vpop.f32.mrb[0].mxu0
  %v158 = vadd.f32 %v54, %v157
  %v159 = vpop.f32.mrb[0].mxu0
  %160 = vmatprep.mubr.f32.mxu0 0.0
  %161 = vmatmul.mubr.f32.gmra.mrb[0].mxu0 %v67
  %v162 = vpop.f32.mrb[0].mxu0
  %v163 = vadd.f32 %v54, %v162
  %v164 = vpop.f32.mrb[0].mxu0
  %165 = vmatprep.mubr.f32.mxu0 0.0
  %166 = vmatmul.mubr.f32.gmra.mrb[0].mxu0 %v70
  %v167 = vpop.f32.mrb[0].mxu0
  %v168 = vadd.f32 %v54, %v167
  %v169 = vpop.f32.mrb[0].mxu0
  %170 = vmatprep.mubr.f32.mxu0 0.0
  %171 = vmatmul.mubr.f32.gmra.mrb[0].mxu0 %v73
  %v172 = vpop.f32.mrb[0].mxu0
  %v173 = vadd.f32 %v54, %v172
  %v174 = vpop.f32.mrb[0].mxu0
  %175 = vmatprep.mubr.f32.mxu0 0.0
  %176 = vmatmul.mubr.f32.gmra.mrb[0].mxu0 %v76
  %v177 = vpop.f32.mrb[0].mxu0
  %v178 = vadd.f32 %v54, %v177
  %v179 = vpop.f32.mrb[0].mxu0
  %180 = vmatprep.mubr.f32.mxu0 0.0
  %181 = vmatmul.mubr.f32.gmra.mrb[0].mxu0 %v79
  %v182 = vpop.f32.mrb[0].mxu0
  %v183 = vadd.f32 %v54, %v182
  %v184 = vpop.f32.mrb[0].mxu0
  %185 = vdwg.mxu0
  %v186 = vld [vmem:[%s4] sm:$0xff]
  %v187 = vld [vmem:[%s4 + $0x8] sm:$0xff]
  %v188 = vld [vmem:[%s4 + $0x10] sm:$0xff]
  %v189 = vld [vmem:[%s4 + $0x18] sm:$0xff]
  %v190 = vld [vmem:[%s5] sm:$0x1]
  %v192 = vlaneseq
  %v193 = vshrl.u32 %v192, 7
  %v194 = vsub.s32 0, %v193
  %v195 = vrot.slane %v190, %v194
  %v198 = vsel %vm56, %v37, 0
  %v201 = vsel %vm56, %v38, 0
  %v204 = vsel %vm56, %v39, 0
  %v207 = vsel %vm56, %v40, 0
  %v210 = vsel %vm56, %v41, 0
  %v213 = vsel %vm56, %v42, 0
  %v216 = vsel %vm56, %v43, 0
  %v219 = vsel %vm56, %v44, 0
  %221 = vmatprep.subr.mxu0 0.0
  %222 = vmatpush1.msra.mxu0 %v186
  %223 = vmatprep.subr.mxu0 0.0
  %224 = vmatpush1.msra.mxu0 %v187
  %225 = vmatprep.subr.mxu0 0.0
  %226 = vmatpush1.msra.mxu0 %v188
  %227 = vmatprep.subr.mxu0 0.0
  %228 = vmatpush1.msra.mxu0 %v189
  %229 = vmatprep.subr.mxu0 0.0
  %230 = vmatpush1.msra.mxu0 0.0
  %231 = vmatprep.subr.mxu0 0.0
  %232 = vmatpush1.msra.mxu0 0.0
  %233 = vmatprep.subr.mxu0 0.0
  %234 = vmatpush1.msra.mxu0 0.0
  %235 = vmatprep.subr.mxu0 0.0
  %236 = vmatpush1.msra.mxu0 0.0
  %237 = vmatprep.subr.mxu0 0.0
  %238 = vmatpush1.msra.mxu0 0.0
  %239 = vmatprep.subr.mxu0 0.0
  %240 = vmatpush1.msra.mxu0 0.0
  %241 = vmatprep.subr.mxu0 0.0
  %242 = vmatpush1.msra.mxu0 0.0
  %243 = vmatprep.subr.mxu0 0.0
  %244 = vmatpush1.msra.mxu0 0.0
  %245 = vmatprep.subr.mxu0 0.0
  %246 = vmatpush1.msra.mxu0 0.0
  %247 = vmatprep.subr.mxu0 0.0
  %248 = vmatpush1.msra.mxu0 0.0
  %249 = vmatprep.subr.mxu0 0.0
  %250 = vmatpush1.msra.mxu0 0.0
  %251 = vmatprep.subr.mxu0 0.0
  %252 = vmatpush1.msra.mxu0 0.0
  %253 = vmatprep.subr.mxu0 0.0
  %254 = vmatpush1.msra.mxu0 0.0
  %255 = vmatprep.subr.mxu0 0.0
  %256 = vmatpush1.msra.mxu0 0.0
  %257 = vmatprep.subr.mxu0 0.0
  %258 = vmatpush1.msra.mxu0 0.0
  %259 = vmatprep.subr.mxu0 0.0
  %260 = vmatpush1.msra.mxu0 0.0
  %261 = vmatprep.subr.mxu0 0.0
  %262 = vmatpush1.msra.mxu0 0.0
  %263 = vmatprep.subr.mxu0 0.0
  %264 = vmatpush1.msra.mxu0 0.0
  %265 = vmatprep.subr.mxu0 0.0
  %266 = vmatpush1.msra.mxu0 0.0
  %267 = vmatprep.subr.mxu0 0.0
  %268 = vmatpush1.msra.mxu0 0.0
  %269 = vmatprep.subr.mxu0 0.0
  %270 = vmatpush1.msra.mxu0 0.0
  %271 = vmatprep.subr.mxu0 0.0
  %272 = vmatpush1.msra.mxu0 0.0
  %273 = vmatprep.subr.mxu0 0.0
  %274 = vmatpush1.msra.mxu0 0.0
  %275 = vmatprep.subr.mxu0 0.0
  %276 = vmatpush1.msra.mxu0 0.0
  %277 = vmatprep.subr.mxu0 0.0
  %278 = vmatpush1.msra.mxu0 0.0
  %279 = vmatprep.subr.mxu0 0.0
  %280 = vmatpush1.msra.mxu0 0.0
  %281 = vmatprep.subr.mxu0 0.0
  %282 = vmatpush1.msra.mxu0 0.0
  %283 = vmatprep.subr.mxu0 0.0
  %284 = vmatpush1.msra.mxu0 0.0
  %285 = vmatprep.mubr.f32.mxu0 0.0
  %286 = vmatmul.mubr.f32.gmra.mrb[0].mxu0 %v198
  %v287 = vpop.f32.mrb[0].mxu0
  %v288 = vadd.f32 %v195, %v287
  %v289 = vpop.f32.mrb[0].mxu0
  %290 = vmatprep.mubr.f32.mxu0 0.0
  %291 = vmatmul.mubr.f32.gmra.mrb[0].mxu0 %v201
  %v292 = vpop.f32.mrb[0].mxu0
  %v293 = vadd.f32 %v195, %v292
  %v294 = vpop.f32.mrb[0].mxu0
  %295 = vmatprep.mubr.f32.mxu0 0.0
  %296 = vmatmul.mubr.f32.gmra.mrb[0].mxu0 %v204
  %v297 = vpop.f32.mrb[0].mxu0
  %v298 = vadd.f32 %v195, %v297
  %v299 = vpop.f32.mrb[0].mxu0
  %300 = vmatprep.mubr.f32.mxu0 0.0
  %301 = vmatmul.mubr.f32.gmra.mrb[0].mxu0 %v207
  %v302 = vpop.f32.mrb[0].mxu0
  %v303 = vadd.f32 %v195, %v302
  %v304 = vpop.f32.mrb[0].mxu0
  %305 = vmatprep.mubr.f32.mxu0 0.0
  %306 = vmatmul.mubr.f32.gmra.mrb[0].mxu0 %v210
  %v307 = vpop.f32.mrb[0].mxu0
  %v308 = vadd.f32 %v195, %v307
  %v309 = vpop.f32.mrb[0].mxu0
  %310 = vmatprep.mubr.f32.mxu0 0.0
  %311 = vmatmul.mubr.f32.gmra.mrb[0].mxu0 %v213
  %v312 = vpop.f32.mrb[0].mxu0
  %v313 = vadd.f32 %v195, %v312
  %v314 = vpop.f32.mrb[0].mxu0
  %315 = vmatprep.mubr.f32.mxu0 0.0
  %316 = vmatmul.mubr.f32.gmra.mrb[0].mxu0 %v216
  %v317 = vpop.f32.mrb[0].mxu0
  %v318 = vadd.f32 %v195, %v317
  %v319 = vpop.f32.mrb[0].mxu0
  %320 = vmatprep.mubr.f32.mxu0 0.0
  %321 = vmatmul.mubr.f32.gmra.mrb[0].mxu0 %v219
  %v322 = vpop.f32.mrb[0].mxu0
  %v323 = vadd.f32 %v195, %v322
  %v324 = vpop.f32.mrb[0].mxu0
  %325 = vdwg.mxu0
  %334 = vrot.lane.b32.xlu0 %v148, 120
  %v335 = vpop.permute.xlu0 %334
  %336 = vrot.lane.b32.xlu0 %v153, 120
  %v337 = vpop.permute.xlu0 %336
  %338 = vrot.lane.b32.xlu0 %v158, 120
  %v339 = vpop.permute.xlu0 %338
  %340 = vrot.lane.b32.xlu0 %v163, 120
  %v341 = vpop.permute.xlu0 %340
  %342 = vrot.lane.b32.xlu0 %v168, 120
  %v343 = vpop.permute.xlu0 %342
  %344 = vrot.lane.b32.xlu0 %v173, 120
  %v345 = vpop.permute.xlu0 %344
  %346 = vrot.lane.b32.xlu0 %v178, 120
  %v347 = vpop.permute.xlu0 %346
  %348 = vrot.lane.b32.xlu0 %v183, 120
  %v349 = vpop.permute.xlu0 %348
  %350 = vrot.lane.b32.xlu0 %v148, 112
  %v351 = vpop.permute.xlu0 %350
  %352 = vrot.lane.b32.xlu0 %v153, 112
  %v353 = vpop.permute.xlu0 %352
  %354 = vrot.lane.b32.xlu0 %v158, 112
  %v355 = vpop.permute.xlu0 %354
  %356 = vrot.lane.b32.xlu0 %v163, 112
  %v357 = vpop.permute.xlu0 %356
  %358 = vrot.lane.b32.xlu0 %v168, 112
  %v359 = vpop.permute.xlu0 %358
  %360 = vrot.lane.b32.xlu0 %v173, 112
  %v361 = vpop.permute.xlu0 %360
  %362 = vrot.lane.b32.xlu0 %v178, 112
  %v363 = vpop.permute.xlu0 %362
  %364 = vrot.lane.b32.xlu0 %v183, 112
  %v365 = vpop.permute.xlu0 %364
  %366 = vrot.lane.b32.xlu0 %v148, 104
  %v367 = vpop.permute.xlu0 %366
  %368 = vrot.lane.b32.xlu0 %v153, 104
  %v369 = vpop.permute.xlu0 %368
  %370 = vrot.lane.b32.xlu0 %v158, 104
  %v371 = vpop.permute.xlu0 %370
  %372 = vrot.lane.b32.xlu0 %v163, 104
  %v373 = vpop.permute.xlu0 %372
  %374 = vrot.lane.b32.xlu0 %v168, 104
  %v375 = vpop.permute.xlu0 %374
  %376 = vrot.lane.b32.xlu0 %v173, 104
  %v377 = vpop.permute.xlu0 %376
  %378 = vrot.lane.b32.xlu0 %v178, 104
  %v379 = vpop.permute.xlu0 %378
  %380 = vrot.lane.b32.xlu0 %v183, 104
  %v381 = vpop.permute.xlu0 %380
  %390 = vrot.lane.b32.xlu0 %v288, 120
  %v391 = vpop.permute.xlu0 %390
  %392 = vrot.lane.b32.xlu0 %v293, 120
  %v393 = vpop.permute.xlu0 %392
  %394 = vrot.lane.b32.xlu0 %v298, 120
  %v395 = vpop.permute.xlu0 %394
  %396 = vrot.lane.b32.xlu0 %v303, 120
  %v397 = vpop.permute.xlu0 %396
  %398 = vrot.lane.b32.xlu0 %v308, 120
  %v399 = vpop.permute.xlu0 %398
  %400 = vrot.lane.b32.xlu0 %v313, 120
  %v401 = vpop.permute.xlu0 %400
  %402 = vrot.lane.b32.xlu0 %v318, 120
  %v403 = vpop.permute.xlu0 %402
  %404 = vrot.lane.b32.xlu0 %v323, 120
  %v405 = vpop.permute.xlu0 %404
  %406 = vrot.lane.b32.xlu0 %v288, 112
  %v407 = vpop.permute.xlu0 %406
  %408 = vrot.lane.b32.xlu0 %v293, 112
  %v409 = vpop.permute.xlu0 %408
  %410 = vrot.lane.b32.xlu0 %v298, 112
  %v411 = vpop.permute.xlu0 %410
  %412 = vrot.lane.b32.xlu0 %v303, 112
  %v413 = vpop.permute.xlu0 %412
  %414 = vrot.lane.b32.xlu0 %v308, 112
  %v415 = vpop.permute.xlu0 %414
  %416 = vrot.lane.b32.xlu0 %v313, 112
  %v417 = vpop.permute.xlu0 %416
  %418 = vrot.lane.b32.xlu0 %v318, 112
  %v419 = vpop.permute.xlu0 %418
  %420 = vrot.lane.b32.xlu0 %v323, 112
  %v421 = vpop.permute.xlu0 %420
  %422 = vrot.lane.b32.xlu0 %v288, 104
  %v423 = vpop.permute.xlu0 %422
  %424 = vrot.lane.b32.xlu0 %v293, 104
  %v425 = vpop.permute.xlu0 %424
  %426 = vrot.lane.b32.xlu0 %v298, 104
  %v427 = vpop.permute.xlu0 %426
  %428 = vrot.lane.b32.xlu0 %v303, 104
  %v429 = vpop.permute.xlu0 %428
  %430 = vrot.lane.b32.xlu0 %v308, 104
  %v431 = vpop.permute.xlu0 %430
  %432 = vrot.lane.b32.xlu0 %v313, 104
  %v433 = vpop.permute.xlu0 %432
  %434 = vrot.lane.b32.xlu0 %v318, 104
  %v435 = vpop.permute.xlu0 %434
  %436 = vrot.lane.b32.xlu0 %v323, 104
  %v437 = vpop.permute.xlu0 %436
  %vm438 = vcmask 64512
  %v439 = vsel %vm438, %v148, 0
  %v441 = vsel %vm438, %v288, 0
  %443 = vmatprep.subr.mxu0 0.0
  %444 = vmatpush1.xpose.msra.mxu0 %v441
  %445 = vmatprep.subr.mxu0 0.0
  %446 = vmatpush1.xpose.msra.mxu0 0.0
  %447 = vmatprep.subr.mxu0 0.0
  %448 = vmatpush1.xpose.msra.mxu0 0.0
  %449 = vmatprep.subr.mxu0 0.0
  %450 = vmatpush1.xpose.msra.mxu0 0.0
  %451 = vmatprep.subr.mxu0 0.0
  %452 = vmatpush1.xpose.msra.mxu0 0.0
  %453 = vmatprep.subr.mxu0 0.0
  %454 = vmatpush1.xpose.msra.mxu0 0.0
  %455 = vmatprep.subr.mxu0 0.0
  %456 = vmatpush1.xpose.msra.mxu0 0.0
  %457 = vmatprep.subr.mxu0 0.0
  %458 = vmatpush1.xpose.msra.mxu0 0.0
  %459 = vmatprep.subr.mxu0 0.0
  %460 = vmatpush1.xpose.msra.mxu0 0.0
  %461 = vmatprep.subr.mxu0 0.0
  %462 = vmatpush1.xpose.msra.mxu0 0.0
  %463 = vmatprep.subr.mxu0 0.0
  %464 = vmatpush1.xpose.msra.mxu0 0.0
  %465 = vmatprep.subr.mxu0 0.0
  %466 = vmatpush1.xpose.msra.mxu0 0.0
  %467 = vmatprep.subr.mxu0 0.0
  %468 = vmatpush1.xpose.msra.mxu0 0.0
  %469 = vmatprep.subr.mxu0 0.0
  %470 = vmatpush1.xpose.msra.mxu0 0.0
  %471 = vmatprep.subr.mxu0 0.0
  %472 = vmatpush1.xpose.msra.mxu0 0.0
  %473 = vmatprep.subr.mxu0 0.0
  %474 = vmatpush1.xpose.msra.mxu0 0.0
  %475 = vmatprep.subr.mxu0 0.0
  %476 = vmatpush1.xpose.msra.mxu0 0.0
  %477 = vmatprep.subr.mxu0 0.0
  %478 = vmatpush1.xpose.msra.mxu0 0.0
  %479 = vmatprep.subr.mxu0 0.0
  %480 = vmatpush1.xpose.msra.mxu0 0.0
  %481 = vmatprep.subr.mxu0 0.0
  %482 = vmatpush1.xpose.msra.mxu0 0.0
  %483 = vmatprep.subr.mxu0 0.0
  %484 = vmatpush1.xpose.msra.mxu0 0.0
  %485 = vmatprep.subr.mxu0 0.0
  %486 = vmatpush1.xpose.msra.mxu0 0.0
  %487 = vmatprep.subr.mxu0 0.0
  %488 = vmatpush1.xpose.msra.mxu0 0.0
  %489 = vmatprep.subr.mxu0 0.0
  %490 = vmatpush1.xpose.msra.mxu0 0.0
  %491 = vmatprep.subr.mxu0 0.0
  %492 = vmatpush1.xpose.msra.mxu0 0.0
  %493 = vmatprep.subr.mxu0 0.0
  %494 = vmatpush1.xpose.msra.mxu0 0.0
  %495 = vmatprep.subr.mxu0 0.0
  %496 = vmatpush1.xpose.msra.mxu0 0.0
  %497 = vmatprep.subr.mxu0 0.0
  %498 = vmatpush1.xpose.msra.mxu0 0.0
  %499 = vmatprep.subr.mxu0 0.0
  %500 = vmatpush1.xpose.msra.mxu0 0.0
  %501 = vmatprep.subr.mxu0 0.0
  %502 = vmatpush1.xpose.msra.mxu0 0.0
  %503 = vmatprep.subr.mxu0 0.0
  %504 = vmatpush1.xpose.msra.mxu0 0.0
  %505 = vmatprep.subr.mxu0 0.0
  %506 = vmatpush1.xpose.msra.mxu0 0.0
  %507 = vmatprep.mubr.f32.mxu0 0.0
  %508 = vmatmul.mubr.f32.gmra.mrb[0].mxu0 %v439
  %v509 = vpop.f32.mrb[0].mxu0
  %v510 = vadd.f32 0.0, %v509
  %v511 = vpop.f32.mrb[0].mxu0
  %512 = vdwg.mxu0
  %v513 = vsel %vm438, %v153, 0
  %v515 = vsel %vm438, %v293, 0
  %517 = vmatprep.subr.mxu0 0.0
  %518 = vmatpush1.xpose.msra.mxu0 %v515
  %519 = vmatprep.subr.mxu0 0.0
  %520 = vmatpush1.xpose.msra.mxu0 0.0
  %521 = vmatprep.subr.mxu0 0.0
  %522 = vmatpush1.xpose.msra.mxu0 0.0
  %523 = vmatprep.subr.mxu0 0.0
  %524 = vmatpush1.xpose.msra.mxu0 0.0
  %525 = vmatprep.subr.mxu0 0.0
  %526 = vmatpush1.xpose.msra.mxu0 0.0
  %527 = vmatprep.subr.mxu0 0.0
  %528 = vmatpush1.xpose.msra.mxu0 0.0
  %529 = vmatprep.subr.mxu0 0.0
  %530 = vmatpush1.xpose.msra.mxu0 0.0
  %531 = vmatprep.subr.mxu0 0.0
  %532 = vmatpush1.xpose.msra.mxu0 0.0
  %533 = vmatprep.subr.mxu0 0.0
  %534 = vmatpush1.xpose.msra.mxu0 0.0
  %535 = vmatprep.subr.mxu0 0.0
  %536 = vmatpush1.xpose.msra.mxu0 0.0
  %537 = vmatprep.subr.mxu0 0.0
  %538 = vmatpush1.xpose.msra.mxu0 0.0
  %539 = vmatprep.subr.mxu0 0.0
  %540 = vmatpush1.xpose.msra.mxu0 0.0
  %541 = vmatprep.subr.mxu0 0.0
  %542 = vmatpush1.xpose.msra.mxu0 0.0
  %543 = vmatprep.subr.mxu0 0.0
  %544 = vmatpush1.xpose.msra.mxu0 0.0
  %545 = vmatprep.subr.mxu0 0.0
  %546 = vmatpush1.xpose.msra.mxu0 0.0
  %547 = vmatprep.subr.mxu0 0.0
  %548 = vmatpush1.xpose.msra.mxu0 0.0
  %549 = vmatprep.subr.mxu0 0.0
  %550 = vmatpush1.xpose.msra.mxu0 0.0
  %551 = vmatprep.subr.mxu0 0.0
  %552 = vmatpush1.xpose.msra.mxu0 0.0
  %553 = vmatprep.subr.mxu0 0.0
  %554 = vmatpush1.xpose.msra.mxu0 0.0
  %555 = vmatprep.subr.mxu0 0.0
  %556 = vmatpush1.xpose.msra.mxu0 0.0
  %557 = vmatprep.subr.mxu0 0.0
  %558 = vmatpush1.xpose.msra.mxu0 0.0
  %559 = vmatprep.subr.mxu0 0.0
  %560 = vmatpush1.xpose.msra.mxu0 0.0
  %561 = vmatprep.subr.mxu0 0.0
  %562 = vmatpush1.xpose.msra.mxu0 0.0
  %563 = vmatprep.subr.mxu0 0.0
  %564 = vmatpush1.xpose.msra.mxu0 0.0
  %565 = vmatprep.subr.mxu0 0.0
  %566 = vmatpush1.xpose.msra.mxu0 0.0
  %567 = vmatprep.subr.mxu0 0.0
  %568 = vmatpush1.xpose.msra.mxu0 0.0
  %569 = vmatprep.subr.mxu0 0.0
  %570 = vmatpush1.xpose.msra.mxu0 0.0
  %571 = vmatprep.subr.mxu0 0.0
  %572 = vmatpush1.xpose.msra.mxu0 0.0
  %573 = vmatprep.subr.mxu0 0.0
  %574 = vmatpush1.xpose.msra.mxu0 0.0
  %575 = vmatprep.subr.mxu0 0.0
  %576 = vmatpush1.xpose.msra.mxu0 0.0
  %577 = vmatprep.subr.mxu0 0.0
  %578 = vmatpush1.xpose.msra.mxu0 0.0
  %579 = vmatprep.subr.mxu0 0.0
  %580 = vmatpush1.xpose.msra.mxu0 0.0
  %581 = vmatprep.mubr.f32.mxu0 0.0
  %582 = vmatmul.mubr.f32.gmra.mrb[0].mxu0 %v513
  %v583 = vpop.f32.mrb[0].mxu0
  %v584 = vadd.f32 0.0, %v583
  %v585 = vpop.f32.mrb[0].mxu0
  %586 = vdwg.mxu0
  %v587 = vsel %vm438, %v158, 0
  %v589 = vsel %vm438, %v298, 0
  %591 = vmatprep.subr.mxu0 0.0
  %592 = vmatpush1.xpose.msra.mxu0 %v589
  %593 = vmatprep.subr.mxu0 0.0
  %594 = vmatpush1.xpose.msra.mxu0 0.0
  %595 = vmatprep.subr.mxu0 0.0
  %596 = vmatpush1.xpose.msra.mxu0 0.0
  %597 = vmatprep.subr.mxu0 0.0
  %598 = vmatpush1.xpose.msra.mxu0 0.0
  %599 = vmatprep.subr.mxu0 0.0
  %600 = vmatpush1.xpose.msra.mxu0 0.0
  %601 = vmatprep.subr.mxu0 0.0
  %602 = vmatpush1.xpose.msra.mxu0 0.0
  %603 = vmatprep.subr.mxu0 0.0
  %604 = vmatpush1.xpose.msra.mxu0 0.0
  %605 = vmatprep.subr.mxu0 0.0
  %606 = vmatpush1.xpose.msra.mxu0 0.0
  %607 = vmatprep.subr.mxu0 0.0
  %608 = vmatpush1.xpose.msra.mxu0 0.0
  %609 = vmatprep.subr.mxu0 0.0
  %610 = vmatpush1.xpose.msra.mxu0 0.0
  %611 = vmatprep.subr.mxu0 0.0
  %612 = vmatpush1.xpose.msra.mxu0 0.0
  %613 = vmatprep.subr.mxu0 0.0
  %614 = vmatpush1.xpose.msra.mxu0 0.0
  %615 = vmatprep.subr.mxu0 0.0
  %616 = vmatpush1.xpose.msra.mxu0 0.0
  %617 = vmatprep.subr.mxu0 0.0
  %618 = vmatpush1.xpose.msra.mxu0 0.0
  %619 = vmatprep.subr.mxu0 0.0
  %620 = vmatpush1.xpose.msra.mxu0 0.0
  %621 = vmatprep.subr.mxu0 0.0
  %622 = vmatpush1.xpose.msra.mxu0 0.0
  %623 = vmatprep.subr.mxu0 0.0
  %624 = vmatpush1.xpose.msra.mxu0 0.0
  %625 = vmatprep.subr.mxu0 0.0
  %626 = vmatpush1.xpose.msra.mxu0 0.0
  %627 = vmatprep.subr.mxu0 0.0
  %628 = vmatpush1.xpose.msra.mxu0 0.0
  %629 = vmatprep.subr.mxu0 0.0
  %630 = vmatpush1.xpose.msra.mxu0 0.0
  %631 = vmatprep.subr.mxu0 0.0
  %632 = vmatpush1.xpose.msra.mxu0 0.0
  %633 = vmatprep.subr.mxu0 0.0
  %634 = vmatpush1.xpose.msra.mxu0 0.0
  %635 = vmatprep.subr.mxu0 0.0
  %636 = vmatpush1.xpose.msra.mxu0 0.0
  %637 = vmatprep.subr.mxu0 0.0
  %638 = vmatpush1.xpose.msra.mxu0 0.0
  %639 = vmatprep.subr.mxu0 0.0
  %640 = vmatpush1.xpose.msra.mxu0 0.0
  %641 = vmatprep.subr.mxu0 0.0
  %642 = vmatpush1.xpose.msra.mxu0 0.0
  %643 = vmatprep.subr.mxu0 0.0
  %644 = vmatpush1.xpose.msra.mxu0 0.0
  %645 = vmatprep.subr.mxu0 0.0
  %646 = vmatpush1.xpose.msra.mxu0 0.0
  %647 = vmatprep.subr.mxu0 0.0
  %648 = vmatpush1.xpose.msra.mxu0 0.0
  %649 = vmatprep.subr.mxu0 0.0
  %650 = vmatpush1.xpose.msra.mxu0 0.0
  %651 = vmatprep.subr.mxu0 0.0
  %652 = vmatpush1.xpose.msra.mxu0 0.0
  %653 = vmatprep.subr.mxu0 0.0
  %654 = vmatpush1.xpose.msra.mxu0 0.0
  %655 = vmatprep.mubr.f32.mxu0 0.0
  %656 = vmatmul.mubr.f32.gmra.mrb[0].mxu0 %v587
  %v657 = vpop.f32.mrb[0].mxu0
  %v658 = vadd.f32 0.0, %v657
  %v659 = vpop.f32.mrb[0].mxu0
  %660 = vdwg.mxu0
  %v661 = vsel %vm438, %v163, 0
  %v663 = vsel %vm438, %v303, 0
  %665 = vmatprep.subr.mxu0 0.0
  %666 = vmatpush1.xpose.msra.mxu0 %v663
  %667 = vmatprep.subr.mxu0 0.0
  %668 = vmatpush1.xpose.msra.mxu0 0.0
  %669 = vmatprep.subr.mxu0 0.0
  %670 = vmatpush1.xpose.msra.mxu0 0.0
  %671 = vmatprep.subr.mxu0 0.0
  %672 = vmatpush1.xpose.msra.mxu0 0.0
  %673 = vmatprep.subr.mxu0 0.0
  %674 = vmatpush1.xpose.msra.mxu0 0.0
  %675 = vmatprep.subr.mxu0 0.0
  %676 = vmatpush1.xpose.msra.mxu0 0.0
  %677 = vmatprep.subr.mxu0 0.0
  %678 = vmatpush1.xpose.msra.mxu0 0.0
  %679 = vmatprep.subr.mxu0 0.0
  %680 = vmatpush1.xpose.msra.mxu0 0.0
  %681 = vmatprep.subr.mxu0 0.0
  %682 = vmatpush1.xpose.msra.mxu0 0.0
  %683 = vmatprep.subr.mxu0 0.0
  %684 = vmatpush1.xpose.msra.mxu0 0.0
  %685 = vmatprep.subr.mxu0 0.0
  %686 = vmatpush1.xpose.msra.mxu0 0.0
  %687 = vmatprep.subr.mxu0 0.0
  %688 = vmatpush1.xpose.msra.mxu0 0.0
  %689 = vmatprep.subr.mxu0 0.0
  %690 = vmatpush1.xpose.msra.mxu0 0.0
  %691 = vmatprep.subr.mxu0 0.0
  %692 = vmatpush1.xpose.msra.mxu0 0.0
  %693 = vmatprep.subr.mxu0 0.0
  %694 = vmatpush1.xpose.msra.mxu0 0.0
  %695 = vmatprep.subr.mxu0 0.0
  %696 = vmatpush1.xpose.msra.mxu0 0.0
  %697 = vmatprep.subr.mxu0 0.0
  %698 = vmatpush1.xpose.msra.mxu0 0.0
  %699 = vmatprep.subr.mxu0 0.0
  %700 = vmatpush1.xpose.msra.mxu0 0.0
  %701 = vmatprep.subr.mxu0 0.0
  %702 = vmatpush1.xpose.msra.mxu0 0.0
  %703 = vmatprep.subr.mxu0 0.0
  %704 = vmatpush1.xpose.msra.mxu0 0.0
  %705 = vmatprep.subr.mxu0 0.0
  %706 = vmatpush1.xpose.msra.mxu0 0.0
  %707 = vmatprep.subr.mxu0 0.0
  %708 = vmatpush1.xpose.msra.mxu0 0.0
  %709 = vmatprep.subr.mxu0 0.0
  %710 = vmatpush1.xpose.msra.mxu0 0.0
  %711 = vmatprep.subr.mxu0 0.0
  %712 = vmatpush1.xpose.msra.mxu0 0.0
  %713 = vmatprep.subr.mxu0 0.0
  %714 = vmatpush1.xpose.msra.mxu0 0.0
  %715 = vmatprep.subr.mxu0 0.0
  %716 = vmatpush1.xpose.msra.mxu0 0.0
  %717 = vmatprep.subr.mxu0 0.0
  %718 = vmatpush1.xpose.msra.mxu0 0.0
  %719 = vmatprep.subr.mxu0 0.0
  %720 = vmatpush1.xpose.msra.mxu0 0.0
  %721 = vmatprep.subr.mxu0 0.0
  %722 = vmatpush1.xpose.msra.mxu0 0.0
  %723 = vmatprep.subr.mxu0 0.0
  %724 = vmatpush1.xpose.msra.mxu0 0.0
  %725 = vmatprep.subr.mxu0 0.0
  %726 = vmatpush1.xpose.msra.mxu0 0.0
  %727 = vmatprep.subr.mxu0 0.0
  %728 = vmatpush1.xpose.msra.mxu0 0.0
  %729 = vmatprep.mubr.f32.mxu0 0.0
  %730 = vmatmul.mubr.f32.gmra.mrb[0].mxu0 %v661
  %v731 = vpop.f32.mrb[0].mxu0
  %v732 = vadd.f32 0.0, %v731
  %v733 = vpop.f32.mrb[0].mxu0
  %734 = vdwg.mxu0
  %v735 = vsel %vm438, %v168, 0
  %v737 = vsel %vm438, %v308, 0
  %739 = vmatprep.subr.mxu0 0.0
  %740 = vmatpush1.xpose.msra.mxu0 %v737
  %741 = vmatprep.subr.mxu0 0.0
  %742 = vmatpush1.xpose.msra.mxu0 0.0
  %743 = vmatprep.subr.mxu0 0.0
  %744 = vmatpush1.xpose.msra.mxu0 0.0
  %745 = vmatprep.subr.mxu0 0.0
  %746 = vmatpush1.xpose.msra.mxu0 0.0
  %747 = vmatprep.subr.mxu0 0.0
  %748 = vmatpush1.xpose.msra.mxu0 0.0
  %749 = vmatprep.subr.mxu0 0.0
  %750 = vmatpush1.xpose.msra.mxu0 0.0
  %751 = vmatprep.subr.mxu0 0.0
  %752 = vmatpush1.xpose.msra.mxu0 0.0
  %753 = vmatprep.subr.mxu0 0.0
  %754 = vmatpush1.xpose.msra.mxu0 0.0
  %755 = vmatprep.subr.mxu0 0.0
  %756 = vmatpush1.xpose.msra.mxu0 0.0
  %757 = vmatprep.subr.mxu0 0.0
  %758 = vmatpush1.xpose.msra.mxu0 0.0
  %759 = vmatprep.subr.mxu0 0.0
  %760 = vmatpush1.xpose.msra.mxu0 0.0
  %761 = vmatprep.subr.mxu0 0.0
  %762 = vmatpush1.xpose.msra.mxu0 0.0
  %763 = vmatprep.subr.mxu0 0.0
  %764 = vmatpush1.xpose.msra.mxu0 0.0
  %765 = vmatprep.subr.mxu0 0.0
  %766 = vmatpush1.xpose.msra.mxu0 0.0
  %767 = vmatprep.subr.mxu0 0.0
  %768 = vmatpush1.xpose.msra.mxu0 0.0
  %769 = vmatprep.subr.mxu0 0.0
  %770 = vmatpush1.xpose.msra.mxu0 0.0
  %771 = vmatprep.subr.mxu0 0.0
  %772 = vmatpush1.xpose.msra.mxu0 0.0
  %773 = vmatprep.subr.mxu0 0.0
  %774 = vmatpush1.xpose.msra.mxu0 0.0
  %775 = vmatprep.subr.mxu0 0.0
  %776 = vmatpush1.xpose.msra.mxu0 0.0
  %777 = vmatprep.subr.mxu0 0.0
  %778 = vmatpush1.xpose.msra.mxu0 0.0
  %779 = vmatprep.subr.mxu0 0.0
  %780 = vmatpush1.xpose.msra.mxu0 0.0
  %781 = vmatprep.subr.mxu0 0.0
  %782 = vmatpush1.xpose.msra.mxu0 0.0
  %783 = vmatprep.subr.mxu0 0.0
  %784 = vmatpush1.xpose.msra.mxu0 0.0
  %785 = vmatprep.subr.mxu0 0.0
  %786 = vmatpush1.xpose.msra.mxu0 0.0
  %787 = vmatprep.subr.mxu0 0.0
  %788 = vmatpush1.xpose.msra.mxu0 0.0
  %789 = vmatprep.subr.mxu0 0.0
  %790 = vmatpush1.xpose.msra.mxu0 0.0
  %791 = vmatprep.subr.mxu0 0.0
  %792 = vmatpush1.xpose.msra.mxu0 0.0
  %793 = vmatprep.subr.mxu0 0.0
  %794 = vmatpush1.xpose.msra.mxu0 0.0
  %795 = vmatprep.subr.mxu0 0.0
  %796 = vmatpush1.xpose.msra.mxu0 0.0
  %797 = vmatprep.subr.mxu0 0.0
  %798 = vmatpush1.xpose.msra.mxu0 0.0
  %799 = vmatprep.subr.mxu0 0.0
  %800 = vmatpush1.xpose.msra.mxu0 0.0
  %801 = vmatprep.subr.mxu0 0.0
  %802 = vmatpush1.xpose.msra.mxu0 0.0
  %803 = vmatprep.mubr.f32.mxu0 0.0
  %804 = vmatmul.mubr.f32.gmra.mrb[0].mxu0 %v735
  %v805 = vpop.f32.mrb[0].mxu0
  %v806 = vadd.f32 0.0, %v805
  %v807 = vpop.f32.mrb[0].mxu0
  %808 = vdwg.mxu0
  %v809 = vsel %vm438, %v173, 0
  %v811 = vsel %vm438, %v313, 0
  %813 = vmatprep.subr.mxu0 0.0
  %814 = vmatpush1.xpose.msra.mxu0 %v811
  %815 = vmatprep.subr.mxu0 0.0
  %816 = vmatpush1.xpose.msra.mxu0 0.0
  %817 = vmatprep.subr.mxu0 0.0
  %818 = vmatpush1.xpose.msra.mxu0 0.0
  %819 = vmatprep.subr.mxu0 0.0
  %820 = vmatpush1.xpose.msra.mxu0 0.0
  %821 = vmatprep.subr.mxu0 0.0
  %822 = vmatpush1.xpose.msra.mxu0 0.0
  %823 = vmatprep.subr.mxu0 0.0
  %824 = vmatpush1.xpose.msra.mxu0 0.0
  %825 = vmatprep.subr.mxu0 0.0
  %826 = vmatpush1.xpose.msra.mxu0 0.0
  %827 = vmatprep.subr.mxu0 0.0
  %828 = vmatpush1.xpose.msra.mxu0 0.0
  %829 = vmatprep.subr.mxu0 0.0
  %830 = vmatpush1.xpose.msra.mxu0 0.0
  %831 = vmatprep.subr.mxu0 0.0
  %832 = vmatpush1.xpose.msra.mxu0 0.0
  %833 = vmatprep.subr.mxu0 0.0
  %834 = vmatpush1.xpose.msra.mxu0 0.0
  %835 = vmatprep.subr.mxu0 0.0
  %836 = vmatpush1.xpose.msra.mxu0 0.0
  %837 = vmatprep.subr.mxu0 0.0
  %838 = vmatpush1.xpose.msra.mxu0 0.0
  %839 = vmatprep.subr.mxu0 0.0
  %840 = vmatpush1.xpose.msra.mxu0 0.0
  %841 = vmatprep.subr.mxu0 0.0
  %842 = vmatpush1.xpose.msra.mxu0 0.0
  %843 = vmatprep.subr.mxu0 0.0
  %844 = vmatpush1.xpose.msra.mxu0 0.0
  %845 = vmatprep.subr.mxu0 0.0
  %846 = vmatpush1.xpose.msra.mxu0 0.0
  %847 = vmatprep.subr.mxu0 0.0
  %848 = vmatpush1.xpose.msra.mxu0 0.0
  %849 = vmatprep.subr.mxu0 0.0
  %850 = vmatpush1.xpose.msra.mxu0 0.0
  %851 = vmatprep.subr.mxu0 0.0
  %852 = vmatpush1.xpose.msra.mxu0 0.0
  %853 = vmatprep.subr.mxu0 0.0
  %854 = vmatpush1.xpose.msra.mxu0 0.0
  %855 = vmatprep.subr.mxu0 0.0
  %856 = vmatpush1.xpose.msra.mxu0 0.0
  %857 = vmatprep.subr.mxu0 0.0
  %858 = vmatpush1.xpose.msra.mxu0 0.0
  %859 = vmatprep.subr.mxu0 0.0
  %860 = vmatpush1.xpose.msra.mxu0 0.0
  %861 = vmatprep.subr.mxu0 0.0
  %862 = vmatpush1.xpose.msra.mxu0 0.0
  %863 = vmatprep.subr.mxu0 0.0
  %864 = vmatpush1.xpose.msra.mxu0 0.0
  %865 = vmatprep.subr.mxu0 0.0
  %866 = vmatpush1.xpose.msra.mxu0 0.0
  %867 = vmatprep.subr.mxu0 0.0
  %868 = vmatpush1.xpose.msra.mxu0 0.0
  %869 = vmatprep.subr.mxu0 0.0
  %870 = vmatpush1.xpose.msra.mxu0 0.0
  %871 = vmatprep.subr.mxu0 0.0
  %872 = vmatpush1.xpose.msra.mxu0 0.0
  %873 = vmatprep.subr.mxu0 0.0
  %874 = vmatpush1.xpose.msra.mxu0 0.0
  %875 = vmatprep.subr.mxu0 0.0
  %876 = vmatpush1.xpose.msra.mxu0 0.0
  %877 = vmatprep.mubr.f32.mxu0 0.0
  %878 = vmatmul.mubr.f32.gmra.mrb[0].mxu0 %v809
  %v879 = vpop.f32.mrb[0].mxu0
  %v880 = vadd.f32 0.0, %v879
  %v881 = vpop.f32.mrb[0].mxu0
  %882 = vdwg.mxu0
  %v883 = vsel %vm438, %v178, 0
  %v885 = vsel %vm438, %v318, 0
  %887 = vmatprep.subr.mxu0 0.0
  %888 = vmatpush1.xpose.msra.mxu0 %v885
  %889 = vmatprep.subr.mxu0 0.0
  %890 = vmatpush1.xpose.msra.mxu0 0.0
  %891 = vmatprep.subr.mxu0 0.0
  %892 = vmatpush1.xpose.msra.mxu0 0.0
  %893 = vmatprep.subr.mxu0 0.0
  %894 = vmatpush1.xpose.msra.mxu0 0.0
  %895 = vmatprep.subr.mxu0 0.0
  %896 = vmatpush1.xpose.msra.mxu0 0.0
  %897 = vmatprep.subr.mxu0 0.0
  %898 = vmatpush1.xpose.msra.mxu0 0.0
  %899 = vmatprep.subr.mxu0 0.0
  %900 = vmatpush1.xpose.msra.mxu0 0.0
  %901 = vmatprep.subr.mxu0 0.0
  %902 = vmatpush1.xpose.msra.mxu0 0.0
  %903 = vmatprep.subr.mxu0 0.0
  %904 = vmatpush1.xpose.msra.mxu0 0.0
  %905 = vmatprep.subr.mxu0 0.0
  %906 = vmatpush1.xpose.msra.mxu0 0.0
  %907 = vmatprep.subr.mxu0 0.0
  %908 = vmatpush1.xpose.msra.mxu0 0.0
  %909 = vmatprep.subr.mxu0 0.0
  %910 = vmatpush1.xpose.msra.mxu0 0.0
  %911 = vmatprep.subr.mxu0 0.0
  %912 = vmatpush1.xpose.msra.mxu0 0.0
  %913 = vmatprep.subr.mxu0 0.0
  %914 = vmatpush1.xpose.msra.mxu0 0.0
  %915 = vmatprep.subr.mxu0 0.0
  %916 = vmatpush1.xpose.msra.mxu0 0.0
  %917 = vmatprep.subr.mxu0 0.0
  %918 = vmatpush1.xpose.msra.mxu0 0.0
  %919 = vmatprep.subr.mxu0 0.0
  %920 = vmatpush1.xpose.msra.mxu0 0.0
  %921 = vmatprep.subr.mxu0 0.0
  %922 = vmatpush1.xpose.msra.mxu0 0.0
  %923 = vmatprep.subr.mxu0 0.0
  %924 = vmatpush1.xpose.msra.mxu0 0.0
  %925 = vmatprep.subr.mxu0 0.0
  %926 = vmatpush1.xpose.msra.mxu0 0.0
  %927 = vmatprep.subr.mxu0 0.0
  %928 = vmatpush1.xpose.msra.mxu0 0.0
  %929 = vmatprep.subr.mxu0 0.0
  %930 = vmatpush1.xpose.msra.mxu0 0.0
  %931 = vmatprep.subr.mxu0 0.0
  %932 = vmatpush1.xpose.msra.mxu0 0.0
  %933 = vmatprep.subr.mxu0 0.0
  %934 = vmatpush1.xpose.msra.mxu0 0.0
  %935 = vmatprep.subr.mxu0 0.0
  %936 = vmatpush1.xpose.msra.mxu0 0.0
  %937 = vmatprep.subr.mxu0 0.0
  %938 = vmatpush1.xpose.msra.mxu0 0.0
  %939 = vmatprep.subr.mxu0 0.0
  %940 = vmatpush1.xpose.msra.mxu0 0.0
  %941 = vmatprep.subr.mxu0 0.0
  %942 = vmatpush1.xpose.msra.mxu0 0.0
  %943 = vmatprep.subr.mxu0 0.0
  %944 = vmatpush1.xpose.msra.mxu0 0.0
  %945 = vmatprep.subr.mxu0 0.0
  %946 = vmatpush1.xpose.msra.mxu0 0.0
  %947 = vmatprep.subr.mxu0 0.0
  %948 = vmatpush1.xpose.msra.mxu0 0.0
  %949 = vmatprep.subr.mxu0 0.0
  %950 = vmatpush1.xpose.msra.mxu0 0.0
  %951 = vmatprep.mubr.f32.mxu0 0.0
  %952 = vmatmul.mubr.f32.gmra.mrb[0].mxu0 %v883
  %v953 = vpop.f32.mrb[0].mxu0
  %v954 = vadd.f32 0.0, %v953
  %v955 = vpop.f32.mrb[0].mxu0
  %956 = vdwg.mxu0
  %v957 = vsel %vm438, %v183, 0
  %v959 = vsel %vm438, %v323, 0
  %961 = vmatprep.subr.mxu0 0.0
  %962 = vmatpush1.xpose.msra.mxu0 %v959
  %963 = vmatprep.subr.mxu0 0.0
  %964 = vmatpush1.xpose.msra.mxu0 0.0
  %965 = vmatprep.subr.mxu0 0.0
  %966 = vmatpush1.xpose.msra.mxu0 0.0
  %967 = vmatprep.subr.mxu0 0.0
  %968 = vmatpush1.xpose.msra.mxu0 0.0
  %969 = vmatprep.subr.mxu0 0.0
  %970 = vmatpush1.xpose.msra.mxu0 0.0
  %971 = vmatprep.subr.mxu0 0.0
  %972 = vmatpush1.xpose.msra.mxu0 0.0
  %973 = vmatprep.subr.mxu0 0.0
  %974 = vmatpush1.xpose.msra.mxu0 0.0
  %975 = vmatprep.subr.mxu0 0.0
  %976 = vmatpush1.xpose.msra.mxu0 0.0
  %977 = vmatprep.subr.mxu0 0.0
  %978 = vmatpush1.xpose.msra.mxu0 0.0
  %979 = vmatprep.subr.mxu0 0.0
  %980 = vmatpush1.xpose.msra.mxu0 0.0
  %981 = vmatprep.subr.mxu0 0.0
  %982 = vmatpush1.xpose.msra.mxu0 0.0
  %983 = vmatprep.subr.mxu0 0.0
  %984 = vmatpush1.xpose.msra.mxu0 0.0
  %985 = vmatprep.subr.mxu0 0.0
  %986 = vmatpush1.xpose.msra.mxu0 0.0
  %987 = vmatprep.subr.mxu0 0.0
  %988 = vmatpush1.xpose.msra.mxu0 0.0
  %989 = vmatprep.subr.mxu0 0.0
  %990 = vmatpush1.xpose.msra.mxu0 0.0
  %991 = vmatprep.subr.mxu0 0.0
  %992 = vmatpush1.xpose.msra.mxu0 0.0
  %993 = vmatprep.subr.mxu0 0.0
  %994 = vmatpush1.xpose.msra.mxu0 0.0
  %995 = vmatprep.subr.mxu0 0.0
  %996 = vmatpush1.xpose.msra.mxu0 0.0
  %997 = vmatprep.subr.mxu0 0.0
  %998 = vmatpush1.xpose.msra.mxu0 0.0
  %999 = vmatprep.subr.mxu0 0.0
  %1000 = vmatpush1.xpose.msra.mxu0 0.0
  %1001 = vmatprep.subr.mxu0 0.0
  %1002 = vmatpush1.xpose.msra.mxu0 0.0
  %1003 = vmatprep.subr.mxu0 0.0
  %1004 = vmatpush1.xpose.msra.mxu0 0.0
  %1005 = vmatprep.subr.mxu0 0.0
  %1006 = vmatpush1.xpose.msra.mxu0 0.0
  %1007 = vmatprep.subr.mxu0 0.0
  %1008 = vmatpush1.xpose.msra.mxu0 0.0
  %1009 = vmatprep.subr.mxu0 0.0
  %1010 = vmatpush1.xpose.msra.mxu0 0.0
  %1011 = vmatprep.subr.mxu0 0.0
  %1012 = vmatpush1.xpose.msra.mxu0 0.0
  %1013 = vmatprep.subr.mxu0 0.0
  %1014 = vmatpush1.xpose.msra.mxu0 0.0
  %1015 = vmatprep.subr.mxu0 0.0
  %1016 = vmatpush1.xpose.msra.mxu0 0.0
  %1017 = vmatprep.subr.mxu0 0.0
  %1018 = vmatpush1.xpose.msra.mxu0 0.0
  %1019 = vmatprep.subr.mxu0 0.0
  %1020 = vmatpush1.xpose.msra.mxu0 0.0
  %1021 = vmatprep.subr.mxu0 0.0
  %1022 = vmatpush1.xpose.msra.mxu0 0.0
  %1023 = vmatprep.subr.mxu0 0.0
  %1024 = vmatpush1.xpose.msra.mxu0 0.0
  %1025 = vmatprep.mubr.f32.mxu0 0.0
  %1026 = vmatmul.mubr.f32.gmra.mrb[0].mxu0 %v957
  %v1027 = vpop.f32.mrb[0].mxu0
  %v1028 = vadd.f32 0.0, %v1027
  %v1029 = vpop.f32.mrb[0].mxu0
  %1030 = vdwg.mxu0
  %v1031 = vsel %vm438, %v335, 0
  %v1033 = vsel %vm438, %v391, 0
  %1035 = vmatprep.subr.mxu0 0.0
  %1036 = vmatpush1.xpose.msra.mxu0 %v1033
  %1037 = vmatprep.subr.mxu0 0.0
  %1038 = vmatpush1.xpose.msra.mxu0 0.0
  %1039 = vmatprep.subr.mxu0 0.0
  %1040 = vmatpush1.xpose.msra.mxu0 0.0
  %1041 = vmatprep.subr.mxu0 0.0
  %1042 = vmatpush1.xpose.msra.mxu0 0.0
  %1043 = vmatprep.subr.mxu0 0.0
  %1044 = vmatpush1.xpose.msra.mxu0 0.0
  %1045 = vmatprep.subr.mxu0 0.0
  %1046 = vmatpush1.xpose.msra.mxu0 0.0
  %1047 = vmatprep.subr.mxu0 0.0
  %1048 = vmatpush1.xpose.msra.mxu0 0.0
  %1049 = vmatprep.subr.mxu0 0.0
  %1050 = vmatpush1.xpose.msra.mxu0 0.0
  %1051 = vmatprep.subr.mxu0 0.0
  %1052 = vmatpush1.xpose.msra.mxu0 0.0
  %1053 = vmatprep.subr.mxu0 0.0
  %1054 = vmatpush1.xpose.msra.mxu0 0.0
  %1055 = vmatprep.subr.mxu0 0.0
  %1056 = vmatpush1.xpose.msra.mxu0 0.0
  %1057 = vmatprep.subr.mxu0 0.0
  %1058 = vmatpush1.xpose.msra.mxu0 0.0
  %1059 = vmatprep.subr.mxu0 0.0
  %1060 = vmatpush1.xpose.msra.mxu0 0.0
  %1061 = vmatprep.subr.mxu0 0.0
  %1062 = vmatpush1.xpose.msra.mxu0 0.0
  %1063 = vmatprep.subr.mxu0 0.0
  %1064 = vmatpush1.xpose.msra.mxu0 0.0
  %1065 = vmatprep.subr.mxu0 0.0
  %1066 = vmatpush1.xpose.msra.mxu0 0.0
  %1067 = vmatprep.subr.mxu0 0.0
  %1068 = vmatpush1.xpose.msra.mxu0 0.0
  %1069 = vmatprep.subr.mxu0 0.0
  %1070 = vmatpush1.xpose.msra.mxu0 0.0
  %1071 = vmatprep.subr.mxu0 0.0
  %1072 = vmatpush1.xpose.msra.mxu0 0.0
  %1073 = vmatprep.subr.mxu0 0.0
  %1074 = vmatpush1.xpose.msra.mxu0 0.0
  %1075 = vmatprep.subr.mxu0 0.0
  %1076 = vmatpush1.xpose.msra.mxu0 0.0
  %1077 = vmatprep.subr.mxu0 0.0
  %1078 = vmatpush1.xpose.msra.mxu0 0.0
  %1079 = vmatprep.subr.mxu0 0.0
  %1080 = vmatpush1.xpose.msra.mxu0 0.0
  %1081 = vmatprep.subr.mxu0 0.0
  %1082 = vmatpush1.xpose.msra.mxu0 0.0
  %1083 = vmatprep.subr.mxu0 0.0
  %1084 = vmatpush1.xpose.msra.mxu0 0.0
  %1085 = vmatprep.subr.mxu0 0.0
  %1086 = vmatpush1.xpose.msra.mxu0 0.0
  %1087 = vmatprep.subr.mxu0 0.0
  %1088 = vmatpush1.xpose.msra.mxu0 0.0
  %1089 = vmatprep.subr.mxu0 0.0
  %1090 = vmatpush1.xpose.msra.mxu0 0.0
  %1091 = vmatprep.subr.mxu0 0.0
  %1092 = vmatpush1.xpose.msra.mxu0 0.0
  %1093 = vmatprep.subr.mxu0 0.0
  %1094 = vmatpush1.xpose.msra.mxu0 0.0
  %1095 = vmatprep.subr.mxu0 0.0
  %1096 = vmatpush1.xpose.msra.mxu0 0.0
  %1097 = vmatprep.subr.mxu0 0.0
  %1098 = vmatpush1.xpose.msra.mxu0 0.0
  %1099 = vmatprep.mubr.f32.mxu0 0.0
  %1100 = vmatmul.mubr.f32.gmra.mrb[0].mxu0 %v1031
  %v1101 = vpop.f32.mrb[0].mxu0
  %v1102 = vadd.f32 0.0, %v1101
  %v1103 = vpop.f32.mrb[0].mxu0
  %1104 = vdwg.mxu0
  %v1105 = vsel %vm438, %v337, 0
  %v1107 = vsel %vm438, %v393, 0
  %1109 = vmatprep.subr.mxu0 0.0
  %1110 = vmatpush1.xpose.msra.mxu0 %v1107
  %1111 = vmatprep.subr.mxu0 0.0
  %1112 = vmatpush1.xpose.msra.mxu0 0.0
  %1113 = vmatprep.subr.mxu0 0.0
  %1114 = vmatpush1.xpose.msra.mxu0 0.0
  %1115 = vmatprep.subr.mxu0 0.0
  %1116 = vmatpush1.xpose.msra.mxu0 0.0
  %1117 = vmatprep.subr.mxu0 0.0
  %1118 = vmatpush1.xpose.msra.mxu0 0.0
  %1119 = vmatprep.subr.mxu0 0.0
  %1120 = vmatpush1.xpose.msra.mxu0 0.0
  %1121 = vmatprep.subr.mxu0 0.0
  %1122 = vmatpush1.xpose.msra.mxu0 0.0
  %1123 = vmatprep.subr.mxu0 0.0
  %1124 = vmatpush1.xpose.msra.mxu0 0.0
  %1125 = vmatprep.subr.mxu0 0.0
  %1126 = vmatpush1.xpose.msra.mxu0 0.0
  %1127 = vmatprep.subr.mxu0 0.0
  %1128 = vmatpush1.xpose.msra.mxu0 0.0
  %1129 = vmatprep.subr.mxu0 0.0
  %1130 = vmatpush1.xpose.msra.mxu0 0.0
  %1131 = vmatprep.subr.mxu0 0.0
  %1132 = vmatpush1.xpose.msra.mxu0 0.0
  %1133 = vmatprep.subr.mxu0 0.0
  %1134 = vmatpush1.xpose.msra.mxu0 0.0
  %1135 = vmatprep.subr.mxu0 0.0
  %1136 = vmatpush1.xpose.msra.mxu0 0.0
  %1137 = vmatprep.subr.mxu0 0.0
  %1138 = vmatpush1.xpose.msra.mxu0 0.0
  %1139 = vmatprep.subr.mxu0 0.0
  %1140 = vmatpush1.xpose.msra.mxu0 0.0
  %1141 = vmatprep.subr.mxu0 0.0
  %1142 = vmatpush1.xpose.msra.mxu0 0.0
  %1143 = vmatprep.subr.mxu0 0.0
  %1144 = vmatpush1.xpose.msra.mxu0 0.0
  %1145 = vmatprep.subr.mxu0 0.0
  %1146 = vmatpush1.xpose.msra.mxu0 0.0
  %1147 = vmatprep.subr.mxu0 0.0
  %1148 = vmatpush1.xpose.msra.mxu0 0.0
  %1149 = vmatprep.subr.mxu0 0.0
  %1150 = vmatpush1.xpose.msra.mxu0 0.0
  %1151 = vmatprep.subr.mxu0 0.0
  %1152 = vmatpush1.xpose.msra.mxu0 0.0
  %1153 = vmatprep.subr.mxu0 0.0
  %1154 = vmatpush1.xpose.msra.mxu0 0.0
  %1155 = vmatprep.subr.mxu0 0.0
  %1156 = vmatpush1.xpose.msra.mxu0 0.0
  %1157 = vmatprep.subr.mxu0 0.0
  %1158 = vmatpush1.xpose.msra.mxu0 0.0
  %1159 = vmatprep.subr.mxu0 0.0
  %1160 = vmatpush1.xpose.msra.mxu0 0.0
  %1161 = vmatprep.subr.mxu0 0.0
  %1162 = vmatpush1.xpose.msra.mxu0 0.0
  %1163 = vmatprep.subr.mxu0 0.0
  %1164 = vmatpush1.xpose.msra.mxu0 0.0
  %1165 = vmatprep.subr.mxu0 0.0
  %1166 = vmatpush1.xpose.msra.mxu0 0.0
  %1167 = vmatprep.subr.mxu0 0.0
  %1168 = vmatpush1.xpose.msra.mxu0 0.0
  %1169 = vmatprep.subr.mxu0 0.0
  %1170 = vmatpush1.xpose.msra.mxu0 0.0
  %1171 = vmatprep.subr.mxu0 0.0
  %1172 = vmatpush1.xpose.msra.mxu0 0.0
  %1173 = vmatprep.mubr.f32.mxu0 0.0
  %1174 = vmatmul.mubr.f32.gmra.mrb[0].mxu0 %v1105
  %v1175 = vpop.f32.mrb[0].mxu0
  %v1176 = vadd.f32 0.0, %v1175
  %v1177 = vpop.f32.mrb[0].mxu0
  %1178 = vdwg.mxu0
  %v1179 = vsel %vm438, %v339, 0
  %v1181 = vsel %vm438, %v395, 0
  %1183 = vmatprep.subr.mxu0 0.0
  %1184 = vmatpush1.xpose.msra.mxu0 %v1181
  %1185 = vmatprep.subr.mxu0 0.0
  %1186 = vmatpush1.xpose.msra.mxu0 0.0
  %1187 = vmatprep.subr.mxu0 0.0
  %1188 = vmatpush1.xpose.msra.mxu0 0.0
  %1189 = vmatprep.subr.mxu0 0.0
  %1190 = vmatpush1.xpose.msra.mxu0 0.0
  %1191 = vmatprep.subr.mxu0 0.0
  %1192 = vmatpush1.xpose.msra.mxu0 0.0
  %1193 = vmatprep.subr.mxu0 0.0
  %1194 = vmatpush1.xpose.msra.mxu0 0.0
  %1195 = vmatprep.subr.mxu0 0.0
  %1196 = vmatpush1.xpose.msra.mxu0 0.0
  %1197 = vmatprep.subr.mxu0 0.0
  %1198 = vmatpush1.xpose.msra.mxu0 0.0
  %1199 = vmatprep.subr.mxu0 0.0
  %1200 = vmatpush1.xpose.msra.mxu0 0.0
  %1201 = vmatprep.subr.mxu0 0.0
  %1202 = vmatpush1.xpose.msra.mxu0 0.0
  %1203 = vmatprep.subr.mxu0 0.0
  %1204 = vmatpush1.xpose.msra.mxu0 0.0
  %1205 = vmatprep.subr.mxu0 0.0
  %1206 = vmatpush1.xpose.msra.mxu0 0.0
  %1207 = vmatprep.subr.mxu0 0.0
  %1208 = vmatpush1.xpose.msra.mxu0 0.0
  %1209 = vmatprep.subr.mxu0 0.0
  %1210 = vmatpush1.xpose.msra.mxu0 0.0
  %1211 = vmatprep.subr.mxu0 0.0
  %1212 = vmatpush1.xpose.msra.mxu0 0.0
  %1213 = vmatprep.subr.mxu0 0.0
  %1214 = vmatpush1.xpose.msra.mxu0 0.0
  %1215 = vmatprep.subr.mxu0 0.0
  %1216 = vmatpush1.xpose.msra.mxu0 0.0
  %1217 = vmatprep.subr.mxu0 0.0
  %1218 = vmatpush1.xpose.msra.mxu0 0.0
  %1219 = vmatprep.subr.mxu0 0.0
  %1220 = vmatpush1.xpose.msra.mxu0 0.0
  %1221 = vmatprep.subr.mxu0 0.0
  %1222 = vmatpush1.xpose.msra.mxu0 0.0
  %1223 = vmatprep.subr.mxu0 0.0
  %1224 = vmatpush1.xpose.msra.mxu0 0.0
  %1225 = vmatprep.subr.mxu0 0.0
  %1226 = vmatpush1.xpose.msra.mxu0 0.0
  %1227 = vmatprep.subr.mxu0 0.0
  %1228 = vmatpush1.xpose.msra.mxu0 0.0
  %1229 = vmatprep.subr.mxu0 0.0
  %1230 = vmatpush1.xpose.msra.mxu0 0.0
  %1231 = vmatprep.subr.mxu0 0.0
  %1232 = vmatpush1.xpose.msra.mxu0 0.0
  %1233 = vmatprep.subr.mxu0 0.0
  %1234 = vmatpush1.xpose.msra.mxu0 0.0
  %1235 = vmatprep.subr.mxu0 0.0
  %1236 = vmatpush1.xpose.msra.mxu0 0.0
  %1237 = vmatprep.subr.mxu0 0.0
  %1238 = vmatpush1.xpose.msra.mxu0 0.0
  %1239 = vmatprep.subr.mxu0 0.0
  %1240 = vmatpush1.xpose.msra.mxu0 0.0
  %1241 = vmatprep.subr.mxu0 0.0
  %1242 = vmatpush1.xpose.msra.mxu0 0.0
  %1243 = vmatprep.subr.mxu0 0.0
  %1244 = vmatpush1.xpose.msra.mxu0 0.0
  %1245 = vmatprep.subr.mxu0 0.0
  %1246 = vmatpush1.xpose.msra.mxu0 0.0
  %1247 = vmatprep.mubr.f32.mxu0 0.0
  %1248 = vmatmul.mubr.f32.gmra.mrb[0].mxu0 %v1179
  %v1249 = vpop.f32.mrb[0].mxu0
  %v1250 = vadd.f32 0.0, %v1249
  %v1251 = vpop.f32.mrb[0].mxu0
  %1252 = vdwg.mxu0
  %v1253 = vsel %vm438, %v341, 0
  %v1255 = vsel %vm438, %v397, 0
  %1257 = vmatprep.subr.mxu0 0.0
  %1258 = vmatpush1.xpose.msra.mxu0 %v1255
  %1259 = vmatprep.subr.mxu0 0.0
  %1260 = vmatpush1.xpose.msra.mxu0 0.0
  %1261 = vmatprep.subr.mxu0 0.0
  %1262 = vmatpush1.xpose.msra.mxu0 0.0
  %1263 = vmatprep.subr.mxu0 0.0
  %1264 = vmatpush1.xpose.msra.mxu0 0.0
  %1265 = vmatprep.subr.mxu0 0.0
  %1266 = vmatpush1.xpose.msra.mxu0 0.0
  %1267 = vmatprep.subr.mxu0 0.0
  %1268 = vmatpush1.xpose.msra.mxu0 0.0
  %1269 = vmatprep.subr.mxu0 0.0
  %1270 = vmatpush1.xpose.msra.mxu0 0.0
  %1271 = vmatprep.subr.mxu0 0.0
  %1272 = vmatpush1.xpose.msra.mxu0 0.0
  %1273 = vmatprep.subr.mxu0 0.0
  %1274 = vmatpush1.xpose.msra.mxu0 0.0
  %1275 = vmatprep.subr.mxu0 0.0
  %1276 = vmatpush1.xpose.msra.mxu0 0.0
  %1277 = vmatprep.subr.mxu0 0.0
  %1278 = vmatpush1.xpose.msra.mxu0 0.0
  %1279 = vmatprep.subr.mxu0 0.0
  %1280 = vmatpush1.xpose.msra.mxu0 0.0
  %1281 = vmatprep.subr.mxu0 0.0
  %1282 = vmatpush1.xpose.msra.mxu0 0.0
  %1283 = vmatprep.subr.mxu0 0.0
  %1284 = vmatpush1.xpose.msra.mxu0 0.0
  %1285 = vmatprep.subr.mxu0 0.0
  %1286 = vmatpush1.xpose.msra.mxu0 0.0
  %1287 = vmatprep.subr.mxu0 0.0
  %1288 = vmatpush1.xpose.msra.mxu0 0.0
  %1289 = vmatprep.subr.mxu0 0.0
  %1290 = vmatpush1.xpose.msra.mxu0 0.0
  %1291 = vmatprep.subr.mxu0 0.0
  %1292 = vmatpush1.xpose.msra.mxu0 0.0
  %1293 = vmatprep.subr.mxu0 0.0
  %1294 = vmatpush1.xpose.msra.mxu0 0.0
  %1295 = vmatprep.subr.mxu0 0.0
  %1296 = vmatpush1.xpose.msra.mxu0 0.0
  %1297 = vmatprep.subr.mxu0 0.0
  %1298 = vmatpush1.xpose.msra.mxu0 0.0
  %1299 = vmatprep.subr.mxu0 0.0
  %1300 = vmatpush1.xpose.msra.mxu0 0.0
  %1301 = vmatprep.subr.mxu0 0.0
  %1302 = vmatpush1.xpose.msra.mxu0 0.0
  %1303 = vmatprep.subr.mxu0 0.0
  %1304 = vmatpush1.xpose.msra.mxu0 0.0
  %1305 = vmatprep.subr.mxu0 0.0
  %1306 = vmatpush1.xpose.msra.mxu0 0.0
  %1307 = vmatprep.subr.mxu0 0.0
  %1308 = vmatpush1.xpose.msra.mxu0 0.0
  %1309 = vmatprep.subr.mxu0 0.0
  %1310 = vmatpush1.xpose.msra.mxu0 0.0
  %1311 = vmatprep.subr.mxu0 0.0
  %1312 = vmatpush1.xpose.msra.mxu0 0.0
  %1313 = vmatprep.subr.mxu0 0.0
  %1314 = vmatpush1.xpose.msra.mxu0 0.0
  %1315 = vmatprep.subr.mxu0 0.0
  %1316 = vmatpush1.xpose.msra.mxu0 0.0
  %1317 = vmatprep.subr.mxu0 0.0
  %1318 = vmatpush1.xpose.msra.mxu0 0.0
  %1319 = vmatprep.subr.mxu0 0.0
  %1320 = vmatpush1.xpose.msra.mxu0 0.0
  %1321 = vmatprep.mubr.f32.mxu0 0.0
  %1322 = vmatmul.mubr.f32.gmra.mrb[0].mxu0 %v1253
  %v1323 = vpop.f32.mrb[0].mxu0
  %v1324 = vadd.f32 0.0, %v1323
  %v1325 = vpop.f32.mrb[0].mxu0
  %1326 = vdwg.mxu0
  %v1327 = vsel %vm438, %v343, 0
  %v1329 = vsel %vm438, %v399, 0
  %1331 = vmatprep.subr.mxu0 0.0
  %1332 = vmatpush1.xpose.msra.mxu0 %v1329
  %1333 = vmatprep.subr.mxu0 0.0
  %1334 = vmatpush1.xpose.msra.mxu0 0.0
  %1335 = vmatprep.subr.mxu0 0.0
  %1336 = vmatpush1.xpose.msra.mxu0 0.0
  %1337 = vmatprep.subr.mxu0 0.0
  %1338 = vmatpush1.xpose.msra.mxu0 0.0
  %1339 = vmatprep.subr.mxu0 0.0
  %1340 = vmatpush1.xpose.msra.mxu0 0.0
  %1341 = vmatprep.subr.mxu0 0.0
  %1342 = vmatpush1.xpose.msra.mxu0 0.0
  %1343 = vmatprep.subr.mxu0 0.0
  %1344 = vmatpush1.xpose.msra.mxu0 0.0
  %1345 = vmatprep.subr.mxu0 0.0
  %1346 = vmatpush1.xpose.msra.mxu0 0.0
  %1347 = vmatprep.subr.mxu0 0.0
  %1348 = vmatpush1.xpose.msra.mxu0 0.0
  %1349 = vmatprep.subr.mxu0 0.0
  %1350 = vmatpush1.xpose.msra.mxu0 0.0
  %1351 = vmatprep.subr.mxu0 0.0
  %1352 = vmatpush1.xpose.msra.mxu0 0.0
  %1353 = vmatprep.subr.mxu0 0.0
  %1354 = vmatpush1.xpose.msra.mxu0 0.0
  %1355 = vmatprep.subr.mxu0 0.0
  %1356 = vmatpush1.xpose.msra.mxu0 0.0
  %1357 = vmatprep.subr.mxu0 0.0
  %1358 = vmatpush1.xpose.msra.mxu0 0.0
  %1359 = vmatprep.subr.mxu0 0.0
  %1360 = vmatpush1.xpose.msra.mxu0 0.0
  %1361 = vmatprep.subr.mxu0 0.0
  %1362 = vmatpush1.xpose.msra.mxu0 0.0
  %1363 = vmatprep.subr.mxu0 0.0
  %1364 = vmatpush1.xpose.msra.mxu0 0.0
  %1365 = vmatprep.subr.mxu0 0.0
  %1366 = vmatpush1.xpose.msra.mxu0 0.0
  %1367 = vmatprep.subr.mxu0 0.0
  %1368 = vmatpush1.xpose.msra.mxu0 0.0
  %1369 = vmatprep.subr.mxu0 0.0
  %1370 = vmatpush1.xpose.msra.mxu0 0.0
  %1371 = vmatprep.subr.mxu0 0.0
  %1372 = vmatpush1.xpose.msra.mxu0 0.0
  %1373 = vmatprep.subr.mxu0 0.0
  %1374 = vmatpush1.xpose.msra.mxu0 0.0
  %1375 = vmatprep.subr.mxu0 0.0
  %1376 = vmatpush1.xpose.msra.mxu0 0.0
  %1377 = vmatprep.subr.mxu0 0.0
  %1378 = vmatpush1.xpose.msra.mxu0 0.0
  %1379 = vmatprep.subr.mxu0 0.0
  %1380 = vmatpush1.xpose.msra.mxu0 0.0
  %1381 = vmatprep.subr.mxu0 0.0
  %1382 = vmatpush1.xpose.msra.mxu0 0.0
  %1383 = vmatprep.subr.mxu0 0.0
  %1384 = vmatpush1.xpose.msra.mxu0 0.0
  %1385 = vmatprep.subr.mxu0 0.0
  %1386 = vmatpush1.xpose.msra.mxu0 0.0
  %1387 = vmatprep.subr.mxu0 0.0
  %1388 = vmatpush1.xpose.msra.mxu0 0.0
  %1389 = vmatprep.subr.mxu0 0.0
  %1390 = vmatpush1.xpose.msra.mxu0 0.0
  %1391 = vmatprep.subr.mxu0 0.0
  %1392 = vmatpush1.xpose.msra.mxu0 0.0
  %1393 = vmatprep.subr.mxu0 0.0
  %1394 = vmatpush1.xpose.msra.mxu0 0.0
  %1395 = vmatprep.mubr.f32.mxu0 0.0
  %1396 = vmatmul.mubr.f32.gmra.mrb[0].mxu0 %v1327
  %v1397 = vpop.f32.mrb[0].mxu0
  %v1398 = vadd.f32 0.0, %v1397
  %v1399 = vpop.f32.mrb[0].mxu0
  %1400 = vdwg.mxu0
  %v1401 = vsel %vm438, %v345, 0
  %v1403 = vsel %vm438, %v401, 0
  %1405 = vmatprep.subr.mxu0 0.0
  %1406 = vmatpush1.xpose.msra.mxu0 %v1403
  %1407 = vmatprep.subr.mxu0 0.0
  %1408 = vmatpush1.xpose.msra.mxu0 0.0
  %1409 = vmatprep.subr.mxu0 0.0
  %1410 = vmatpush1.xpose.msra.mxu0 0.0
  %1411 = vmatprep.subr.mxu0 0.0
  %1412 = vmatpush1.xpose.msra.mxu0 0.0
  %1413 = vmatprep.subr.mxu0 0.0
  %1414 = vmatpush1.xpose.msra.mxu0 0.0
  %1415 = vmatprep.subr.mxu0 0.0
  %1416 = vmatpush1.xpose.msra.mxu0 0.0
  %1417 = vmatprep.subr.mxu0 0.0
  %1418 = vmatpush1.xpose.msra.mxu0 0.0
  %1419 = vmatprep.subr.mxu0 0.0
  %1420 = vmatpush1.xpose.msra.mxu0 0.0
  %1421 = vmatprep.subr.mxu0 0.0
  %1422 = vmatpush1.xpose.msra.mxu0 0.0
  %1423 = vmatprep.subr.mxu0 0.0
  %1424 = vmatpush1.xpose.msra.mxu0 0.0
  %1425 = vmatprep.subr.mxu0 0.0
  %1426 = vmatpush1.xpose.msra.mxu0 0.0
  %1427 = vmatprep.subr.mxu0 0.0
  %1428 = vmatpush1.xpose.msra.mxu0 0.0
  %1429 = vmatprep.subr.mxu0 0.0
  %1430 = vmatpush1.xpose.msra.mxu0 0.0
  %1431 = vmatprep.subr.mxu0 0.0
  %1432 = vmatpush1.xpose.msra.mxu0 0.0
  %1433 = vmatprep.subr.mxu0 0.0
  %1434 = vmatpush1.xpose.msra.mxu0 0.0
  %1435 = vmatprep.subr.mxu0 0.0
  %1436 = vmatpush1.xpose.msra.mxu0 0.0
  %1437 = vmatprep.subr.mxu0 0.0
  %1438 = vmatpush1.xpose.msra.mxu0 0.0
  %1439 = vmatprep.subr.mxu0 0.0
  %1440 = vmatpush1.xpose.msra.mxu0 0.0
  %1441 = vmatprep.subr.mxu0 0.0
  %1442 = vmatpush1.xpose.msra.mxu0 0.0
  %1443 = vmatprep.subr.mxu0 0.0
  %1444 = vmatpush1.xpose.msra.mxu0 0.0
  %1445 = vmatprep.subr.mxu0 0.0
  %1446 = vmatpush1.xpose.msra.mxu0 0.0
  %1447 = vmatprep.subr.mxu0 0.0
  %1448 = vmatpush1.xpose.msra.mxu0 0.0
  %1449 = vmatprep.subr.mxu0 0.0
  %1450 = vmatpush1.xpose.msra.mxu0 0.0
  %1451 = vmatprep.subr.mxu0 0.0
  %1452 = vmatpush1.xpose.msra.mxu0 0.0
  %1453 = vmatprep.subr.mxu0 0.0
  %1454 = vmatpush1.xpose.msra.mxu0 0.0
  %1455 = vmatprep.subr.mxu0 0.0
  %1456 = vmatpush1.xpose.msra.mxu0 0.0
  %1457 = vmatprep.subr.mxu0 0.0
  %1458 = vmatpush1.xpose.msra.mxu0 0.0
  %1459 = vmatprep.subr.mxu0 0.0
  %1460 = vmatpush1.xpose.msra.mxu0 0.0
  %1461 = vmatprep.subr.mxu0 0.0
  %1462 = vmatpush1.xpose.msra.mxu0 0.0
  %1463 = vmatprep.subr.mxu0 0.0
  %1464 = vmatpush1.xpose.msra.mxu0 0.0
  %1465 = vmatprep.subr.mxu0 0.0
  %1466 = vmatpush1.xpose.msra.mxu0 0.0
  %1467 = vmatprep.subr.mxu0 0.0
  %1468 = vmatpush1.xpose.msra.mxu0 0.0
  %1469 = vmatprep.mubr.f32.mxu0 0.0
  %1470 = vmatmul.mubr.f32.gmra.mrb[0].mxu0 %v1401
  %v1471 = vpop.f32.mrb[0].mxu0
  %v1472 = vadd.f32 0.0, %v1471
  %v1473 = vpop.f32.mrb[0].mxu0
  %1474 = vdwg.mxu0
  %v1475 = vsel %vm438, %v347, 0
  %v1477 = vsel %vm438, %v403, 0
  %1479 = vmatprep.subr.mxu0 0.0
  %1480 = vmatpush1.xpose.msra.mxu0 %v1477
  %1481 = vmatprep.subr.mxu0 0.0
  %1482 = vmatpush1.xpose.msra.mxu0 0.0
  %1483 = vmatprep.subr.mxu0 0.0
  %1484 = vmatpush1.xpose.msra.mxu0 0.0
  %1485 = vmatprep.subr.mxu0 0.0
  %1486 = vmatpush1.xpose.msra.mxu0 0.0
  %1487 = vmatprep.subr.mxu0 0.0
  %1488 = vmatpush1.xpose.msra.mxu0 0.0
  %1489 = vmatprep.subr.mxu0 0.0
  %1490 = vmatpush1.xpose.msra.mxu0 0.0
  %1491 = vmatprep.subr.mxu0 0.0
  %1492 = vmatpush1.xpose.msra.mxu0 0.0
  %1493 = vmatprep.subr.mxu0 0.0
  %1494 = vmatpush1.xpose.msra.mxu0 0.0
  %1495 = vmatprep.subr.mxu0 0.0
  %1496 = vmatpush1.xpose.msra.mxu0 0.0
  %1497 = vmatprep.subr.mxu0 0.0
  %1498 = vmatpush1.xpose.msra.mxu0 0.0
  %1499 = vmatprep.subr.mxu0 0.0
  %1500 = vmatpush1.xpose.msra.mxu0 0.0
  %1501 = vmatprep.subr.mxu0 0.0
  %1502 = vmatpush1.xpose.msra.mxu0 0.0
  %1503 = vmatprep.subr.mxu0 0.0
  %1504 = vmatpush1.xpose.msra.mxu0 0.0
  %1505 = vmatprep.subr.mxu0 0.0
  %1506 = vmatpush1.xpose.msra.mxu0 0.0
  %1507 = vmatprep.subr.mxu0 0.0
  %1508 = vmatpush1.xpose.msra.mxu0 0.0
  %1509 = vmatprep.subr.mxu0 0.0
  %1510 = vmatpush1.xpose.msra.mxu0 0.0
  %1511 = vmatprep.subr.mxu0 0.0
  %1512 = vmatpush1.xpose.msra.mxu0 0.0
  %1513 = vmatprep.subr.mxu0 0.0
  %1514 = vmatpush1.xpose.msra.mxu0 0.0
  %1515 = vmatprep.subr.mxu0 0.0
  %1516 = vmatpush1.xpose.msra.mxu0 0.0
  %1517 = vmatprep.subr.mxu0 0.0
  %1518 = vmatpush1.xpose.msra.mxu0 0.0
  %1519 = vmatprep.subr.mxu0 0.0
  %1520 = vmatpush1.xpose.msra.mxu0 0.0
  %1521 = vmatprep.subr.mxu0 0.0
  %1522 = vmatpush1.xpose.msra.mxu0 0.0
  %1523 = vmatprep.subr.mxu0 0.0
  %1524 = vmatpush1.xpose.msra.mxu0 0.0
  %1525 = vmatprep.subr.mxu0 0.0
  %1526 = vmatpush1.xpose.msra.mxu0 0.0
  %1527 = vmatprep.subr.mxu0 0.0
  %1528 = vmatpush1.xpose.msra.mxu0 0.0
  %1529 = vmatprep.subr.mxu0 0.0
  %1530 = vmatpush1.xpose.msra.mxu0 0.0
  %1531 = vmatprep.subr.mxu0 0.0
  %1532 = vmatpush1.xpose.msra.mxu0 0.0
  %1533 = vmatprep.subr.mxu0 0.0
  %1534 = vmatpush1.xpose.msra.mxu0 0.0
  %1535 = vmatprep.subr.mxu0 0.0
  %1536 = vmatpush1.xpose.msra.mxu0 0.0
  %1537 = vmatprep.subr.mxu0 0.0
  %1538 = vmatpush1.xpose.msra.mxu0 0.0
  %1539 = vmatprep.subr.mxu0 0.0
  %1540 = vmatpush1.xpose.msra.mxu0 0.0
  %1541 = vmatprep.subr.mxu0 0.0
  %1542 = vmatpush1.xpose.msra.mxu0 0.0
  %1543 = vmatprep.mubr.f32.mxu0 0.0
  %1544 = vmatmul.mubr.f32.gmra.mrb[0].mxu0 %v1475
  %v1545 = vpop.f32.mrb[0].mxu0
  %v1546 = vadd.f32 0.0, %v1545
  %v1547 = vpop.f32.mrb[0].mxu0
  %1548 = vdwg.mxu0
  %v1549 = vsel %vm438, %v349, 0
  %v1551 = vsel %vm438, %v405, 0
  %1553 = vmatprep.subr.mxu0 0.0
  %1554 = vmatpush1.xpose.msra.mxu0 %v1551
  %1555 = vmatprep.subr.mxu0 0.0
  %1556 = vmatpush1.xpose.msra.mxu0 0.0
  %1557 = vmatprep.subr.mxu0 0.0
  %1558 = vmatpush1.xpose.msra.mxu0 0.0
  %1559 = vmatprep.subr.mxu0 0.0
  %1560 = vmatpush1.xpose.msra.mxu0 0.0
  %1561 = vmatprep.subr.mxu0 0.0
  %1562 = vmatpush1.xpose.msra.mxu0 0.0
  %1563 = vmatprep.subr.mxu0 0.0
  %1564 = vmatpush1.xpose.msra.mxu0 0.0
  %1565 = vmatprep.subr.mxu0 0.0
  %1566 = vmatpush1.xpose.msra.mxu0 0.0
  %1567 = vmatprep.subr.mxu0 0.0
  %1568 = vmatpush1.xpose.msra.mxu0 0.0
  %1569 = vmatprep.subr.mxu0 0.0
  %1570 = vmatpush1.xpose.msra.mxu0 0.0
  %1571 = vmatprep.subr.mxu0 0.0
  %1572 = vmatpush1.xpose.msra.mxu0 0.0
  %1573 = vmatprep.subr.mxu0 0.0
  %1574 = vmatpush1.xpose.msra.mxu0 0.0
  %1575 = vmatprep.subr.mxu0 0.0
  %1576 = vmatpush1.xpose.msra.mxu0 0.0
  %1577 = vmatprep.subr.mxu0 0.0
  %1578 = vmatpush1.xpose.msra.mxu0 0.0
  %1579 = vmatprep.subr.mxu0 0.0
  %1580 = vmatpush1.xpose.msra.mxu0 0.0
  %1581 = vmatprep.subr.mxu0 0.0
  %1582 = vmatpush1.xpose.msra.mxu0 0.0
  %1583 = vmatprep.subr.mxu0 0.0
  %1584 = vmatpush1.xpose.msra.mxu0 0.0
  %1585 = vmatprep.subr.mxu0 0.0
  %1586 = vmatpush1.xpose.msra.mxu0 0.0
  %1587 = vmatprep.subr.mxu0 0.0
  %1588 = vmatpush1.xpose.msra.mxu0 0.0
  %1589 = vmatprep.subr.mxu0 0.0
  %1590 = vmatpush1.xpose.msra.mxu0 0.0
  %1591 = vmatprep.subr.mxu0 0.0
  %1592 = vmatpush1.xpose.msra.mxu0 0.0
  %1593 = vmatprep.subr.mxu0 0.0
  %1594 = vmatpush1.xpose.msra.mxu0 0.0
  %1595 = vmatprep.subr.mxu0 0.0
  %1596 = vmatpush1.xpose.msra.mxu0 0.0
  %1597 = vmatprep.subr.mxu0 0.0
  %1598 = vmatpush1.xpose.msra.mxu0 0.0
  %1599 = vmatprep.subr.mxu0 0.0
  %1600 = vmatpush1.xpose.msra.mxu0 0.0
  %1601 = vmatprep.subr.mxu0 0.0
  %1602 = vmatpush1.xpose.msra.mxu0 0.0
  %1603 = vmatprep.subr.mxu0 0.0
  %1604 = vmatpush1.xpose.msra.mxu0 0.0
  %1605 = vmatprep.subr.mxu0 0.0
  %1606 = vmatpush1.xpose.msra.mxu0 0.0
  %1607 = vmatprep.subr.mxu0 0.0
  %1608 = vmatpush1.xpose.msra.mxu0 0.0
  %1609 = vmatprep.subr.mxu0 0.0
  %1610 = vmatpush1.xpose.msra.mxu0 0.0
  %1611 = vmatprep.subr.mxu0 0.0
  %1612 = vmatpush1.xpose.msra.mxu0 0.0
  %1613 = vmatprep.subr.mxu0 0.0
  %1614 = vmatpush1.xpose.msra.mxu0 0.0
  %1615 = vmatprep.subr.mxu0 0.0
  %1616 = vmatpush1.xpose.msra.mxu0 0.0
  %1617 = vmatprep.mubr.f32.mxu0 0.0
  %1618 = vmatmul.mubr.f32.gmra.mrb[0].mxu0 %v1549
  %v1619 = vpop.f32.mrb[0].mxu0
  %v1620 = vadd.f32 0.0, %v1619
  %v1621 = vpop.f32.mrb[0].mxu0
  %1622 = vdwg.mxu0
  %v1623 = vsel %vm438, %v351, 0
  %v1625 = vsel %vm438, %v407, 0
  %1627 = vmatprep.subr.mxu0 0.0
  %1628 = vmatpush1.xpose.msra.mxu0 %v1625
  %1629 = vmatprep.subr.mxu0 0.0
  %1630 = vmatpush1.xpose.msra.mxu0 0.0
  %1631 = vmatprep.subr.mxu0 0.0
  %1632 = vmatpush1.xpose.msra.mxu0 0.0
  %1633 = vmatprep.subr.mxu0 0.0
  %1634 = vmatpush1.xpose.msra.mxu0 0.0
  %1635 = vmatprep.subr.mxu0 0.0
  %1636 = vmatpush1.xpose.msra.mxu0 0.0
  %1637 = vmatprep.subr.mxu0 0.0
  %1638 = vmatpush1.xpose.msra.mxu0 0.0
  %1639 = vmatprep.subr.mxu0 0.0
  %1640 = vmatpush1.xpose.msra.mxu0 0.0
  %1641 = vmatprep.subr.mxu0 0.0
  %1642 = vmatpush1.xpose.msra.mxu0 0.0
  %1643 = vmatprep.subr.mxu0 0.0
  %1644 = vmatpush1.xpose.msra.mxu0 0.0
  %1645 = vmatprep.subr.mxu0 0.0
  %1646 = vmatpush1.xpose.msra.mxu0 0.0
  %1647 = vmatprep.subr.mxu0 0.0
  %1648 = vmatpush1.xpose.msra.mxu0 0.0
  %1649 = vmatprep.subr.mxu0 0.0
  %1650 = vmatpush1.xpose.msra.mxu0 0.0
  %1651 = vmatprep.subr.mxu0 0.0
  %1652 = vmatpush1.xpose.msra.mxu0 0.0
  %1653 = vmatprep.subr.mxu0 0.0
  %1654 = vmatpush1.xpose.msra.mxu0 0.0
  %1655 = vmatprep.subr.mxu0 0.0
  %1656 = vmatpush1.xpose.msra.mxu0 0.0
  %1657 = vmatprep.subr.mxu0 0.0
  %1658 = vmatpush1.xpose.msra.mxu0 0.0
  %1659 = vmatprep.subr.mxu0 0.0
  %1660 = vmatpush1.xpose.msra.mxu0 0.0
  %1661 = vmatprep.subr.mxu0 0.0
  %1662 = vmatpush1.xpose.msra.mxu0 0.0
  %1663 = vmatprep.subr.mxu0 0.0
  %1664 = vmatpush1.xpose.msra.mxu0 0.0
  %1665 = vmatprep.subr.mxu0 0.0
  %1666 = vmatpush1.xpose.msra.mxu0 0.0
  %1667 = vmatprep.subr.mxu0 0.0
  %1668 = vmatpush1.xpose.msra.mxu0 0.0
  %1669 = vmatprep.subr.mxu0 0.0
  %1670 = vmatpush1.xpose.msra.mxu0 0.0
  %1671 = vmatprep.subr.mxu0 0.0
  %1672 = vmatpush1.xpose.msra.mxu0 0.0
  %1673 = vmatprep.subr.mxu0 0.0
  %1674 = vmatpush1.xpose.msra.mxu0 0.0
  %1675 = vmatprep.subr.mxu0 0.0
  %1676 = vmatpush1.xpose.msra.mxu0 0.0
  %1677 = vmatprep.subr.mxu0 0.0
  %1678 = vmatpush1.xpose.msra.mxu0 0.0
  %1679 = vmatprep.subr.mxu0 0.0
  %1680 = vmatpush1.xpose.msra.mxu0 0.0
  %1681 = vmatprep.subr.mxu0 0.0
  %1682 = vmatpush1.xpose.msra.mxu0 0.0
  %1683 = vmatprep.subr.mxu0 0.0
  %1684 = vmatpush1.xpose.msra.mxu0 0.0
  %1685 = vmatprep.subr.mxu0 0.0
  %1686 = vmatpush1.xpose.msra.mxu0 0.0
  %1687 = vmatprep.subr.mxu0 0.0
  %1688 = vmatpush1.xpose.msra.mxu0 0.0
  %1689 = vmatprep.subr.mxu0 0.0
  %1690 = vmatpush1.xpose.msra.mxu0 0.0
  %1691 = vmatprep.mubr.f32.mxu0 0.0
  %1692 = vmatmul.mubr.f32.gmra.mrb[0].mxu0 %v1623
  %v1693 = vpop.f32.mrb[0].mxu0
  %v1694 = vadd.f32 0.0, %v1693
  %v1695 = vpop.f32.mrb[0].mxu0
  %1696 = vdwg.mxu0
  %v1697 = vsel %vm438, %v353, 0
  %v1699 = vsel %vm438, %v409, 0
  %1701 = vmatprep.subr.mxu0 0.0
  %1702 = vmatpush1.xpose.msra.mxu0 %v1699
  %1703 = vmatprep.subr.mxu0 0.0
  %1704 = vmatpush1.xpose.msra.mxu0 0.0
  %1705 = vmatprep.subr.mxu0 0.0
  %1706 = vmatpush1.xpose.msra.mxu0 0.0
  %1707 = vmatprep.subr.mxu0 0.0
  %1708 = vmatpush1.xpose.msra.mxu0 0.0
  %1709 = vmatprep.subr.mxu0 0.0
  %1710 = vmatpush1.xpose.msra.mxu0 0.0
  %1711 = vmatprep.subr.mxu0 0.0
  %1712 = vmatpush1.xpose.msra.mxu0 0.0
  %1713 = vmatprep.subr.mxu0 0.0
  %1714 = vmatpush1.xpose.msra.mxu0 0.0
  %1715 = vmatprep.subr.mxu0 0.0
  %1716 = vmatpush1.xpose.msra.mxu0 0.0
  %1717 = vmatprep.subr.mxu0 0.0
  %1718 = vmatpush1.xpose.msra.mxu0 0.0
  %1719 = vmatprep.subr.mxu0 0.0
  %1720 = vmatpush1.xpose.msra.mxu0 0.0
  %1721 = vmatprep.subr.mxu0 0.0
  %1722 = vmatpush1.xpose.msra.mxu0 0.0
  %1723 = vmatprep.subr.mxu0 0.0
  %1724 = vmatpush1.xpose.msra.mxu0 0.0
  %1725 = vmatprep.subr.mxu0 0.0
  %1726 = vmatpush1.xpose.msra.mxu0 0.0
  %1727 = vmatprep.subr.mxu0 0.0
  %1728 = vmatpush1.xpose.msra.mxu0 0.0
  %1729 = vmatprep.subr.mxu0 0.0
  %1730 = vmatpush1.xpose.msra.mxu0 0.0
  %1731 = vmatprep.subr.mxu0 0.0
  %1732 = vmatpush1.xpose.msra.mxu0 0.0
  %1733 = vmatprep.subr.mxu0 0.0
  %1734 = vmatpush1.xpose.msra.mxu0 0.0
  %1735 = vmatprep.subr.mxu0 0.0
  %1736 = vmatpush1.xpose.msra.mxu0 0.0
  %1737 = vmatprep.subr.mxu0 0.0
  %1738 = vmatpush1.xpose.msra.mxu0 0.0
  %1739 = vmatprep.subr.mxu0 0.0
  %1740 = vmatpush1.xpose.msra.mxu0 0.0
  %1741 = vmatprep.subr.mxu0 0.0
  %1742 = vmatpush1.xpose.msra.mxu0 0.0
  %1743 = vmatprep.subr.mxu0 0.0
  %1744 = vmatpush1.xpose.msra.mxu0 0.0
  %1745 = vmatprep.subr.mxu0 0.0
  %1746 = vmatpush1.xpose.msra.mxu0 0.0
  %1747 = vmatprep.subr.mxu0 0.0
  %1748 = vmatpush1.xpose.msra.mxu0 0.0
  %1749 = vmatprep.subr.mxu0 0.0
  %1750 = vmatpush1.xpose.msra.mxu0 0.0
  %1751 = vmatprep.subr.mxu0 0.0
  %1752 = vmatpush1.xpose.msra.mxu0 0.0
  %1753 = vmatprep.subr.mxu0 0.0
  %1754 = vmatpush1.xpose.msra.mxu0 0.0
  %1755 = vmatprep.subr.mxu0 0.0
  %1756 = vmatpush1.xpose.msra.mxu0 0.0
  %1757 = vmatprep.subr.mxu0 0.0
  %1758 = vmatpush1.xpose.msra.mxu0 0.0
  %1759 = vmatprep.subr.mxu0 0.0
  %1760 = vmatpush1.xpose.msra.mxu0 0.0
  %1761 = vmatprep.subr.mxu0 0.0
  %1762 = vmatpush1.xpose.msra.mxu0 0.0
  %1763 = vmatprep.subr.mxu0 0.0
  %1764 = vmatpush1.xpose.msra.mxu0 0.0
  %1765 = vmatprep.mubr.f32.mxu0 0.0
  %1766 = vmatmul.mubr.f32.gmra.mrb[0].mxu0 %v1697
  %v1767 = vpop.f32.mrb[0].mxu0
  %v1768 = vadd.f32 0.0, %v1767
  %v1769 = vpop.f32.mrb[0].mxu0
  %1770 = vdwg.mxu0
  %v1771 = vsel %vm438, %v355, 0
  %v1773 = vsel %vm438, %v411, 0
  %1775 = vmatprep.subr.mxu0 0.0
  %1776 = vmatpush1.xpose.msra.mxu0 %v1773
  %1777 = vmatprep.subr.mxu0 0.0
  %1778 = vmatpush1.xpose.msra.mxu0 0.0
  %1779 = vmatprep.subr.mxu0 0.0
  %1780 = vmatpush1.xpose.msra.mxu0 0.0
  %1781 = vmatprep.subr.mxu0 0.0
  %1782 = vmatpush1.xpose.msra.mxu0 0.0
  %1783 = vmatprep.subr.mxu0 0.0
  %1784 = vmatpush1.xpose.msra.mxu0 0.0
  %1785 = vmatprep.subr.mxu0 0.0
  %1786 = vmatpush1.xpose.msra.mxu0 0.0
  %1787 = vmatprep.subr.mxu0 0.0
  %1788 = vmatpush1.xpose.msra.mxu0 0.0
  %1789 = vmatprep.subr.mxu0 0.0
  %1790 = vmatpush1.xpose.msra.mxu0 0.0
  %1791 = vmatprep.subr.mxu0 0.0
  %1792 = vmatpush1.xpose.msra.mxu0 0.0
  %1793 = vmatprep.subr.mxu0 0.0
  %1794 = vmatpush1.xpose.msra.mxu0 0.0
  %1795 = vmatprep.subr.mxu0 0.0
  %1796 = vmatpush1.xpose.msra.mxu0 0.0
  %1797 = vmatprep.subr.mxu0 0.0
  %1798 = vmatpush1.xpose.msra.mxu0 0.0
  %1799 = vmatprep.subr.mxu0 0.0
  %1800 = vmatpush1.xpose.msra.mxu0 0.0
  %1801 = vmatprep.subr.mxu0 0.0
  %1802 = vmatpush1.xpose.msra.mxu0 0.0
  %1803 = vmatprep.subr.mxu0 0.0
  %1804 = vmatpush1.xpose.msra.mxu0 0.0
  %1805 = vmatprep.subr.mxu0 0.0
  %1806 = vmatpush1.xpose.msra.mxu0 0.0
  %1807 = vmatprep.subr.mxu0 0.0
  %1808 = vmatpush1.xpose.msra.mxu0 0.0
  %1809 = vmatprep.subr.mxu0 0.0
  %1810 = vmatpush1.xpose.msra.mxu0 0.0
  %1811 = vmatprep.subr.mxu0 0.0
  %1812 = vmatpush1.xpose.msra.mxu0 0.0
  %1813 = vmatprep.subr.mxu0 0.0
  %1814 = vmatpush1.xpose.msra.mxu0 0.0
  %1815 = vmatprep.subr.mxu0 0.0
  %1816 = vmatpush1.xpose.msra.mxu0 0.0
  %1817 = vmatprep.subr.mxu0 0.0
  %1818 = vmatpush1.xpose.msra.mxu0 0.0
  %1819 = vmatprep.subr.mxu0 0.0
  %1820 = vmatpush1.xpose.msra.mxu0 0.0
  %1821 = vmatprep.subr.mxu0 0.0
  %1822 = vmatpush1.xpose.msra.mxu0 0.0
  %1823 = vmatprep.subr.mxu0 0.0
  %1824 = vmatpush1.xpose.msra.mxu0 0.0
  %1825 = vmatprep.subr.mxu0 0.0
  %1826 = vmatpush1.xpose.msra.mxu0 0.0
  %1827 = vmatprep.subr.mxu0 0.0
  %1828 = vmatpush1.xpose.msra.mxu0 0.0
  %1829 = vmatprep.subr.mxu0 0.0
  %1830 = vmatpush1.xpose.msra.mxu0 0.0
  %1831 = vmatprep.subr.mxu0 0.0
  %1832 = vmatpush1.xpose.msra.mxu0 0.0
  %1833 = vmatprep.subr.mxu0 0.0
  %1834 = vmatpush1.xpose.msra.mxu0 0.0
  %1835 = vmatprep.subr.mxu0 0.0
  %1836 = vmatpush1.xpose.msra.mxu0 0.0
  %1837 = vmatprep.subr.mxu0 0.0
  %1838 = vmatpush1.xpose.msra.mxu0 0.0
  %1839 = vmatprep.mubr.f32.mxu0 0.0
  %1840 = vmatmul.mubr.f32.gmra.mrb[0].mxu0 %v1771
  %v1841 = vpop.f32.mrb[0].mxu0
  %v1842 = vadd.f32 0.0, %v1841
  %v1843 = vpop.f32.mrb[0].mxu0
  %1844 = vdwg.mxu0
  %v1845 = vsel %vm438, %v357, 0
  %v1847 = vsel %vm438, %v413, 0
  %1849 = vmatprep.subr.mxu0 0.0
  %1850 = vmatpush1.xpose.msra.mxu0 %v1847
  %1851 = vmatprep.subr.mxu0 0.0
  %1852 = vmatpush1.xpose.msra.mxu0 0.0
  %1853 = vmatprep.subr.mxu0 0.0
  %1854 = vmatpush1.xpose.msra.mxu0 0.0
  %1855 = vmatprep.subr.mxu0 0.0
  %1856 = vmatpush1.xpose.msra.mxu0 0.0
  %1857 = vmatprep.subr.mxu0 0.0
  %1858 = vmatpush1.xpose.msra.mxu0 0.0
  %1859 = vmatprep.subr.mxu0 0.0
  %1860 = vmatpush1.xpose.msra.mxu0 0.0
  %1861 = vmatprep.subr.mxu0 0.0
  %1862 = vmatpush1.xpose.msra.mxu0 0.0
  %1863 = vmatprep.subr.mxu0 0.0
  %1864 = vmatpush1.xpose.msra.mxu0 0.0
  %1865 = vmatprep.subr.mxu0 0.0
  %1866 = vmatpush1.xpose.msra.mxu0 0.0
  %1867 = vmatprep.subr.mxu0 0.0
  %1868 = vmatpush1.xpose.msra.mxu0 0.0
  %1869 = vmatprep.subr.mxu0 0.0
  %1870 = vmatpush1.xpose.msra.mxu0 0.0
  %1871 = vmatprep.subr.mxu0 0.0
  %1872 = vmatpush1.xpose.msra.mxu0 0.0
  %1873 = vmatprep.subr.mxu0 0.0
  %1874 = vmatpush1.xpose.msra.mxu0 0.0
  %1875 = vmatprep.subr.mxu0 0.0
  %1876 = vmatpush1.xpose.msra.mxu0 0.0
  %1877 = vmatprep.subr.mxu0 0.0
  %1878 = vmatpush1.xpose.msra.mxu0 0.0
  %1879 = vmatprep.subr.mxu0 0.0
  %1880 = vmatpush1.xpose.msra.mxu0 0.0
  %1881 = vmatprep.subr.mxu0 0.0
  %1882 = vmatpush1.xpose.msra.mxu0 0.0
  %1883 = vmatprep.subr.mxu0 0.0
  %1884 = vmatpush1.xpose.msra.mxu0 0.0
  %1885 = vmatprep.subr.mxu0 0.0
  %1886 = vmatpush1.xpose.msra.mxu0 0.0
  %1887 = vmatprep.subr.mxu0 0.0
  %1888 = vmatpush1.xpose.msra.mxu0 0.0
  %1889 = vmatprep.subr.mxu0 0.0
  %1890 = vmatpush1.xpose.msra.mxu0 0.0
  %1891 = vmatprep.subr.mxu0 0.0
  %1892 = vmatpush1.xpose.msra.mxu0 0.0
  %1893 = vmatprep.subr.mxu0 0.0
  %1894 = vmatpush1.xpose.msra.mxu0 0.0
  %1895 = vmatprep.subr.mxu0 0.0
  %1896 = vmatpush1.xpose.msra.mxu0 0.0
  %1897 = vmatprep.subr.mxu0 0.0
  %1898 = vmatpush1.xpose.msra.mxu0 0.0
  %1899 = vmatprep.subr.mxu0 0.0
  %1900 = vmatpush1.xpose.msra.mxu0 0.0
  %1901 = vmatprep.subr.mxu0 0.0
  %1902 = vmatpush1.xpose.msra.mxu0 0.0
  %1903 = vmatprep.subr.mxu0 0.0
  %1904 = vmatpush1.xpose.msra.mxu0 0.0
  %1905 = vmatprep.subr.mxu0 0.0
  %1906 = vmatpush1.xpose.msra.mxu0 0.0
  %1907 = vmatprep.subr.mxu0 0.0
  %1908 = vmatpush1.xpose.msra.mxu0 0.0
  %1909 = vmatprep.subr.mxu0 0.0
  %1910 = vmatpush1.xpose.msra.mxu0 0.0
  %1911 = vmatprep.subr.mxu0 0.0
  %1912 = vmatpush1.xpose.msra.mxu0 0.0
  %1913 = vmatprep.mubr.f32.mxu0 0.0
  %1914 = vmatmul.mubr.f32.gmra.mrb[0].mxu0 %v1845
  %v1915 = vpop.f32.mrb[0].mxu0
  %v1916 = vadd.f32 0.0, %v1915
  %v1917 = vpop.f32.mrb[0].mxu0
  %1918 = vdwg.mxu0
  %v1919 = vsel %vm438, %v359, 0
  %v1921 = vsel %vm438, %v415, 0
  %1923 = vmatprep.subr.mxu0 0.0
  %1924 = vmatpush1.xpose.msra.mxu0 %v1921
  %1925 = vmatprep.subr.mxu0 0.0
  %1926 = vmatpush1.xpose.msra.mxu0 0.0
  %1927 = vmatprep.subr.mxu0 0.0
  %1928 = vmatpush1.xpose.msra.mxu0 0.0
  %1929 = vmatprep.subr.mxu0 0.0
  %1930 = vmatpush1.xpose.msra.mxu0 0.0
  %1931 = vmatprep.subr.mxu0 0.0
  %1932 = vmatpush1.xpose.msra.mxu0 0.0
  %1933 = vmatprep.subr.mxu0 0.0
  %1934 = vmatpush1.xpose.msra.mxu0 0.0
  %1935 = vmatprep.subr.mxu0 0.0
  %1936 = vmatpush1.xpose.msra.mxu0 0.0
  %1937 = vmatprep.subr.mxu0 0.0
  %1938 = vmatpush1.xpose.msra.mxu0 0.0
  %1939 = vmatprep.subr.mxu0 0.0
  %1940 = vmatpush1.xpose.msra.mxu0 0.0
  %1941 = vmatprep.subr.mxu0 0.0
  %1942 = vmatpush1.xpose.msra.mxu0 0.0
  %1943 = vmatprep.subr.mxu0 0.0
  %1944 = vmatpush1.xpose.msra.mxu0 0.0
  %1945 = vmatprep.subr.mxu0 0.0
  %1946 = vmatpush1.xpose.msra.mxu0 0.0
  %1947 = vmatprep.subr.mxu0 0.0
  %1948 = vmatpush1.xpose.msra.mxu0 0.0
  %1949 = vmatprep.subr.mxu0 0.0
  %1950 = vmatpush1.xpose.msra.mxu0 0.0
  %1951 = vmatprep.subr.mxu0 0.0
  %1952 = vmatpush1.xpose.msra.mxu0 0.0
  %1953 = vmatprep.subr.mxu0 0.0
  %1954 = vmatpush1.xpose.msra.mxu0 0.0
  %1955 = vmatprep.subr.mxu0 0.0
  %1956 = vmatpush1.xpose.msra.mxu0 0.0
  %1957 = vmatprep.subr.mxu0 0.0
  %1958 = vmatpush1.xpose.msra.mxu0 0.0
  %1959 = vmatprep.subr.mxu0 0.0
  %1960 = vmatpush1.xpose.msra.mxu0 0.0
  %1961 = vmatprep.subr.mxu0 0.0
  %1962 = vmatpush1.xpose.msra.mxu0 0.0
  %1963 = vmatprep.subr.mxu0 0.0
  %1964 = vmatpush1.xpose.msra.mxu0 0.0
  %1965 = vmatprep.subr.mxu0 0.0
  %1966 = vmatpush1.xpose.msra.mxu0 0.0
  %1967 = vmatprep.subr.mxu0 0.0
  %1968 = vmatpush1.xpose.msra.mxu0 0.0
  %1969 = vmatprep.subr.mxu0 0.0
  %1970 = vmatpush1.xpose.msra.mxu0 0.0
  %1971 = vmatprep.subr.mxu0 0.0
  %1972 = vmatpush1.xpose.msra.mxu0 0.0
  %1973 = vmatprep.subr.mxu0 0.0
  %1974 = vmatpush1.xpose.msra.mxu0 0.0
  %1975 = vmatprep.subr.mxu0 0.0
  %1976 = vmatpush1.xpose.msra.mxu0 0.0
  %1977 = vmatprep.subr.mxu0 0.0
  %1978 = vmatpush1.xpose.msra.mxu0 0.0
  %1979 = vmatprep.subr.mxu0 0.0
  %1980 = vmatpush1.xpose.msra.mxu0 0.0
  %1981 = vmatprep.subr.mxu0 0.0
  %1982 = vmatpush1.xpose.msra.mxu0 0.0
  %1983 = vmatprep.subr.mxu0 0.0
  %1984 = vmatpush1.xpose.msra.mxu0 0.0
  %1985 = vmatprep.subr.mxu0 0.0
  %1986 = vmatpush1.xpose.msra.mxu0 0.0
  %1987 = vmatprep.mubr.f32.mxu0 0.0
  %1988 = vmatmul.mubr.f32.gmra.mrb[0].mxu0 %v1919
  %v1989 = vpop.f32.mrb[0].mxu0
  %v1990 = vadd.f32 0.0, %v1989
  %v1991 = vpop.f32.mrb[0].mxu0
  %1992 = vdwg.mxu0
  %v1993 = vsel %vm438, %v361, 0
  %v1995 = vsel %vm438, %v417, 0
  %1997 = vmatprep.subr.mxu0 0.0
  %1998 = vmatpush1.xpose.msra.mxu0 %v1995
  %1999 = vmatprep.subr.mxu0 0.0
  %2000 = vmatpush1.xpose.msra.mxu0 0.0
  %2001 = vmatprep.subr.mxu0 0.0
  %2002 = vmatpush1.xpose.msra.mxu0 0.0
  %2003 = vmatprep.subr.mxu0 0.0
  %2004 = vmatpush1.xpose.msra.mxu0 0.0
  %2005 = vmatprep.subr.mxu0 0.0
  %2006 = vmatpush1.xpose.msra.mxu0 0.0
  %2007 = vmatprep.subr.mxu0 0.0
  %2008 = vmatpush1.xpose.msra.mxu0 0.0
  %2009 = vmatprep.subr.mxu0 0.0
  %2010 = vmatpush1.xpose.msra.mxu0 0.0
  %2011 = vmatprep.subr.mxu0 0.0
  %2012 = vmatpush1.xpose.msra.mxu0 0.0
  %2013 = vmatprep.subr.mxu0 0.0
  %2014 = vmatpush1.xpose.msra.mxu0 0.0
  %2015 = vmatprep.subr.mxu0 0.0
  %2016 = vmatpush1.xpose.msra.mxu0 0.0
  %2017 = vmatprep.subr.mxu0 0.0
  %2018 = vmatpush1.xpose.msra.mxu0 0.0
  %2019 = vmatprep.subr.mxu0 0.0
  %2020 = vmatpush1.xpose.msra.mxu0 0.0
  %2021 = vmatprep.subr.mxu0 0.0
  %2022 = vmatpush1.xpose.msra.mxu0 0.0
  %2023 = vmatprep.subr.mxu0 0.0
  %2024 = vmatpush1.xpose.msra.mxu0 0.0
  %2025 = vmatprep.subr.mxu0 0.0
  %2026 = vmatpush1.xpose.msra.mxu0 0.0
  %2027 = vmatprep.subr.mxu0 0.0
  %2028 = vmatpush1.xpose.msra.mxu0 0.0
  %2029 = vmatprep.subr.mxu0 0.0
  %2030 = vmatpush1.xpose.msra.mxu0 0.0
  %2031 = vmatprep.subr.mxu0 0.0
  %2032 = vmatpush1.xpose.msra.mxu0 0.0
  %2033 = vmatprep.subr.mxu0 0.0
  %2034 = vmatpush1.xpose.msra.mxu0 0.0
  %2035 = vmatprep.subr.mxu0 0.0
  %2036 = vmatpush1.xpose.msra.mxu0 0.0
  %2037 = vmatprep.subr.mxu0 0.0
  %2038 = vmatpush1.xpose.msra.mxu0 0.0
  %2039 = vmatprep.subr.mxu0 0.0
  %2040 = vmatpush1.xpose.msra.mxu0 0.0
  %2041 = vmatprep.subr.mxu0 0.0
  %2042 = vmatpush1.xpose.msra.mxu0 0.0
  %2043 = vmatprep.subr.mxu0 0.0
  %2044 = vmatpush1.xpose.msra.mxu0 0.0
  %2045 = vmatprep.subr.mxu0 0.0
  %2046 = vmatpush1.xpose.msra.mxu0 0.0
  %2047 = vmatprep.subr.mxu0 0.0
  %2048 = vmatpush1.xpose.msra.mxu0 0.0
  %2049 = vmatprep.subr.mxu0 0.0
  %2050 = vmatpush1.xpose.msra.mxu0 0.0
  %2051 = vmatprep.subr.mxu0 0.0
  %2052 = vmatpush1.xpose.msra.mxu0 0.0
  %2053 = vmatprep.subr.mxu0 0.0
  %2054 = vmatpush1.xpose.msra.mxu0 0.0
  %2055 = vmatprep.subr.mxu0 0.0
  %2056 = vmatpush1.xpose.msra.mxu0 0.0
  %2057 = vmatprep.subr.mxu0 0.0
  %2058 = vmatpush1.xpose.msra.mxu0 0.0
  %2059 = vmatprep.subr.mxu0 0.0
  %2060 = vmatpush1.xpose.msra.mxu0 0.0
  %2061 = vmatprep.mubr.f32.mxu0 0.0
  %2062 = vmatmul.mubr.f32.gmra.mrb[0].mxu0 %v1993
  %v2063 = vpop.f32.mrb[0].mxu0
  %v2064 = vadd.f32 0.0, %v2063
  %v2065 = vpop.f32.mrb[0].mxu0
  %2066 = vdwg.mxu0
  %v2067 = vsel %vm438, %v363, 0
  %v2069 = vsel %vm438, %v419, 0
  %2071 = vmatprep.subr.mxu0 0.0
  %2072 = vmatpush1.xpose.msra.mxu0 %v2069
  %2073 = vmatprep.subr.mxu0 0.0
  %2074 = vmatpush1.xpose.msra.mxu0 0.0
  %2075 = vmatprep.subr.mxu0 0.0
  %2076 = vmatpush1.xpose.msra.mxu0 0.0
  %2077 = vmatprep.subr.mxu0 0.0
  %2078 = vmatpush1.xpose.msra.mxu0 0.0
  %2079 = vmatprep.subr.mxu0 0.0
  %2080 = vmatpush1.xpose.msra.mxu0 0.0
  %2081 = vmatprep.subr.mxu0 0.0
  %2082 = vmatpush1.xpose.msra.mxu0 0.0
  %2083 = vmatprep.subr.mxu0 0.0
  %2084 = vmatpush1.xpose.msra.mxu0 0.0
  %2085 = vmatprep.subr.mxu0 0.0
  %2086 = vmatpush1.xpose.msra.mxu0 0.0
  %2087 = vmatprep.subr.mxu0 0.0
  %2088 = vmatpush1.xpose.msra.mxu0 0.0
  %2089 = vmatprep.subr.mxu0 0.0
  %2090 = vmatpush1.xpose.msra.mxu0 0.0
  %2091 = vmatprep.subr.mxu0 0.0
  %2092 = vmatpush1.xpose.msra.mxu0 0.0
  %2093 = vmatprep.subr.mxu0 0.0
  %2094 = vmatpush1.xpose.msra.mxu0 0.0
  %2095 = vmatprep.subr.mxu0 0.0
  %2096 = vmatpush1.xpose.msra.mxu0 0.0
  %2097 = vmatprep.subr.mxu0 0.0
  %2098 = vmatpush1.xpose.msra.mxu0 0.0
  %2099 = vmatprep.subr.mxu0 0.0
  %2100 = vmatpush1.xpose.msra.mxu0 0.0
  %2101 = vmatprep.subr.mxu0 0.0
  %2102 = vmatpush1.xpose.msra.mxu0 0.0
  %2103 = vmatprep.subr.mxu0 0.0
  %2104 = vmatpush1.xpose.msra.mxu0 0.0
  %2105 = vmatprep.subr.mxu0 0.0
  %2106 = vmatpush1.xpose.msra.mxu0 0.0
  %2107 = vmatprep.subr.mxu0 0.0
  %2108 = vmatpush1.xpose.msra.mxu0 0.0
  %2109 = vmatprep.subr.mxu0 0.0
  %2110 = vmatpush1.xpose.msra.mxu0 0.0
  %2111 = vmatprep.subr.mxu0 0.0
  %2112 = vmatpush1.xpose.msra.mxu0 0.0
  %2113 = vmatprep.subr.mxu0 0.0
  %2114 = vmatpush1.xpose.msra.mxu0 0.0
  %2115 = vmatprep.subr.mxu0 0.0
  %2116 = vmatpush1.xpose.msra.mxu0 0.0
  %2117 = vmatprep.subr.mxu0 0.0
  %2118 = vmatpush1.xpose.msra.mxu0 0.0
  %2119 = vmatprep.subr.mxu0 0.0
  %2120 = vmatpush1.xpose.msra.mxu0 0.0
  %2121 = vmatprep.subr.mxu0 0.0
  %2122 = vmatpush1.xpose.msra.mxu0 0.0
  %2123 = vmatprep.subr.mxu0 0.0
  %2124 = vmatpush1.xpose.msra.mxu0 0.0
  %2125 = vmatprep.subr.mxu0 0.0
  %2126 = vmatpush1.xpose.msra.mxu0 0.0
  %2127 = vmatprep.subr.mxu0 0.0
  %2128 = vmatpush1.xpose.msra.mxu0 0.0
  %2129 = vmatprep.subr.mxu0 0.0
  %2130 = vmatpush1.xpose.msra.mxu0 0.0
  %2131 = vmatprep.subr.mxu0 0.0
  %2132 = vmatpush1.xpose.msra.mxu0 0.0
  %2133 = vmatprep.subr.mxu0 0.0
  %2134 = vmatpush1.xpose.msra.mxu0 0.0
  %2135 = vmatprep.mubr.f32.mxu0 0.0
  %2136 = vmatmul.mubr.f32.gmra.mrb[0].mxu0 %v2067
  %v2137 = vpop.f32.mrb[0].mxu0
  %v2138 = vadd.f32 0.0, %v2137
  %v2139 = vpop.f32.mrb[0].mxu0
  %2140 = vdwg.mxu0
  %v2141 = vsel %vm438, %v365, 0
  %v2143 = vsel %vm438, %v421, 0
  %2145 = vmatprep.subr.mxu0 0.0
  %2146 = vmatpush1.xpose.msra.mxu0 %v2143
  %2147 = vmatprep.subr.mxu0 0.0
  %2148 = vmatpush1.xpose.msra.mxu0 0.0
  %2149 = vmatprep.subr.mxu0 0.0
  %2150 = vmatpush1.xpose.msra.mxu0 0.0
  %2151 = vmatprep.subr.mxu0 0.0
  %2152 = vmatpush1.xpose.msra.mxu0 0.0
  %2153 = vmatprep.subr.mxu0 0.0
  %2154 = vmatpush1.xpose.msra.mxu0 0.0
  %2155 = vmatprep.subr.mxu0 0.0
  %2156 = vmatpush1.xpose.msra.mxu0 0.0
  %2157 = vmatprep.subr.mxu0 0.0
  %2158 = vmatpush1.xpose.msra.mxu0 0.0
  %2159 = vmatprep.subr.mxu0 0.0
  %2160 = vmatpush1.xpose.msra.mxu0 0.0
  %2161 = vmatprep.subr.mxu0 0.0
  %2162 = vmatpush1.xpose.msra.mxu0 0.0
  %2163 = vmatprep.subr.mxu0 0.0
  %2164 = vmatpush1.xpose.msra.mxu0 0.0
  %2165 = vmatprep.subr.mxu0 0.0
  %2166 = vmatpush1.xpose.msra.mxu0 0.0
  %2167 = vmatprep.subr.mxu0 0.0
  %2168 = vmatpush1.xpose.msra.mxu0 0.0
  %2169 = vmatprep.subr.mxu0 0.0
  %2170 = vmatpush1.xpose.msra.mxu0 0.0
  %2171 = vmatprep.subr.mxu0 0.0
  %2172 = vmatpush1.xpose.msra.mxu0 0.0
  %2173 = vmatprep.subr.mxu0 0.0
  %2174 = vmatpush1.xpose.msra.mxu0 0.0
  %2175 = vmatprep.subr.mxu0 0.0
  %2176 = vmatpush1.xpose.msra.mxu0 0.0
  %2177 = vmatprep.subr.mxu0 0.0
  %2178 = vmatpush1.xpose.msra.mxu0 0.0
  %2179 = vmatprep.subr.mxu0 0.0
  %2180 = vmatpush1.xpose.msra.mxu0 0.0
  %2181 = vmatprep.subr.mxu0 0.0
  %2182 = vmatpush1.xpose.msra.mxu0 0.0
  %2183 = vmatprep.subr.mxu0 0.0
  %2184 = vmatpush1.xpose.msra.mxu0 0.0
  %2185 = vmatprep.subr.mxu0 0.0
  %2186 = vmatpush1.xpose.msra.mxu0 0.0
  %2187 = vmatprep.subr.mxu0 0.0
  %2188 = vmatpush1.xpose.msra.mxu0 0.0
  %2189 = vmatprep.subr.mxu0 0.0
  %2190 = vmatpush1.xpose.msra.mxu0 0.0
  %2191 = vmatprep.subr.mxu0 0.0
  %2192 = vmatpush1.xpose.msra.mxu0 0.0
  %2193 = vmatprep.subr.mxu0 0.0
  %2194 = vmatpush1.xpose.msra.mxu0 0.0
  %2195 = vmatprep.subr.mxu0 0.0
  %2196 = vmatpush1.xpose.msra.mxu0 0.0
  %2197 = vmatprep.subr.mxu0 0.0
  %2198 = vmatpush1.xpose.msra.mxu0 0.0
  %2199 = vmatprep.subr.mxu0 0.0
  %2200 = vmatpush1.xpose.msra.mxu0 0.0
  %2201 = vmatprep.subr.mxu0 0.0
  %2202 = vmatpush1.xpose.msra.mxu0 0.0
  %2203 = vmatprep.subr.mxu0 0.0
  %2204 = vmatpush1.xpose.msra.mxu0 0.0
  %2205 = vmatprep.subr.mxu0 0.0
  %2206 = vmatpush1.xpose.msra.mxu0 0.0
  %2207 = vmatprep.subr.mxu0 0.0
  %2208 = vmatpush1.xpose.msra.mxu0 0.0
  %2209 = vmatprep.mubr.f32.mxu0 0.0
  %2210 = vmatmul.mubr.f32.gmra.mrb[0].mxu0 %v2141
  %v2211 = vpop.f32.mrb[0].mxu0
  %v2212 = vadd.f32 0.0, %v2211
  %v2213 = vpop.f32.mrb[0].mxu0
  %2214 = vdwg.mxu0
  %v2215 = vsel %vm438, %v367, 0
  %v2217 = vsel %vm438, %v423, 0
  %2219 = vmatprep.subr.mxu0 0.0
  %2220 = vmatpush1.xpose.msra.mxu0 %v2217
  %2221 = vmatprep.subr.mxu0 0.0
  %2222 = vmatpush1.xpose.msra.mxu0 0.0
  %2223 = vmatprep.subr.mxu0 0.0
  %2224 = vmatpush1.xpose.msra.mxu0 0.0
  %2225 = vmatprep.subr.mxu0 0.0
  %2226 = vmatpush1.xpose.msra.mxu0 0.0
  %2227 = vmatprep.subr.mxu0 0.0
  %2228 = vmatpush1.xpose.msra.mxu0 0.0
  %2229 = vmatprep.subr.mxu0 0.0
  %2230 = vmatpush1.xpose.msra.mxu0 0.0
  %2231 = vmatprep.subr.mxu0 0.0
  %2232 = vmatpush1.xpose.msra.mxu0 0.0
  %2233 = vmatprep.subr.mxu0 0.0
  %2234 = vmatpush1.xpose.msra.mxu0 0.0
  %2235 = vmatprep.subr.mxu0 0.0
  %2236 = vmatpush1.xpose.msra.mxu0 0.0
  %2237 = vmatprep.subr.mxu0 0.0
  %2238 = vmatpush1.xpose.msra.mxu0 0.0
  %2239 = vmatprep.subr.mxu0 0.0
  %2240 = vmatpush1.xpose.msra.mxu0 0.0
  %2241 = vmatprep.subr.mxu0 0.0
  %2242 = vmatpush1.xpose.msra.mxu0 0.0
  %2243 = vmatprep.subr.mxu0 0.0
  %2244 = vmatpush1.xpose.msra.mxu0 0.0
  %2245 = vmatprep.subr.mxu0 0.0
  %2246 = vmatpush1.xpose.msra.mxu0 0.0
  %2247 = vmatprep.subr.mxu0 0.0
  %2248 = vmatpush1.xpose.msra.mxu0 0.0
  %2249 = vmatprep.subr.mxu0 0.0
  %2250 = vmatpush1.xpose.msra.mxu0 0.0
  %2251 = vmatprep.subr.mxu0 0.0
  %2252 = vmatpush1.xpose.msra.mxu0 0.0
  %2253 = vmatprep.subr.mxu0 0.0
  %2254 = vmatpush1.xpose.msra.mxu0 0.0
  %2255 = vmatprep.subr.mxu0 0.0
  %2256 = vmatpush1.xpose.msra.mxu0 0.0
  %2257 = vmatprep.subr.mxu0 0.0
  %2258 = vmatpush1.xpose.msra.mxu0 0.0
  %2259 = vmatprep.subr.mxu0 0.0
  %2260 = vmatpush1.xpose.msra.mxu0 0.0
  %2261 = vmatprep.subr.mxu0 0.0
  %2262 = vmatpush1.xpose.msra.mxu0 0.0
  %2263 = vmatprep.subr.mxu0 0.0
  %2264 = vmatpush1.xpose.msra.mxu0 0.0
  %2265 = vmatprep.subr.mxu0 0.0
  %2266 = vmatpush1.xpose.msra.mxu0 0.0
  %2267 = vmatprep.subr.mxu0 0.0
  %2268 = vmatpush1.xpose.msra.mxu0 0.0
  %2269 = vmatprep.subr.mxu0 0.0
  %2270 = vmatpush1.xpose.msra.mxu0 0.0
  %2271 = vmatprep.subr.mxu0 0.0
  %2272 = vmatpush1.xpose.msra.mxu0 0.0
  %2273 = vmatprep.subr.mxu0 0.0
  %2274 = vmatpush1.xpose.msra.mxu0 0.0
  %2275 = vmatprep.subr.mxu0 0.0
  %2276 = vmatpush1.xpose.msra.mxu0 0.0
  %2277 = vmatprep.subr.mxu0 0.0
  %2278 = vmatpush1.xpose.msra.mxu0 0.0
  %2279 = vmatprep.subr.mxu0 0.0
  %2280 = vmatpush1.xpose.msra.mxu0 0.0
  %2281 = vmatprep.subr.mxu0 0.0
  %2282 = vmatpush1.xpose.msra.mxu0 0.0
  %2283 = vmatprep.mubr.f32.mxu0 0.0
  %2284 = vmatmul.mubr.f32.gmra.mrb[0].mxu0 %v2215
  %v2285 = vpop.f32.mrb[0].mxu0
  %v2286 = vadd.f32 0.0, %v2285
  %v2287 = vpop.f32.mrb[0].mxu0
  %2288 = vdwg.mxu0
  %v2289 = vsel %vm438, %v369, 0
  %v2291 = vsel %vm438, %v425, 0
  %2293 = vmatprep.subr.mxu0 0.0
  %2294 = vmatpush1.xpose.msra.mxu0 %v2291
  %2295 = vmatprep.subr.mxu0 0.0
  %2296 = vmatpush1.xpose.msra.mxu0 0.0
  %2297 = vmatprep.subr.mxu0 0.0
  %2298 = vmatpush1.xpose.msra.mxu0 0.0
  %2299 = vmatprep.subr.mxu0 0.0
  %2300 = vmatpush1.xpose.msra.mxu0 0.0
  %2301 = vmatprep.subr.mxu0 0.0
  %2302 = vmatpush1.xpose.msra.mxu0 0.0
  %2303 = vmatprep.subr.mxu0 0.0
  %2304 = vmatpush1.xpose.msra.mxu0 0.0
  %2305 = vmatprep.subr.mxu0 0.0
  %2306 = vmatpush1.xpose.msra.mxu0 0.0
  %2307 = vmatprep.subr.mxu0 0.0
  %2308 = vmatpush1.xpose.msra.mxu0 0.0
  %2309 = vmatprep.subr.mxu0 0.0
  %2310 = vmatpush1.xpose.msra.mxu0 0.0
  %2311 = vmatprep.subr.mxu0 0.0
  %2312 = vmatpush1.xpose.msra.mxu0 0.0
  %2313 = vmatprep.subr.mxu0 0.0
  %2314 = vmatpush1.xpose.msra.mxu0 0.0
  %2315 = vmatprep.subr.mxu0 0.0
  %2316 = vmatpush1.xpose.msra.mxu0 0.0
  %2317 = vmatprep.subr.mxu0 0.0
  %2318 = vmatpush1.xpose.msra.mxu0 0.0
  %2319 = vmatprep.subr.mxu0 0.0
  %2320 = vmatpush1.xpose.msra.mxu0 0.0
  %2321 = vmatprep.subr.mxu0 0.0
  %2322 = vmatpush1.xpose.msra.mxu0 0.0
  %2323 = vmatprep.subr.mxu0 0.0
  %2324 = vmatpush1.xpose.msra.mxu0 0.0
  %2325 = vmatprep.subr.mxu0 0.0
  %2326 = vmatpush1.xpose.msra.mxu0 0.0
  %2327 = vmatprep.subr.mxu0 0.0
  %2328 = vmatpush1.xpose.msra.mxu0 0.0
  %2329 = vmatprep.subr.mxu0 0.0
  %2330 = vmatpush1.xpose.msra.mxu0 0.0
  %2331 = vmatprep.subr.mxu0 0.0
  %2332 = vmatpush1.xpose.msra.mxu0 0.0
  %2333 = vmatprep.subr.mxu0 0.0
  %2334 = vmatpush1.xpose.msra.mxu0 0.0
  %2335 = vmatprep.subr.mxu0 0.0
  %2336 = vmatpush1.xpose.msra.mxu0 0.0
  %2337 = vmatprep.subr.mxu0 0.0
  %2338 = vmatpush1.xpose.msra.mxu0 0.0
  %2339 = vmatprep.subr.mxu0 0.0
  %2340 = vmatpush1.xpose.msra.mxu0 0.0
  %2341 = vmatprep.subr.mxu0 0.0
  %2342 = vmatpush1.xpose.msra.mxu0 0.0
  %2343 = vmatprep.subr.mxu0 0.0
  %2344 = vmatpush1.xpose.msra.mxu0 0.0
  %2345 = vmatprep.subr.mxu0 0.0
  %2346 = vmatpush1.xpose.msra.mxu0 0.0
  %2347 = vmatprep.subr.mxu0 0.0
  %2348 = vmatpush1.xpose.msra.mxu0 0.0
  %2349 = vmatprep.subr.mxu0 0.0
  %2350 = vmatpush1.xpose.msra.mxu0 0.0
  %2351 = vmatprep.subr.mxu0 0.0
  %2352 = vmatpush1.xpose.msra.mxu0 0.0
  %2353 = vmatprep.subr.mxu0 0.0
  %2354 = vmatpush1.xpose.msra.mxu0 0.0
  %2355 = vmatprep.subr.mxu0 0.0
  %2356 = vmatpush1.xpose.msra.mxu0 0.0
  %2357 = vmatprep.mubr.f32.mxu0 0.0
  %2358 = vmatmul.mubr.f32.gmra.mrb[0].mxu0 %v2289
  %v2359 = vpop.f32.mrb[0].mxu0
  %v2360 = vadd.f32 0.0, %v2359
  %v2361 = vpop.f32.mrb[0].mxu0
  %2362 = vdwg.mxu0
  %v2363 = vsel %vm438, %v371, 0
  %v2365 = vsel %vm438, %v427, 0
  %2367 = vmatprep.subr.mxu0 0.0
  %2368 = vmatpush1.xpose.msra.mxu0 %v2365
  %2369 = vmatprep.subr.mxu0 0.0
  %2370 = vmatpush1.xpose.msra.mxu0 0.0
  %2371 = vmatprep.subr.mxu0 0.0
  %2372 = vmatpush1.xpose.msra.mxu0 0.0
  %2373 = vmatprep.subr.mxu0 0.0
  %2374 = vmatpush1.xpose.msra.mxu0 0.0
  %2375 = vmatprep.subr.mxu0 0.0
  %2376 = vmatpush1.xpose.msra.mxu0 0.0
  %2377 = vmatprep.subr.mxu0 0.0
  %2378 = vmatpush1.xpose.msra.mxu0 0.0
  %2379 = vmatprep.subr.mxu0 0.0
  %2380 = vmatpush1.xpose.msra.mxu0 0.0
  %2381 = vmatprep.subr.mxu0 0.0
  %2382 = vmatpush1.xpose.msra.mxu0 0.0
  %2383 = vmatprep.subr.mxu0 0.0
  %2384 = vmatpush1.xpose.msra.mxu0 0.0
  %2385 = vmatprep.subr.mxu0 0.0
  %2386 = vmatpush1.xpose.msra.mxu0 0.0
  %2387 = vmatprep.subr.mxu0 0.0
  %2388 = vmatpush1.xpose.msra.mxu0 0.0
  %2389 = vmatprep.subr.mxu0 0.0
  %2390 = vmatpush1.xpose.msra.mxu0 0.0
  %2391 = vmatprep.subr.mxu0 0.0
  %2392 = vmatpush1.xpose.msra.mxu0 0.0
  %2393 = vmatprep.subr.mxu0 0.0
  %2394 = vmatpush1.xpose.msra.mxu0 0.0
  %2395 = vmatprep.subr.mxu0 0.0
  %2396 = vmatpush1.xpose.msra.mxu0 0.0
  %2397 = vmatprep.subr.mxu0 0.0
  %2398 = vmatpush1.xpose.msra.mxu0 0.0
  %2399 = vmatprep.subr.mxu0 0.0
  %2400 = vmatpush1.xpose.msra.mxu0 0.0
  %2401 = vmatprep.subr.mxu0 0.0
  %2402 = vmatpush1.xpose.msra.mxu0 0.0
  %2403 = vmatprep.subr.mxu0 0.0
  %2404 = vmatpush1.xpose.msra.mxu0 0.0
  %2405 = vmatprep.subr.mxu0 0.0
  %2406 = vmatpush1.xpose.msra.mxu0 0.0
  %2407 = vmatprep.subr.mxu0 0.0
  %2408 = vmatpush1.xpose.msra.mxu0 0.0
  %2409 = vmatprep.subr.mxu0 0.0
  %2410 = vmatpush1.xpose.msra.mxu0 0.0
  %2411 = vmatprep.subr.mxu0 0.0
  %2412 = vmatpush1.xpose.msra.mxu0 0.0
  %2413 = vmatprep.subr.mxu0 0.0
  %2414 = vmatpush1.xpose.msra.mxu0 0.0
  %2415 = vmatprep.subr.mxu0 0.0
  %2416 = vmatpush1.xpose.msra.mxu0 0.0
  %2417 = vmatprep.subr.mxu0 0.0
  %2418 = vmatpush1.xpose.msra.mxu0 0.0
  %2419 = vmatprep.subr.mxu0 0.0
  %2420 = vmatpush1.xpose.msra.mxu0 0.0
  %2421 = vmatprep.subr.mxu0 0.0
  %2422 = vmatpush1.xpose.msra.mxu0 0.0
  %2423 = vmatprep.subr.mxu0 0.0
  %2424 = vmatpush1.xpose.msra.mxu0 0.0
  %2425 = vmatprep.subr.mxu0 0.0
  %2426 = vmatpush1.xpose.msra.mxu0 0.0
  %2427 = vmatprep.subr.mxu0 0.0
  %2428 = vmatpush1.xpose.msra.mxu0 0.0
  %2429 = vmatprep.subr.mxu0 0.0
  %2430 = vmatpush1.xpose.msra.mxu0 0.0
  %2431 = vmatprep.mubr.f32.mxu0 0.0
  %2432 = vmatmul.mubr.f32.gmra.mrb[0].mxu0 %v2363
  %v2433 = vpop.f32.mrb[0].mxu0
  %v2434 = vadd.f32 0.0, %v2433
  %v2435 = vpop.f32.mrb[0].mxu0
  %2436 = vdwg.mxu0
  %v2437 = vsel %vm438, %v373, 0
  %v2439 = vsel %vm438, %v429, 0
  %2441 = vmatprep.subr.mxu0 0.0
  %2442 = vmatpush1.xpose.msra.mxu0 %v2439
  %2443 = vmatprep.subr.mxu0 0.0
  %2444 = vmatpush1.xpose.msra.mxu0 0.0
  %2445 = vmatprep.subr.mxu0 0.0
  %2446 = vmatpush1.xpose.msra.mxu0 0.0
  %2447 = vmatprep.subr.mxu0 0.0
  %2448 = vmatpush1.xpose.msra.mxu0 0.0
  %2449 = vmatprep.subr.mxu0 0.0
  %2450 = vmatpush1.xpose.msra.mxu0 0.0
  %2451 = vmatprep.subr.mxu0 0.0
  %2452 = vmatpush1.xpose.msra.mxu0 0.0
  %2453 = vmatprep.subr.mxu0 0.0
  %2454 = vmatpush1.xpose.msra.mxu0 0.0
  %2455 = vmatprep.subr.mxu0 0.0
  %2456 = vmatpush1.xpose.msra.mxu0 0.0
  %2457 = vmatprep.subr.mxu0 0.0
  %2458 = vmatpush1.xpose.msra.mxu0 0.0
  %2459 = vmatprep.subr.mxu0 0.0
  %2460 = vmatpush1.xpose.msra.mxu0 0.0
  %2461 = vmatprep.subr.mxu0 0.0
  %2462 = vmatpush1.xpose.msra.mxu0 0.0
  %2463 = vmatprep.subr.mxu0 0.0
  %2464 = vmatpush1.xpose.msra.mxu0 0.0
  %2465 = vmatprep.subr.mxu0 0.0
  %2466 = vmatpush1.xpose.msra.mxu0 0.0
  %2467 = vmatprep.subr.mxu0 0.0
  %2468 = vmatpush1.xpose.msra.mxu0 0.0
  %2469 = vmatprep.subr.mxu0 0.0
  %2470 = vmatpush1.xpose.msra.mxu0 0.0
  %2471 = vmatprep.subr.mxu0 0.0
  %2472 = vmatpush1.xpose.msra.mxu0 0.0
  %2473 = vmatprep.subr.mxu0 0.0
  %2474 = vmatpush1.xpose.msra.mxu0 0.0
  %2475 = vmatprep.subr.mxu0 0.0
  %2476 = vmatpush1.xpose.msra.mxu0 0.0
  %2477 = vmatprep.subr.mxu0 0.0
  %2478 = vmatpush1.xpose.msra.mxu0 0.0
  %2479 = vmatprep.subr.mxu0 0.0
  %2480 = vmatpush1.xpose.msra.mxu0 0.0
  %2481 = vmatprep.subr.mxu0 0.0
  %2482 = vmatpush1.xpose.msra.mxu0 0.0
  %2483 = vmatprep.subr.mxu0 0.0
  %2484 = vmatpush1.xpose.msra.mxu0 0.0
  %2485 = vmatprep.subr.mxu0 0.0
  %2486 = vmatpush1.xpose.msra.mxu0 0.0
  %2487 = vmatprep.subr.mxu0 0.0
  %2488 = vmatpush1.xpose.msra.mxu0 0.0
  %2489 = vmatprep.subr.mxu0 0.0
  %2490 = vmatpush1.xpose.msra.mxu0 0.0
  %2491 = vmatprep.subr.mxu0 0.0
  %2492 = vmatpush1.xpose.msra.mxu0 0.0
  %2493 = vmatprep.subr.mxu0 0.0
  %2494 = vmatpush1.xpose.msra.mxu0 0.0
  %2495 = vmatprep.subr.mxu0 0.0
  %2496 = vmatpush1.xpose.msra.mxu0 0.0
  %2497 = vmatprep.subr.mxu0 0.0
  %2498 = vmatpush1.xpose.msra.mxu0 0.0
  %2499 = vmatprep.subr.mxu0 0.0
  %2500 = vmatpush1.xpose.msra.mxu0 0.0
  %2501 = vmatprep.subr.mxu0 0.0
  %2502 = vmatpush1.xpose.msra.mxu0 0.0
  %2503 = vmatprep.subr.mxu0 0.0
  %2504 = vmatpush1.xpose.msra.mxu0 0.0
  %2505 = vmatprep.mubr.f32.mxu0 0.0
  %2506 = vmatmul.mubr.f32.gmra.mrb[0].mxu0 %v2437
  %v2507 = vpop.f32.mrb[0].mxu0
  %v2508 = vadd.f32 0.0, %v2507
  %v2509 = vpop.f32.mrb[0].mxu0
  %2510 = vdwg.mxu0
  %v2511 = vsel %vm438, %v375, 0
  %v2513 = vsel %vm438, %v431, 0
  %2515 = vmatprep.subr.mxu0 0.0
  %2516 = vmatpush1.xpose.msra.mxu0 %v2513
  %2517 = vmatprep.subr.mxu0 0.0
  %2518 = vmatpush1.xpose.msra.mxu0 0.0
  %2519 = vmatprep.subr.mxu0 0.0
  %2520 = vmatpush1.xpose.msra.mxu0 0.0
  %2521 = vmatprep.subr.mxu0 0.0
  %2522 = vmatpush1.xpose.msra.mxu0 0.0
  %2523 = vmatprep.subr.mxu0 0.0
  %2524 = vmatpush1.xpose.msra.mxu0 0.0
  %2525 = vmatprep.subr.mxu0 0.0
  %2526 = vmatpush1.xpose.msra.mxu0 0.0
  %2527 = vmatprep.subr.mxu0 0.0
  %2528 = vmatpush1.xpose.msra.mxu0 0.0
  %2529 = vmatprep.subr.mxu0 0.0
  %2530 = vmatpush1.xpose.msra.mxu0 0.0
  %2531 = vmatprep.subr.mxu0 0.0
  %2532 = vmatpush1.xpose.msra.mxu0 0.0
  %2533 = vmatprep.subr.mxu0 0.0
  %2534 = vmatpush1.xpose.msra.mxu0 0.0
  %2535 = vmatprep.subr.mxu0 0.0
  %2536 = vmatpush1.xpose.msra.mxu0 0.0
  %2537 = vmatprep.subr.mxu0 0.0
  %2538 = vmatpush1.xpose.msra.mxu0 0.0
  %2539 = vmatprep.subr.mxu0 0.0
  %2540 = vmatpush1.xpose.msra.mxu0 0.0
  %2541 = vmatprep.subr.mxu0 0.0
  %2542 = vmatpush1.xpose.msra.mxu0 0.0
  %2543 = vmatprep.subr.mxu0 0.0
  %2544 = vmatpush1.xpose.msra.mxu0 0.0
  %2545 = vmatprep.subr.mxu0 0.0
  %2546 = vmatpush1.xpose.msra.mxu0 0.0
  %2547 = vmatprep.subr.mxu0 0.0
  %2548 = vmatpush1.xpose.msra.mxu0 0.0
  %2549 = vmatprep.subr.mxu0 0.0
  %2550 = vmatpush1.xpose.msra.mxu0 0.0
  %2551 = vmatprep.subr.mxu0 0.0
  %2552 = vmatpush1.xpose.msra.mxu0 0.0
  %2553 = vmatprep.subr.mxu0 0.0
  %2554 = vmatpush1.xpose.msra.mxu0 0.0
  %2555 = vmatprep.subr.mxu0 0.0
  %2556 = vmatpush1.xpose.msra.mxu0 0.0
  %2557 = vmatprep.subr.mxu0 0.0
  %2558 = vmatpush1.xpose.msra.mxu0 0.0
  %2559 = vmatprep.subr.mxu0 0.0
  %2560 = vmatpush1.xpose.msra.mxu0 0.0
  %2561 = vmatprep.subr.mxu0 0.0
  %2562 = vmatpush1.xpose.msra.mxu0 0.0
  %2563 = vmatprep.subr.mxu0 0.0
  %2564 = vmatpush1.xpose.msra.mxu0 0.0
  %2565 = vmatprep.subr.mxu0 0.0
  %2566 = vmatpush1.xpose.msra.mxu0 0.0
  %2567 = vmatprep.subr.mxu0 0.0
  %2568 = vmatpush1.xpose.msra.mxu0 0.0
  %2569 = vmatprep.subr.mxu0 0.0
  %2570 = vmatpush1.xpose.msra.mxu0 0.0
  %2571 = vmatprep.subr.mxu0 0.0
  %2572 = vmatpush1.xpose.msra.mxu0 0.0
  %2573 = vmatprep.subr.mxu0 0.0
  %2574 = vmatpush1.xpose.msra.mxu0 0.0
  %2575 = vmatprep.subr.mxu0 0.0
  %2576 = vmatpush1.xpose.msra.mxu0 0.0
  %2577 = vmatprep.subr.mxu0 0.0
  %2578 = vmatpush1.xpose.msra.mxu0 0.0
  %2579 = vmatprep.mubr.f32.mxu0 0.0
  %2580 = vmatmul.mubr.f32.gmra.mrb[0].mxu0 %v2511
  %v2581 = vpop.f32.mrb[0].mxu0
  %v2582 = vadd.f32 0.0, %v2581
  %v2583 = vpop.f32.mrb[0].mxu0
  %2584 = vdwg.mxu0
  %v2585 = vsel %vm438, %v377, 0
  %v2587 = vsel %vm438, %v433, 0
  %2589 = vmatprep.subr.mxu0 0.0
  %2590 = vmatpush1.xpose.msra.mxu0 %v2587
  %2591 = vmatprep.subr.mxu0 0.0
  %2592 = vmatpush1.xpose.msra.mxu0 0.0
  %2593 = vmatprep.subr.mxu0 0.0
  %2594 = vmatpush1.xpose.msra.mxu0 0.0
  %2595 = vmatprep.subr.mxu0 0.0
  %2596 = vmatpush1.xpose.msra.mxu0 0.0
  %2597 = vmatprep.subr.mxu0 0.0
  %2598 = vmatpush1.xpose.msra.mxu0 0.0
  %2599 = vmatprep.subr.mxu0 0.0
  %2600 = vmatpush1.xpose.msra.mxu0 0.0
  %2601 = vmatprep.subr.mxu0 0.0
  %2602 = vmatpush1.xpose.msra.mxu0 0.0
  %2603 = vmatprep.subr.mxu0 0.0
  %2604 = vmatpush1.xpose.msra.mxu0 0.0
  %2605 = vmatprep.subr.mxu0 0.0
  %2606 = vmatpush1.xpose.msra.mxu0 0.0
  %2607 = vmatprep.subr.mxu0 0.0
  %2608 = vmatpush1.xpose.msra.mxu0 0.0
  %2609 = vmatprep.subr.mxu0 0.0
  %2610 = vmatpush1.xpose.msra.mxu0 0.0
  %2611 = vmatprep.subr.mxu0 0.0
  %2612 = vmatpush1.xpose.msra.mxu0 0.0
  %2613 = vmatprep.subr.mxu0 0.0
  %2614 = vmatpush1.xpose.msra.mxu0 0.0
  %2615 = vmatprep.subr.mxu0 0.0
  %2616 = vmatpush1.xpose.msra.mxu0 0.0
  %2617 = vmatprep.subr.mxu0 0.0
  %2618 = vmatpush1.xpose.msra.mxu0 0.0
  %2619 = vmatprep.subr.mxu0 0.0
  %2620 = vmatpush1.xpose.msra.mxu0 0.0
  %2621 = vmatprep.subr.mxu0 0.0
  %2622 = vmatpush1.xpose.msra.mxu0 0.0
  %2623 = vmatprep.subr.mxu0 0.0
  %2624 = vmatpush1.xpose.msra.mxu0 0.0
  %2625 = vmatprep.subr.mxu0 0.0
  %2626 = vmatpush1.xpose.msra.mxu0 0.0
  %2627 = vmatprep.subr.mxu0 0.0
  %2628 = vmatpush1.xpose.msra.mxu0 0.0
  %2629 = vmatprep.subr.mxu0 0.0
  %2630 = vmatpush1.xpose.msra.mxu0 0.0
  %2631 = vmatprep.subr.mxu0 0.0
  %2632 = vmatpush1.xpose.msra.mxu0 0.0
  %2633 = vmatprep.subr.mxu0 0.0
  %2634 = vmatpush1.xpose.msra.mxu0 0.0
  %2635 = vmatprep.subr.mxu0 0.0
  %2636 = vmatpush1.xpose.msra.mxu0 0.0
  %2637 = vmatprep.subr.mxu0 0.0
  %2638 = vmatpush1.xpose.msra.mxu0 0.0
  %2639 = vmatprep.subr.mxu0 0.0
  %2640 = vmatpush1.xpose.msra.mxu0 0.0
  %2641 = vmatprep.subr.mxu0 0.0
  %2642 = vmatpush1.xpose.msra.mxu0 0.0
  %2643 = vmatprep.subr.mxu0 0.0
  %2644 = vmatpush1.xpose.msra.mxu0 0.0
  %2645 = vmatprep.subr.mxu0 0.0
  %2646 = vmatpush1.xpose.msra.mxu0 0.0
  %2647 = vmatprep.subr.mxu0 0.0
  %2648 = vmatpush1.xpose.msra.mxu0 0.0
  %2649 = vmatprep.subr.mxu0 0.0
  %2650 = vmatpush1.xpose.msra.mxu0 0.0
  %2651 = vmatprep.subr.mxu0 0.0
  %2652 = vmatpush1.xpose.msra.mxu0 0.0
  %2653 = vmatprep.mubr.f32.mxu0 0.0
  %2654 = vmatmul.mubr.f32.gmra.mrb[0].mxu0 %v2585
  %v2655 = vpop.f32.mrb[0].mxu0
  %v2656 = vadd.f32 0.0, %v2655
  %v2657 = vpop.f32.mrb[0].mxu0
  %2658 = vdwg.mxu0
  %v2659 = vsel %vm438, %v379, 0
  %v2661 = vsel %vm438, %v435, 0
  %2663 = vmatprep.subr.mxu0 0.0
  %2664 = vmatpush1.xpose.msra.mxu0 %v2661
  %2665 = vmatprep.subr.mxu0 0.0
  %2666 = vmatpush1.xpose.msra.mxu0 0.0
  %2667 = vmatprep.subr.mxu0 0.0
  %2668 = vmatpush1.xpose.msra.mxu0 0.0
  %2669 = vmatprep.subr.mxu0 0.0
  %2670 = vmatpush1.xpose.msra.mxu0 0.0
  %2671 = vmatprep.subr.mxu0 0.0
  %2672 = vmatpush1.xpose.msra.mxu0 0.0
  %2673 = vmatprep.subr.mxu0 0.0
  %2674 = vmatpush1.xpose.msra.mxu0 0.0
  %2675 = vmatprep.subr.mxu0 0.0
  %2676 = vmatpush1.xpose.msra.mxu0 0.0
  %2677 = vmatprep.subr.mxu0 0.0
  %2678 = vmatpush1.xpose.msra.mxu0 0.0
  %2679 = vmatprep.subr.mxu0 0.0
  %2680 = vmatpush1.xpose.msra.mxu0 0.0
  %2681 = vmatprep.subr.mxu0 0.0
  %2682 = vmatpush1.xpose.msra.mxu0 0.0
  %2683 = vmatprep.subr.mxu0 0.0
  %2684 = vmatpush1.xpose.msra.mxu0 0.0
  %2685 = vmatprep.subr.mxu0 0.0
  %2686 = vmatpush1.xpose.msra.mxu0 0.0
  %2687 = vmatprep.subr.mxu0 0.0
  %2688 = vmatpush1.xpose.msra.mxu0 0.0
  %2689 = vmatprep.subr.mxu0 0.0
  %2690 = vmatpush1.xpose.msra.mxu0 0.0
  %2691 = vmatprep.subr.mxu0 0.0
  %2692 = vmatpush1.xpose.msra.mxu0 0.0
  %2693 = vmatprep.subr.mxu0 0.0
  %2694 = vmatpush1.xpose.msra.mxu0 0.0
  %2695 = vmatprep.subr.mxu0 0.0
  %2696 = vmatpush1.xpose.msra.mxu0 0.0
  %2697 = vmatprep.subr.mxu0 0.0
  %2698 = vmatpush1.xpose.msra.mxu0 0.0
  %2699 = vmatprep.subr.mxu0 0.0
  %2700 = vmatpush1.xpose.msra.mxu0 0.0
  %2701 = vmatprep.subr.mxu0 0.0
  %2702 = vmatpush1.xpose.msra.mxu0 0.0
  %2703 = vmatprep.subr.mxu0 0.0
  %2704 = vmatpush1.xpose.msra.mxu0 0.0
  %2705 = vmatprep.subr.mxu0 0.0
  %2706 = vmatpush1.xpose.msra.mxu0 0.0
  %2707 = vmatprep.subr.mxu0 0.0
  %2708 = vmatpush1.xpose.msra.mxu0 0.0
  %2709 = vmatprep.subr.mxu0 0.0
  %2710 = vmatpush1.xpose.msra.mxu0 0.0
  %2711 = vmatprep.subr.mxu0 0.0
  %2712 = vmatpush1.xpose.msra.mxu0 0.0
  %2713 = vmatprep.subr.mxu0 0.0
  %2714 = vmatpush1.xpose.msra.mxu0 0.0
  %2715 = vmatprep.subr.mxu0 0.0
  %2716 = vmatpush1.xpose.msra.mxu0 0.0
  %2717 = vmatprep.subr.mxu0 0.0
  %2718 = vmatpush1.xpose.msra.mxu0 0.0
  %2719 = vmatprep.subr.mxu0 0.0
  %2720 = vmatpush1.xpose.msra.mxu0 0.0
  %2721 = vmatprep.subr.mxu0 0.0
  %2722 = vmatpush1.xpose.msra.mxu0 0.0
  %2723 = vmatprep.subr.mxu0 0.0
  %2724 = vmatpush1.xpose.msra.mxu0 0.0
  %2725 = vmatprep.subr.mxu0 0.0
  %2726 = vmatpush1.xpose.msra.mxu0 0.0
  %2727 = vmatprep.mubr.f32.mxu0 0.0
  %2728 = vmatmul.mubr.f32.gmra.mrb[0].mxu0 %v2659
  %v2729 = vpop.f32.mrb[0].mxu0
  %v2730 = vadd.f32 0.0, %v2729
  %v2731 = vpop.f32.mrb[0].mxu0
  %2732 = vdwg.mxu0
  %v2733 = vsel %vm438, %v381, 0
  %v2735 = vsel %vm438, %v437, 0
  %2737 = vmatprep.subr.mxu0 0.0
  %2738 = vmatpush1.xpose.msra.mxu0 %v2735
  %2739 = vmatprep.subr.mxu0 0.0
  %2740 = vmatpush1.xpose.msra.mxu0 0.0
  %2741 = vmatprep.subr.mxu0 0.0
  %2742 = vmatpush1.xpose.msra.mxu0 0.0
  %2743 = vmatprep.subr.mxu0 0.0
  %2744 = vmatpush1.xpose.msra.mxu0 0.0
  %2745 = vmatprep.subr.mxu0 0.0
  %2746 = vmatpush1.xpose.msra.mxu0 0.0
  %2747 = vmatprep.subr.mxu0 0.0
  %2748 = vmatpush1.xpose.msra.mxu0 0.0
  %2749 = vmatprep.subr.mxu0 0.0
  %2750 = vmatpush1.xpose.msra.mxu0 0.0
  %2751 = vmatprep.subr.mxu0 0.0
  %2752 = vmatpush1.xpose.msra.mxu0 0.0
  %2753 = vmatprep.subr.mxu0 0.0
  %2754 = vmatpush1.xpose.msra.mxu0 0.0
  %2755 = vmatprep.subr.mxu0 0.0
  %2756 = vmatpush1.xpose.msra.mxu0 0.0
  %2757 = vmatprep.subr.mxu0 0.0
  %2758 = vmatpush1.xpose.msra.mxu0 0.0
  %2759 = vmatprep.subr.mxu0 0.0
  %2760 = vmatpush1.xpose.msra.mxu0 0.0
  %2761 = vmatprep.subr.mxu0 0.0
  %2762 = vmatpush1.xpose.msra.mxu0 0.0
  %2763 = vmatprep.subr.mxu0 0.0
  %2764 = vmatpush1.xpose.msra.mxu0 0.0
  %2765 = vmatprep.subr.mxu0 0.0
  %2766 = vmatpush1.xpose.msra.mxu0 0.0
  %2767 = vmatprep.subr.mxu0 0.0
  %2768 = vmatpush1.xpose.msra.mxu0 0.0
  %2769 = vmatprep.subr.mxu0 0.0
  %2770 = vmatpush1.xpose.msra.mxu0 0.0
  %2771 = vmatprep.subr.mxu0 0.0
  %2772 = vmatpush1.xpose.msra.mxu0 0.0
  %2773 = vmatprep.subr.mxu0 0.0
  %2774 = vmatpush1.xpose.msra.mxu0 0.0
  %2775 = vmatprep.subr.mxu0 0.0
  %2776 = vmatpush1.xpose.msra.mxu0 0.0
  %2777 = vmatprep.subr.mxu0 0.0
  %2778 = vmatpush1.xpose.msra.mxu0 0.0
  %2779 = vmatprep.subr.mxu0 0.0
  %2780 = vmatpush1.xpose.msra.mxu0 0.0
  %2781 = vmatprep.subr.mxu0 0.0
  %2782 = vmatpush1.xpose.msra.mxu0 0.0
  %2783 = vmatprep.subr.mxu0 0.0
  %2784 = vmatpush1.xpose.msra.mxu0 0.0
  %2785 = vmatprep.subr.mxu0 0.0
  %2786 = vmatpush1.xpose.msra.mxu0 0.0
  %2787 = vmatprep.subr.mxu0 0.0
  %2788 = vmatpush1.xpose.msra.mxu0 0.0
  %2789 = vmatprep.subr.mxu0 0.0
  %2790 = vmatpush1.xpose.msra.mxu0 0.0
  %2791 = vmatprep.subr.mxu0 0.0
  %2792 = vmatpush1.xpose.msra.mxu0 0.0
  %2793 = vmatprep.subr.mxu0 0.0
  %2794 = vmatpush1.xpose.msra.mxu0 0.0
  %2795 = vmatprep.subr.mxu0 0.0
  %2796 = vmatpush1.xpose.msra.mxu0 0.0
  %2797 = vmatprep.subr.mxu0 0.0
  %2798 = vmatpush1.xpose.msra.mxu0 0.0
  %2799 = vmatprep.subr.mxu0 0.0
  %2800 = vmatpush1.xpose.msra.mxu0 0.0
  %2801 = vmatprep.mubr.f32.mxu0 0.0
  %2802 = vmatmul.mubr.f32.gmra.mrb[0].mxu0 %v2733
  %v2803 = vpop.f32.mrb[0].mxu0
  %v2804 = vadd.f32 0.0, %v2803
  %v2805 = vpop.f32.mrb[0].mxu0
  %2806 = vdwg.mxu0
  %v2807 = vsel %vm438, %v510, -inf
  %2808 = vmax.xlane.f32.xlu0 %v2807
  %v2809 = vpop.xlane.xlu0 %2808
  %v2810 = vsel %vm438, %v584, -inf
  %2811 = vmax.xlane.f32.xlu0 %v2810
  %v2812 = vpop.xlane.xlu0 %2811
  %v2813 = vsel %vm438, %v658, -inf
  %2814 = vmax.xlane.f32.xlu0 %v2813
  %v2815 = vpop.xlane.xlu0 %2814
  %v2816 = vsel %vm438, %v732, -inf
  %2817 = vmax.xlane.f32.xlu0 %v2816
  %v2818 = vpop.xlane.xlu0 %2817
  %v2819 = vsel %vm438, %v806, -inf
  %2820 = vmax.xlane.f32.xlu0 %v2819
  %v2821 = vpop.xlane.xlu0 %2820
  %v2822 = vsel %vm438, %v880, -inf
  %2823 = vmax.xlane.f32.xlu0 %v2822
  %v2824 = vpop.xlane.xlu0 %2823
  %v2825 = vsel %vm438, %v954, -inf
  %2826 = vmax.xlane.f32.xlu0 %v2825
  %v2827 = vpop.xlane.xlu0 %2826
  %v2828 = vsel %vm438, %v1028, -inf
  %2829 = vmax.xlane.f32.xlu0 %v2828
  %v2830 = vpop.xlane.xlu0 %2829
  %v2831 = vsel %vm438, %v1102, -inf
  %2832 = vmax.xlane.f32.xlu0 %v2831
  %v2833 = vpop.xlane.xlu0 %2832
  %v2834 = vsel %vm438, %v1176, -inf
  %2835 = vmax.xlane.f32.xlu0 %v2834
  %v2836 = vpop.xlane.xlu0 %2835
  %v2837 = vsel %vm438, %v1250, -inf
  %2838 = vmax.xlane.f32.xlu0 %v2837
  %v2839 = vpop.xlane.xlu0 %2838
  %v2840 = vsel %vm438, %v1324, -inf
  %2841 = vmax.xlane.f32.xlu0 %v2840
  %v2842 = vpop.xlane.xlu0 %2841
  %v2843 = vsel %vm438, %v1398, -inf
  %2844 = vmax.xlane.f32.xlu0 %v2843
  %v2845 = vpop.xlane.xlu0 %2844
  %v2846 = vsel %vm438, %v1472, -inf
  %2847 = vmax.xlane.f32.xlu0 %v2846
  %v2848 = vpop.xlane.xlu0 %2847
  %v2849 = vsel %vm438, %v1546, -inf
  %2850 = vmax.xlane.f32.xlu0 %v2849
  %v2851 = vpop.xlane.xlu0 %2850
  %v2852 = vsel %vm438, %v1620, -inf
  %2853 = vmax.xlane.f32.xlu0 %v2852
  %v2854 = vpop.xlane.xlu0 %2853
  %v2855 = vsel %vm438, %v1694, -inf
  %2856 = vmax.xlane.f32.xlu0 %v2855
  %v2857 = vpop.xlane.xlu0 %2856
  %v2858 = vsel %vm438, %v1768, -inf
  %2859 = vmax.xlane.f32.xlu0 %v2858
  %v2860 = vpop.xlane.xlu0 %2859
  %v2861 = vsel %vm438, %v1842, -inf
  %2862 = vmax.xlane.f32.xlu0 %v2861
  %v2863 = vpop.xlane.xlu0 %2862
  %v2864 = vsel %vm438, %v1916, -inf
  %2865 = vmax.xlane.f32.xlu0 %v2864
  %v2866 = vpop.xlane.xlu0 %2865
  %v2867 = vsel %vm438, %v1990, -inf
  %2868 = vmax.xlane.f32.xlu0 %v2867
  %v2869 = vpop.xlane.xlu0 %2868
  %v2870 = vsel %vm438, %v2064, -inf
  %2871 = vmax.xlane.f32.xlu0 %v2870
  %v2872 = vpop.xlane.xlu0 %2871
  %v2873 = vsel %vm438, %v2138, -inf
  %2874 = vmax.xlane.f32.xlu0 %v2873
  %v2875 = vpop.xlane.xlu0 %2874
  %v2876 = vsel %vm438, %v2212, -inf
  %2877 = vmax.xlane.f32.xlu0 %v2876
  %v2878 = vpop.xlane.xlu0 %2877
  %v2879 = vsel %vm438, %v2286, -inf
  %2880 = vmax.xlane.f32.xlu0 %v2879
  %v2881 = vpop.xlane.xlu0 %2880
  %v2882 = vsel %vm438, %v2360, -inf
  %2883 = vmax.xlane.f32.xlu0 %v2882
  %v2884 = vpop.xlane.xlu0 %2883
  %v2885 = vsel %vm438, %v2434, -inf
  %2886 = vmax.xlane.f32.xlu0 %v2885
  %v2887 = vpop.xlane.xlu0 %2886
  %v2888 = vsel %vm438, %v2508, -inf
  %2889 = vmax.xlane.f32.xlu0 %v2888
  %v2890 = vpop.xlane.xlu0 %2889
  %v2891 = vsel %vm438, %v2582, -inf
  %2892 = vmax.xlane.f32.xlu0 %v2891
  %v2893 = vpop.xlane.xlu0 %2892
  %v2894 = vsel %vm438, %v2656, -inf
  %2895 = vmax.xlane.f32.xlu0 %v2894
  %v2896 = vpop.xlane.xlu0 %2895
  %v2897 = vsel %vm438, %v2730, -inf
  %2898 = vmax.xlane.f32.xlu0 %v2897
  %v2899 = vpop.xlane.xlu0 %2898
  %v2900 = vsel %vm438, %v2804, -inf
  %2901 = vmax.xlane.f32.xlu0 %v2900
  %v2902 = vpop.xlane.xlu0 %2901
  %v2903 = vsub.f32 %v510, %v2809
  %v2904 = vsub.f32 %v584, %v2812
  %v2905 = vsub.f32 %v658, %v2815
  %v2906 = vsub.f32 %v732, %v2818
  %v2907 = vsub.f32 %v806, %v2821
  %v2908 = vsub.f32 %v880, %v2824
  %v2909 = vsub.f32 %v954, %v2827
  %v2910 = vsub.f32 %v1028, %v2830
  %v2911 = vsub.f32 %v1102, %v2833
  %v2912 = vsub.f32 %v1176, %v2836
  %v2913 = vsub.f32 %v1250, %v2839
  %v2914 = vsub.f32 %v1324, %v2842
  %v2915 = vsub.f32 %v1398, %v2845
  %v2916 = vsub.f32 %v1472, %v2848
  %v2917 = vsub.f32 %v1546, %v2851
  %v2918 = vsub.f32 %v1620, %v2854
  %v2919 = vsub.f32 %v1694, %v2857
  %v2920 = vsub.f32 %v1768, %v2860
  %v2921 = vsub.f32 %v1842, %v2863
  %v2922 = vsub.f32 %v1916, %v2866
  %v2923 = vsub.f32 %v1990, %v2869
  %v2924 = vsub.f32 %v2064, %v2872
  %v2925 = vsub.f32 %v2138, %v2875
  %v2926 = vsub.f32 %v2212, %v2878
  %v2927 = vsub.f32 %v2286, %v2881
  %v2928 = vsub.f32 %v2360, %v2884
  %v2929 = vsub.f32 %v2434, %v2887
  %v2930 = vsub.f32 %v2508, %v2890
  %v2931 = vsub.f32 %v2582, %v2893
  %v2932 = vsub.f32 %v2656, %v2896
  %v2933 = vsub.f32 %v2730, %v2899
  %v2934 = vsub.f32 %v2804, %v2902
  %v2935 = vmul.f32 %v2903, 1.442695
  %v2936 = vpow.pop %v2935
  %v2937 = vmul.f32 %v2904, 1.442695
  %v2938 = vpow.pop %v2937
  %v2939 = vmul.f32 %v2905, 1.442695
  %v2940 = vpow.pop %v2939
  %v2941 = vmul.f32 %v2906, 1.442695
  %v2942 = vpow.pop %v2941
  %v2943 = vmul.f32 %v2907, 1.442695
  %v2944 = vpow.pop %v2943
  %v2945 = vmul.f32 %v2908, 1.442695
  %v2946 = vpow.pop %v2945
  %v2947 = vmul.f32 %v2909, 1.442695
  %v2948 = vpow.pop %v2947
  %v2949 = vmul.f32 %v2910, 1.442695
  %v2950 = vpow.pop %v2949
  %v2951 = vmul.f32 %v2911, 1.442695
  %v2952 = vpow.pop %v2951
  %v2953 = vmul.f32 %v2912, 1.442695
  %v2954 = vpow.pop %v2953
  %v2955 = vmul.f32 %v2913, 1.442695
  %v2956 = vpow.pop %v2955
  %v2957 = vmul.f32 %v2914, 1.442695
  %v2958 = vpow.pop %v2957
  %v2959 = vmul.f32 %v2915, 1.442695
  %v2960 = vpow.pop %v2959
  %v2961 = vmul.f32 %v2916, 1.442695
  %v2962 = vpow.pop %v2961
  %v2963 = vmul.f32 %v2917, 1.442695
  %v2964 = vpow.pop %v2963
  %v2965 = vmul.f32 %v2918, 1.442695
  %v2966 = vpow.pop %v2965
  %v2967 = vmul.f32 %v2919, 1.442695
  %v2968 = vpow.pop %v2967
  %v2969 = vmul.f32 %v2920, 1.442695
  %v2970 = vpow.pop %v2969
  %v2971 = vmul.f32 %v2921, 1.442695
  %v2972 = vpow.pop %v2971
  %v2973 = vmul.f32 %v2922, 1.442695
  %v2974 = vpow.pop %v2973
  %v2975 = vmul.f32 %v2923, 1.442695
  %v2976 = vpow.pop %v2975
  %v2977 = vmul.f32 %v2924, 1.442695
  %v2978 = vpow.pop %v2977
  %v2979 = vmul.f32 %v2925, 1.442695
  %v2980 = vpow.pop %v2979
  %v2981 = vmul.f32 %v2926, 1.442695
  %v2982 = vpow.pop %v2981
  %v2983 = vmul.f32 %v2927, 1.442695
  %v2984 = vpow.pop %v2983
  %v2985 = vmul.f32 %v2928, 1.442695
  %v2986 = vpow.pop %v2985
  %v2987 = vmul.f32 %v2929, 1.442695
  %v2988 = vpow.pop %v2987
  %v2989 = vmul.f32 %v2930, 1.442695
  %v2990 = vpow.pop %v2989
  %v2991 = vmul.f32 %v2931, 1.442695
  %v2992 = vpow.pop %v2991
  %v2993 = vmul.f32 %v2932, 1.442695
  %v2994 = vpow.pop %v2993
  %v2995 = vmul.f32 %v2933, 1.442695
  %v2996 = vpow.pop %v2995
  %v2997 = vmul.f32 %v2934, 1.442695
  %v2998 = vpow.pop %v2997
  %v2999 = vsel %vm438, %v2936, 0.0
  %3000 = vadd.xlane.f32.xlu0 %v2999
  %v3001 = vpop.xlane.xlu0 %3000
  %v3002 = vsel %vm438, %v2938, 0.0
  %3003 = vadd.xlane.f32.xlu0 %v3002
  %v3004 = vpop.xlane.xlu0 %3003
  %v3005 = vsel %vm438, %v2940, 0.0
  %3006 = vadd.xlane.f32.xlu0 %v3005
  %v3007 = vpop.xlane.xlu0 %3006
  %v3008 = vsel %vm438, %v2942, 0.0
  %3009 = vadd.xlane.f32.xlu0 %v3008
  %v3010 = vpop.xlane.xlu0 %3009
  %v3011 = vsel %vm438, %v2944, 0.0
  %3012 = vadd.xlane.f32.xlu0 %v3011
  %v3013 = vpop.xlane.xlu0 %3012
  %v3014 = vsel %vm438, %v2946, 0.0
  %3015 = vadd.xlane.f32.xlu0 %v3014
  %v3016 = vpop.xlane.xlu0 %3015
  %v3017 = vsel %vm438, %v2948, 0.0
  %3018 = vadd.xlane.f32.xlu0 %v3017
  %v3019 = vpop.xlane.xlu0 %3018
  %v3020 = vsel %vm438, %v2950, 0.0
  %3021 = vadd.xlane.f32.xlu0 %v3020
  %v3022 = vpop.xlane.xlu0 %3021
  %v3023 = vsel %vm438, %v2952, 0.0
  %3024 = vadd.xlane.f32.xlu0 %v3023
  %v3025 = vpop.xlane.xlu0 %3024
  %v3026 = vsel %vm438, %v2954, 0.0
  %3027 = vadd.xlane.f32.xlu0 %v3026
  %v3028 = vpop.xlane.xlu0 %3027
  %v3029 = vsel %vm438, %v2956, 0.0
  %3030 = vadd.xlane.f32.xlu0 %v3029
  %v3031 = vpop.xlane.xlu0 %3030
  %v3032 = vsel %vm438, %v2958, 0.0
  %3033 = vadd.xlane.f32.xlu0 %v3032
  %v3034 = vpop.xlane.xlu0 %3033
  %v3035 = vsel %vm438, %v2960, 0.0
  %3036 = vadd.xlane.f32.xlu0 %v3035
  %v3037 = vpop.xlane.xlu0 %3036
  %v3038 = vsel %vm438, %v2962, 0.0
  %3039 = vadd.xlane.f32.xlu0 %v3038
  %v3040 = vpop.xlane.xlu0 %3039
  %v3041 = vsel %vm438, %v2964, 0.0
  %3042 = vadd.xlane.f32.xlu0 %v3041
  %v3043 = vpop.xlane.xlu0 %3042
  %v3044 = vsel %vm438, %v2966, 0.0
  %3045 = vadd.xlane.f32.xlu0 %v3044
  %v3046 = vpop.xlane.xlu0 %3045
  %v3047 = vsel %vm438, %v2968, 0.0
  %3048 = vadd.xlane.f32.xlu0 %v3047
  %v3049 = vpop.xlane.xlu0 %3048
  %v3050 = vsel %vm438, %v2970, 0.0
  %3051 = vadd.xlane.f32.xlu0 %v3050
  %v3052 = vpop.xlane.xlu0 %3051
  %v3053 = vsel %vm438, %v2972, 0.0
  %3054 = vadd.xlane.f32.xlu0 %v3053
  %v3055 = vpop.xlane.xlu0 %3054
  %v3056 = vsel %vm438, %v2974, 0.0
  %3057 = vadd.xlane.f32.xlu0 %v3056
  %v3058 = vpop.xlane.xlu0 %3057
  %v3059 = vsel %vm438, %v2976, 0.0
  %3060 = vadd.xlane.f32.xlu0 %v3059
  %v3061 = vpop.xlane.xlu0 %3060
  %v3062 = vsel %vm438, %v2978, 0.0
  %3063 = vadd.xlane.f32.xlu0 %v3062
  %v3064 = vpop.xlane.xlu0 %3063
  %v3065 = vsel %vm438, %v2980, 0.0
  %3066 = vadd.xlane.f32.xlu0 %v3065
  %v3067 = vpop.xlane.xlu0 %3066
  %v3068 = vsel %vm438, %v2982, 0.0
  %3069 = vadd.xlane.f32.xlu0 %v3068
  %v3070 = vpop.xlane.xlu0 %3069
  %v3071 = vsel %vm438, %v2984, 0.0
  %3072 = vadd.xlane.f32.xlu0 %v3071
  %v3073 = vpop.xlane.xlu0 %3072
  %v3074 = vsel %vm438, %v2986, 0.0
  %3075 = vadd.xlane.f32.xlu0 %v3074
  %v3076 = vpop.xlane.xlu0 %3075
  %v3077 = vsel %vm438, %v2988, 0.0
  %3078 = vadd.xlane.f32.xlu0 %v3077
  %v3079 = vpop.xlane.xlu0 %3078
  %v3080 = vsel %vm438, %v2990, 0.0
  %3081 = vadd.xlane.f32.xlu0 %v3080
  %v3082 = vpop.xlane.xlu0 %3081
  %v3083 = vsel %vm438, %v2992, 0.0
  %3084 = vadd.xlane.f32.xlu0 %v3083
  %v3085 = vpop.xlane.xlu0 %3084
  %v3086 = vsel %vm438, %v2994, 0.0
  %3087 = vadd.xlane.f32.xlu0 %v3086
  %v3088 = vpop.xlane.xlu0 %3087
  %v3089 = vsel %vm438, %v2996, 0.0
  %3090 = vadd.xlane.f32.xlu0 %v3089
  %v3091 = vpop.xlane.xlu0 %3090
  %v3092 = vsel %vm438, %v2998, 0.0
  %3093 = vadd.xlane.f32.xlu0 %v3092
  %v3094 = vpop.xlane.xlu0 %3093
  %v3095 = vrcp.pop %v3001
  %v3096 = vrcp.pop %v3004
  %v3097 = vrcp.pop %v3007
  %v3098 = vrcp.pop %v3010
  %v3099 = vrcp.pop %v3013
  %v3100 = vrcp.pop %v3016
  %v3101 = vrcp.pop %v3019
  %v3102 = vrcp.pop %v3022
  %v3103 = vrcp.pop %v3025
  %v3104 = vrcp.pop %v3028
  %v3105 = vrcp.pop %v3031
  %v3106 = vrcp.pop %v3034
  %v3107 = vrcp.pop %v3037
  %v3108 = vrcp.pop %v3040
  %v3109 = vrcp.pop %v3043
  %v3110 = vrcp.pop %v3046
  %v3111 = vrcp.pop %v3049
  %v3112 = vrcp.pop %v3052
  %v3113 = vrcp.pop %v3055
  %v3114 = vrcp.pop %v3058
  %v3115 = vrcp.pop %v3061
  %v3116 = vrcp.pop %v3064
  %v3117 = vrcp.pop %v3067
  %v3118 = vrcp.pop %v3070
  %v3119 = vrcp.pop %v3073
  %v3120 = vrcp.pop %v3076
  %v3121 = vrcp.pop %v3079
  %v3122 = vrcp.pop %v3082
  %v3123 = vrcp.pop %v3085
  %v3124 = vrcp.pop %v3088
  %v3125 = vrcp.pop %v3091
  %v3126 = vrcp.pop %v3094
  %v3127 = vmul.f32 %v2936, %v3095
  %v3128 = vmul.f32 %v2938, %v3096
  %v3129 = vmul.f32 %v2940, %v3097
  %v3130 = vmul.f32 %v2942, %v3098
  %v3131 = vmul.f32 %v2944, %v3099
  %v3132 = vmul.f32 %v2946, %v3100
  %v3133 = vmul.f32 %v2948, %v3101
  %v3134 = vmul.f32 %v2950, %v3102
  %v3135 = vmul.f32 %v2952, %v3103
  %v3136 = vmul.f32 %v2954, %v3104
  %v3137 = vmul.f32 %v2956, %v3105
  %v3138 = vmul.f32 %v2958, %v3106
  %v3139 = vmul.f32 %v2960, %v3107
  %v3140 = vmul.f32 %v2962, %v3108
  %v3141 = vmul.f32 %v2964, %v3109
  %v3142 = vmul.f32 %v2966, %v3110
  %v3143 = vmul.f32 %v2968, %v3111
  %v3144 = vmul.f32 %v2970, %v3112
  %v3145 = vmul.f32 %v2972, %v3113
  %v3146 = vmul.f32 %v2974, %v3114
  %v3147 = vmul.f32 %v2976, %v3115
  %v3148 = vmul.f32 %v2978, %v3116
  %v3149 = vmul.f32 %v2980, %v3117
  %v3150 = vmul.f32 %v2982, %v3118
  %v3151 = vmul.f32 %v2984, %v3119
  %v3152 = vmul.f32 %v2986, %v3120
  %v3153 = vmul.f32 %v2988, %v3121
  %v3154 = vmul.f32 %v2990, %v3122
  %v3155 = vmul.f32 %v2992, %v3123
  %v3156 = vmul.f32 %v2994, %v3124
  %v3157 = vmul.f32 %v2996, %v3125
  %v3158 = vmul.f32 %v2998, %v3126
  %3159 = vrot.lane.b32.xlu0 %v288, 96
  %v3160 = vpop.permute.xlu0 %3159
  %v3163 = vsel %vm438, %v3127, 0
  %3165 = vmatprep.subr.mxu0 0.0
  %3166 = vmatpush1.msra.mxu0 %v3160
  %3167 = vmatprep.subr.mxu0 0.0
  %3168 = vmatpush1.msra.mxu0 0.0
  %3169 = vmatprep.subr.mxu0 0.0
  %3170 = vmatpush1.msra.mxu0 0.0
  %3171 = vmatprep.subr.mxu0 0.0
  %3172 = vmatpush1.msra.mxu0 0.0
  %3173 = vmatprep.subr.mxu0 0.0
  %3174 = vmatpush1.msra.mxu0 0.0
  %3175 = vmatprep.subr.mxu0 0.0
  %3176 = vmatpush1.msra.mxu0 0.0
  %3177 = vmatprep.subr.mxu0 0.0
  %3178 = vmatpush1.msra.mxu0 0.0
  %3179 = vmatprep.subr.mxu0 0.0
  %3180 = vmatpush1.msra.mxu0 0.0
  %3181 = vmatprep.subr.mxu0 0.0
  %3182 = vmatpush1.msra.mxu0 0.0
  %3183 = vmatprep.subr.mxu0 0.0
  %3184 = vmatpush1.msra.mxu0 0.0
  %3185 = vmatprep.subr.mxu0 0.0
  %3186 = vmatpush1.msra.mxu0 0.0
  %3187 = vmatprep.subr.mxu0 0.0
  %3188 = vmatpush1.msra.mxu0 0.0
  %3189 = vmatprep.subr.mxu0 0.0
  %3190 = vmatpush1.msra.mxu0 0.0
  %3191 = vmatprep.subr.mxu0 0.0
  %3192 = vmatpush1.msra.mxu0 0.0
  %3193 = vmatprep.subr.mxu0 0.0
  %3194 = vmatpush1.msra.mxu0 0.0
  %3195 = vmatprep.subr.mxu0 0.0
  %3196 = vmatpush1.msra.mxu0 0.0
  %3197 = vmatprep.subr.mxu0 0.0
  %3198 = vmatpush1.msra.mxu0 0.0
  %3199 = vmatprep.subr.mxu0 0.0
  %3200 = vmatpush1.msra.mxu0 0.0
  %3201 = vmatprep.subr.mxu0 0.0
  %3202 = vmatpush1.msra.mxu0 0.0
  %3203 = vmatprep.subr.mxu0 0.0
  %3204 = vmatpush1.msra.mxu0 0.0
  %3205 = vmatprep.subr.mxu0 0.0
  %3206 = vmatpush1.msra.mxu0 0.0
  %3207 = vmatprep.subr.mxu0 0.0
  %3208 = vmatpush1.msra.mxu0 0.0
  %3209 = vmatprep.subr.mxu0 0.0
  %3210 = vmatpush1.msra.mxu0 0.0
  %3211 = vmatprep.subr.mxu0 0.0
  %3212 = vmatpush1.msra.mxu0 0.0
  %3213 = vmatprep.subr.mxu0 0.0
  %3214 = vmatpush1.msra.mxu0 0.0
  %3215 = vmatprep.subr.mxu0 0.0
  %3216 = vmatpush1.msra.mxu0 0.0
  %3217 = vmatprep.subr.mxu0 0.0
  %3218 = vmatpush1.msra.mxu0 0.0
  %3219 = vmatprep.subr.mxu0 0.0
  %3220 = vmatpush1.msra.mxu0 0.0
  %3221 = vmatprep.subr.mxu0 0.0
  %3222 = vmatpush1.msra.mxu0 0.0
  %3223 = vmatprep.subr.mxu0 0.0
  %3224 = vmatpush1.msra.mxu0 0.0
  %3225 = vmatprep.subr.mxu0 0.0
  %3226 = vmatpush1.msra.mxu0 0.0
  %3227 = vmatprep.subr.mxu0 0.0
  %3228 = vmatpush1.msra.mxu0 0.0
  %3229 = vmatprep.mubr.f32.mxu0 0.0
  %3230 = vmatmul.mubr.f32.gmra.mrb[0].mxu0 %v3163
  %v3231 = vpop.f32.mrb[0].mxu0
  %v3232 = vadd.f32 0.0, %v3231
  %v3233 = vpop.f32.mrb[0].mxu0
  %3234 = vdwg.mxu0
  %3235 = vrot.lane.b32.xlu0 %v293, 96
  %v3236 = vpop.permute.xlu0 %3235
  %v3239 = vsel %vm438, %v3128, 0
  %3241 = vmatprep.subr.mxu0 0.0
  %3242 = vmatpush1.msra.mxu0 %v3236
  %3243 = vmatprep.subr.mxu0 0.0
  %3244 = vmatpush1.msra.mxu0 0.0
  %3245 = vmatprep.subr.mxu0 0.0
  %3246 = vmatpush1.msra.mxu0 0.0
  %3247 = vmatprep.subr.mxu0 0.0
  %3248 = vmatpush1.msra.mxu0 0.0
  %3249 = vmatprep.subr.mxu0 0.0
  %3250 = vmatpush1.msra.mxu0 0.0
  %3251 = vmatprep.subr.mxu0 0.0
  %3252 = vmatpush1.msra.mxu0 0.0
  %3253 = vmatprep.subr.mxu0 0.0
  %3254 = vmatpush1.msra.mxu0 0.0
  %3255 = vmatprep.subr.mxu0 0.0
  %3256 = vmatpush1.msra.mxu0 0.0
  %3257 = vmatprep.subr.mxu0 0.0
  %3258 = vmatpush1.msra.mxu0 0.0
  %3259 = vmatprep.subr.mxu0 0.0
  %3260 = vmatpush1.msra.mxu0 0.0
  %3261 = vmatprep.subr.mxu0 0.0
  %3262 = vmatpush1.msra.mxu0 0.0
  %3263 = vmatprep.subr.mxu0 0.0
  %3264 = vmatpush1.msra.mxu0 0.0
  %3265 = vmatprep.subr.mxu0 0.0
  %3266 = vmatpush1.msra.mxu0 0.0
  %3267 = vmatprep.subr.mxu0 0.0
  %3268 = vmatpush1.msra.mxu0 0.0
  %3269 = vmatprep.subr.mxu0 0.0
  %3270 = vmatpush1.msra.mxu0 0.0
  %3271 = vmatprep.subr.mxu0 0.0
  %3272 = vmatpush1.msra.mxu0 0.0
  %3273 = vmatprep.subr.mxu0 0.0
  %3274 = vmatpush1.msra.mxu0 0.0
  %3275 = vmatprep.subr.mxu0 0.0
  %3276 = vmatpush1.msra.mxu0 0.0
  %3277 = vmatprep.subr.mxu0 0.0
  %3278 = vmatpush1.msra.mxu0 0.0
  %3279 = vmatprep.subr.mxu0 0.0
  %3280 = vmatpush1.msra.mxu0 0.0
  %3281 = vmatprep.subr.mxu0 0.0
  %3282 = vmatpush1.msra.mxu0 0.0
  %3283 = vmatprep.subr.mxu0 0.0
  %3284 = vmatpush1.msra.mxu0 0.0
  %3285 = vmatprep.subr.mxu0 0.0
  %3286 = vmatpush1.msra.mxu0 0.0
  %3287 = vmatprep.subr.mxu0 0.0
  %3288 = vmatpush1.msra.mxu0 0.0
  %3289 = vmatprep.subr.mxu0 0.0
  %3290 = vmatpush1.msra.mxu0 0.0
  %3291 = vmatprep.subr.mxu0 0.0
  %3292 = vmatpush1.msra.mxu0 0.0
  %3293 = vmatprep.subr.mxu0 0.0
  %3294 = vmatpush1.msra.mxu0 0.0
  %3295 = vmatprep.subr.mxu0 0.0
  %3296 = vmatpush1.msra.mxu0 0.0
  %3297 = vmatprep.subr.mxu0 0.0
  %3298 = vmatpush1.msra.mxu0 0.0
  %3299 = vmatprep.subr.mxu0 0.0
  %3300 = vmatpush1.msra.mxu0 0.0
  %3301 = vmatprep.subr.mxu0 0.0
  %3302 = vmatpush1.msra.mxu0 0.0
  %3303 = vmatprep.subr.mxu0 0.0
  %3304 = vmatpush1.msra.mxu0 0.0
  %3305 = vmatprep.mubr.f32.mxu0 0.0
  %3306 = vmatmul.mubr.f32.gmra.mrb[0].mxu0 %v3239
  %v3307 = vpop.f32.mrb[0].mxu0
  %v3308 = vadd.f32 0.0, %v3307
  %v3309 = vpop.f32.mrb[0].mxu0
  %3310 = vdwg.mxu0
  %3311 = vrot.lane.b32.xlu0 %v298, 96
  %v3312 = vpop.permute.xlu0 %3311
  %v3315 = vsel %vm438, %v3129, 0
  %3317 = vmatprep.subr.mxu0 0.0
  %3318 = vmatpush1.msra.mxu0 %v3312
  %3319 = vmatprep.subr.mxu0 0.0
  %3320 = vmatpush1.msra.mxu0 0.0
  %3321 = vmatprep.subr.mxu0 0.0
  %3322 = vmatpush1.msra.mxu0 0.0
  %3323 = vmatprep.subr.mxu0 0.0
  %3324 = vmatpush1.msra.mxu0 0.0
  %3325 = vmatprep.subr.mxu0 0.0
  %3326 = vmatpush1.msra.mxu0 0.0
  %3327 = vmatprep.subr.mxu0 0.0
  %3328 = vmatpush1.msra.mxu0 0.0
  %3329 = vmatprep.subr.mxu0 0.0
  %3330 = vmatpush1.msra.mxu0 0.0
  %3331 = vmatprep.subr.mxu0 0.0
  %3332 = vmatpush1.msra.mxu0 0.0
  %3333 = vmatprep.subr.mxu0 0.0
  %3334 = vmatpush1.msra.mxu0 0.0
  %3335 = vmatprep.subr.mxu0 0.0
  %3336 = vmatpush1.msra.mxu0 0.0
  %3337 = vmatprep.subr.mxu0 0.0
  %3338 = vmatpush1.msra.mxu0 0.0
  %3339 = vmatprep.subr.mxu0 0.0
  %3340 = vmatpush1.msra.mxu0 0.0
  %3341 = vmatprep.subr.mxu0 0.0
  %3342 = vmatpush1.msra.mxu0 0.0
  %3343 = vmatprep.subr.mxu0 0.0
  %3344 = vmatpush1.msra.mxu0 0.0
  %3345 = vmatprep.subr.mxu0 0.0
  %3346 = vmatpush1.msra.mxu0 0.0
  %3347 = vmatprep.subr.mxu0 0.0
  %3348 = vmatpush1.msra.mxu0 0.0
  %3349 = vmatprep.subr.mxu0 0.0
  %3350 = vmatpush1.msra.mxu0 0.0
  %3351 = vmatprep.subr.mxu0 0.0
  %3352 = vmatpush1.msra.mxu0 0.0
  %3353 = vmatprep.subr.mxu0 0.0
  %3354 = vmatpush1.msra.mxu0 0.0
  %3355 = vmatprep.subr.mxu0 0.0
  %3356 = vmatpush1.msra.mxu0 0.0
  %3357 = vmatprep.subr.mxu0 0.0
  %3358 = vmatpush1.msra.mxu0 0.0
  %3359 = vmatprep.subr.mxu0 0.0
  %3360 = vmatpush1.msra.mxu0 0.0
  %3361 = vmatprep.subr.mxu0 0.0
  %3362 = vmatpush1.msra.mxu0 0.0
  %3363 = vmatprep.subr.mxu0 0.0
  %3364 = vmatpush1.msra.mxu0 0.0
  %3365 = vmatprep.subr.mxu0 0.0
  %3366 = vmatpush1.msra.mxu0 0.0
  %3367 = vmatprep.subr.mxu0 0.0
  %3368 = vmatpush1.msra.mxu0 0.0
  %3369 = vmatprep.subr.mxu0 0.0
  %3370 = vmatpush1.msra.mxu0 0.0
  %3371 = vmatprep.subr.mxu0 0.0
  %3372 = vmatpush1.msra.mxu0 0.0
  %3373 = vmatprep.subr.mxu0 0.0
  %3374 = vmatpush1.msra.mxu0 0.0
  %3375 = vmatprep.subr.mxu0 0.0
  %3376 = vmatpush1.msra.mxu0 0.0
  %3377 = vmatprep.subr.mxu0 0.0
  %3378 = vmatpush1.msra.mxu0 0.0
  %3379 = vmatprep.subr.mxu0 0.0
  %3380 = vmatpush1.msra.mxu0 0.0
  %3381 = vmatprep.mubr.f32.mxu0 0.0
  %3382 = vmatmul.mubr.f32.gmra.mrb[0].mxu0 %v3315
  %v3383 = vpop.f32.mrb[0].mxu0
  %v3384 = vadd.f32 0.0, %v3383
  %v3385 = vpop.f32.mrb[0].mxu0
  %3386 = vdwg.mxu0
  %3387 = vrot.lane.b32.xlu0 %v303, 96
  %v3388 = vpop.permute.xlu0 %3387
  %v3391 = vsel %vm438, %v3130, 0
  %3393 = vmatprep.subr.mxu0 0.0
  %3394 = vmatpush1.msra.mxu0 %v3388
  %3395 = vmatprep.subr.mxu0 0.0
  %3396 = vmatpush1.msra.mxu0 0.0
  %3397 = vmatprep.subr.mxu0 0.0
  %3398 = vmatpush1.msra.mxu0 0.0
  %3399 = vmatprep.subr.mxu0 0.0
  %3400 = vmatpush1.msra.mxu0 0.0
  %3401 = vmatprep.subr.mxu0 0.0
  %3402 = vmatpush1.msra.mxu0 0.0
  %3403 = vmatprep.subr.mxu0 0.0
  %3404 = vmatpush1.msra.mxu0 0.0
  %3405 = vmatprep.subr.mxu0 0.0
  %3406 = vmatpush1.msra.mxu0 0.0
  %3407 = vmatprep.subr.mxu0 0.0
  %3408 = vmatpush1.msra.mxu0 0.0
  %3409 = vmatprep.subr.mxu0 0.0
  %3410 = vmatpush1.msra.mxu0 0.0
  %3411 = vmatprep.subr.mxu0 0.0
  %3412 = vmatpush1.msra.mxu0 0.0
  %3413 = vmatprep.subr.mxu0 0.0
  %3414 = vmatpush1.msra.mxu0 0.0
  %3415 = vmatprep.subr.mxu0 0.0
  %3416 = vmatpush1.msra.mxu0 0.0
  %3417 = vmatprep.subr.mxu0 0.0
  %3418 = vmatpush1.msra.mxu0 0.0
  %3419 = vmatprep.subr.mxu0 0.0
  %3420 = vmatpush1.msra.mxu0 0.0
  %3421 = vmatprep.subr.mxu0 0.0
  %3422 = vmatpush1.msra.mxu0 0.0
  %3423 = vmatprep.subr.mxu0 0.0
  %3424 = vmatpush1.msra.mxu0 0.0
  %3425 = vmatprep.subr.mxu0 0.0
  %3426 = vmatpush1.msra.mxu0 0.0
  %3427 = vmatprep.subr.mxu0 0.0
  %3428 = vmatpush1.msra.mxu0 0.0
  %3429 = vmatprep.subr.mxu0 0.0
  %3430 = vmatpush1.msra.mxu0 0.0
  %3431 = vmatprep.subr.mxu0 0.0
  %3432 = vmatpush1.msra.mxu0 0.0
  %3433 = vmatprep.subr.mxu0 0.0
  %3434 = vmatpush1.msra.mxu0 0.0
  %3435 = vmatprep.subr.mxu0 0.0
  %3436 = vmatpush1.msra.mxu0 0.0
  %3437 = vmatprep.subr.mxu0 0.0
  %3438 = vmatpush1.msra.mxu0 0.0
  %3439 = vmatprep.subr.mxu0 0.0
  %3440 = vmatpush1.msra.mxu0 0.0
  %3441 = vmatprep.subr.mxu0 0.0
  %3442 = vmatpush1.msra.mxu0 0.0
  %3443 = vmatprep.subr.mxu0 0.0
  %3444 = vmatpush1.msra.mxu0 0.0
  %3445 = vmatprep.subr.mxu0 0.0
  %3446 = vmatpush1.msra.mxu0 0.0
  %3447 = vmatprep.subr.mxu0 0.0
  %3448 = vmatpush1.msra.mxu0 0.0
  %3449 = vmatprep.subr.mxu0 0.0
  %3450 = vmatpush1.msra.mxu0 0.0
  %3451 = vmatprep.subr.mxu0 0.0
  %3452 = vmatpush1.msra.mxu0 0.0
  %3453 = vmatprep.subr.mxu0 0.0
  %3454 = vmatpush1.msra.mxu0 0.0
  %3455 = vmatprep.subr.mxu0 0.0
  %3456 = vmatpush1.msra.mxu0 0.0
  %3457 = vmatprep.mubr.f32.mxu0 0.0
  %3458 = vmatmul.mubr.f32.gmra.mrb[0].mxu0 %v3391
  %v3459 = vpop.f32.mrb[0].mxu0
  %v3460 = vadd.f32 0.0, %v3459
  %v3461 = vpop.f32.mrb[0].mxu0
  %3462 = vdwg.mxu0
  %3463 = vrot.lane.b32.xlu0 %v308, 96
  %v3464 = vpop.permute.xlu0 %3463
  %v3467 = vsel %vm438, %v3131, 0
  %3469 = vmatprep.subr.mxu0 0.0
  %3470 = vmatpush1.msra.mxu0 %v3464
  %3471 = vmatprep.subr.mxu0 0.0
  %3472 = vmatpush1.msra.mxu0 0.0
  %3473 = vmatprep.subr.mxu0 0.0
  %3474 = vmatpush1.msra.mxu0 0.0
  %3475 = vmatprep.subr.mxu0 0.0
  %3476 = vmatpush1.msra.mxu0 0.0
  %3477 = vmatprep.subr.mxu0 0.0
  %3478 = vmatpush1.msra.mxu0 0.0
  %3479 = vmatprep.subr.mxu0 0.0
  %3480 = vmatpush1.msra.mxu0 0.0
  %3481 = vmatprep.subr.mxu0 0.0
  %3482 = vmatpush1.msra.mxu0 0.0
  %3483 = vmatprep.subr.mxu0 0.0
  %3484 = vmatpush1.msra.mxu0 0.0
  %3485 = vmatprep.subr.mxu0 0.0
  %3486 = vmatpush1.msra.mxu0 0.0
  %3487 = vmatprep.subr.mxu0 0.0
  %3488 = vmatpush1.msra.mxu0 0.0
  %3489 = vmatprep.subr.mxu0 0.0
  %3490 = vmatpush1.msra.mxu0 0.0
  %3491 = vmatprep.subr.mxu0 0.0
  %3492 = vmatpush1.msra.mxu0 0.0
  %3493 = vmatprep.subr.mxu0 0.0
  %3494 = vmatpush1.msra.mxu0 0.0
  %3495 = vmatprep.subr.mxu0 0.0
  %3496 = vmatpush1.msra.mxu0 0.0
  %3497 = vmatprep.subr.mxu0 0.0
  %3498 = vmatpush1.msra.mxu0 0.0
  %3499 = vmatprep.subr.mxu0 0.0
  %3500 = vmatpush1.msra.mxu0 0.0
  %3501 = vmatprep.subr.mxu0 0.0
  %3502 = vmatpush1.msra.mxu0 0.0
  %3503 = vmatprep.subr.mxu0 0.0
  %3504 = vmatpush1.msra.mxu0 0.0
  %3505 = vmatprep.subr.mxu0 0.0
  %3506 = vmatpush1.msra.mxu0 0.0
  %3507 = vmatprep.subr.mxu0 0.0
  %3508 = vmatpush1.msra.mxu0 0.0
  %3509 = vmatprep.subr.mxu0 0.0
  %3510 = vmatpush1.msra.mxu0 0.0
  %3511 = vmatprep.subr.mxu0 0.0
  %3512 = vmatpush1.msra.mxu0 0.0
  %3513 = vmatprep.subr.mxu0 0.0
  %3514 = vmatpush1.msra.mxu0 0.0
  %3515 = vmatprep.subr.mxu0 0.0
  %3516 = vmatpush1.msra.mxu0 0.0
  %3517 = vmatprep.subr.mxu0 0.0
  %3518 = vmatpush1.msra.mxu0 0.0
  %3519 = vmatprep.subr.mxu0 0.0
  %3520 = vmatpush1.msra.mxu0 0.0
  %3521 = vmatprep.subr.mxu0 0.0
  %3522 = vmatpush1.msra.mxu0 0.0
  %3523 = vmatprep.subr.mxu0 0.0
  %3524 = vmatpush1.msra.mxu0 0.0
  %3525 = vmatprep.subr.mxu0 0.0
  %3526 = vmatpush1.msra.mxu0 0.0
  %3527 = vmatprep.subr.mxu0 0.0
  %3528 = vmatpush1.msra.mxu0 0.0
  %3529 = vmatprep.subr.mxu0 0.0
  %3530 = vmatpush1.msra.mxu0 0.0
  %3531 = vmatprep.subr.mxu0 0.0
  %3532 = vmatpush1.msra.mxu0 0.0
  %3533 = vmatprep.mubr.f32.mxu0 0.0
  %3534 = vmatmul.mubr.f32.gmra.mrb[0].mxu0 %v3467
  %v3535 = vpop.f32.mrb[0].mxu0
  %v3536 = vadd.f32 0.0, %v3535
  %v3537 = vpop.f32.mrb[0].mxu0
  %3538 = vdwg.mxu0
  %3539 = vrot.lane.b32.xlu0 %v313, 96
  %v3540 = vpop.permute.xlu0 %3539
  %v3543 = vsel %vm438, %v3132, 0
  %3545 = vmatprep.subr.mxu0 0.0
  %3546 = vmatpush1.msra.mxu0 %v3540
  %3547 = vmatprep.subr.mxu0 0.0
  %3548 = vmatpush1.msra.mxu0 0.0
  %3549 = vmatprep.subr.mxu0 0.0
  %3550 = vmatpush1.msra.mxu0 0.0
  %3551 = vmatprep.subr.mxu0 0.0
  %3552 = vmatpush1.msra.mxu0 0.0
  %3553 = vmatprep.subr.mxu0 0.0
  %3554 = vmatpush1.msra.mxu0 0.0
  %3555 = vmatprep.subr.mxu0 0.0
  %3556 = vmatpush1.msra.mxu0 0.0
  %3557 = vmatprep.subr.mxu0 0.0
  %3558 = vmatpush1.msra.mxu0 0.0
  %3559 = vmatprep.subr.mxu0 0.0
  %3560 = vmatpush1.msra.mxu0 0.0
  %3561 = vmatprep.subr.mxu0 0.0
  %3562 = vmatpush1.msra.mxu0 0.0
  %3563 = vmatprep.subr.mxu0 0.0
  %3564 = vmatpush1.msra.mxu0 0.0
  %3565 = vmatprep.subr.mxu0 0.0
  %3566 = vmatpush1.msra.mxu0 0.0
  %3567 = vmatprep.subr.mxu0 0.0
  %3568 = vmatpush1.msra.mxu0 0.0
  %3569 = vmatprep.subr.mxu0 0.0
  %3570 = vmatpush1.msra.mxu0 0.0
  %3571 = vmatprep.subr.mxu0 0.0
  %3572 = vmatpush1.msra.mxu0 0.0
  %3573 = vmatprep.subr.mxu0 0.0
  %3574 = vmatpush1.msra.mxu0 0.0
  %3575 = vmatprep.subr.mxu0 0.0
  %3576 = vmatpush1.msra.mxu0 0.0
  %3577 = vmatprep.subr.mxu0 0.0
  %3578 = vmatpush1.msra.mxu0 0.0
  %3579 = vmatprep.subr.mxu0 0.0
  %3580 = vmatpush1.msra.mxu0 0.0
  %3581 = vmatprep.subr.mxu0 0.0
  %3582 = vmatpush1.msra.mxu0 0.0
  %3583 = vmatprep.subr.mxu0 0.0
  %3584 = vmatpush1.msra.mxu0 0.0
  %3585 = vmatprep.subr.mxu0 0.0
  %3586 = vmatpush1.msra.mxu0 0.0
  %3587 = vmatprep.subr.mxu0 0.0
  %3588 = vmatpush1.msra.mxu0 0.0
  %3589 = vmatprep.subr.mxu0 0.0
  %3590 = vmatpush1.msra.mxu0 0.0
  %3591 = vmatprep.subr.mxu0 0.0
  %3592 = vmatpush1.msra.mxu0 0.0
  %3593 = vmatprep.subr.mxu0 0.0
  %3594 = vmatpush1.msra.mxu0 0.0
  %3595 = vmatprep.subr.mxu0 0.0
  %3596 = vmatpush1.msra.mxu0 0.0
  %3597 = vmatprep.subr.mxu0 0.0
  %3598 = vmatpush1.msra.mxu0 0.0
  %3599 = vmatprep.subr.mxu0 0.0
  %3600 = vmatpush1.msra.mxu0 0.0
  %3601 = vmatprep.subr.mxu0 0.0
  %3602 = vmatpush1.msra.mxu0 0.0
  %3603 = vmatprep.subr.mxu0 0.0
  %3604 = vmatpush1.msra.mxu0 0.0
  %3605 = vmatprep.subr.mxu0 0.0
  %3606 = vmatpush1.msra.mxu0 0.0
  %3607 = vmatprep.subr.mxu0 0.0
  %3608 = vmatpush1.msra.mxu0 0.0
  %3609 = vmatprep.mubr.f32.mxu0 0.0
  %3610 = vmatmul.mubr.f32.gmra.mrb[0].mxu0 %v3543
  %v3611 = vpop.f32.mrb[0].mxu0
  %v3612 = vadd.f32 0.0, %v3611
  %v3613 = vpop.f32.mrb[0].mxu0
  %3614 = vdwg.mxu0
  %3615 = vrot.lane.b32.xlu0 %v318, 96
  %v3616 = vpop.permute.xlu0 %3615
  %v3619 = vsel %vm438, %v3133, 0
  %3621 = vmatprep.subr.mxu0 0.0
  %3622 = vmatpush1.msra.mxu0 %v3616
  %3623 = vmatprep.subr.mxu0 0.0
  %3624 = vmatpush1.msra.mxu0 0.0
  %3625 = vmatprep.subr.mxu0 0.0
  %3626 = vmatpush1.msra.mxu0 0.0
  %3627 = vmatprep.subr.mxu0 0.0
  %3628 = vmatpush1.msra.mxu0 0.0
  %3629 = vmatprep.subr.mxu0 0.0
  %3630 = vmatpush1.msra.mxu0 0.0
  %3631 = vmatprep.subr.mxu0 0.0
  %3632 = vmatpush1.msra.mxu0 0.0
  %3633 = vmatprep.subr.mxu0 0.0
  %3634 = vmatpush1.msra.mxu0 0.0
  %3635 = vmatprep.subr.mxu0 0.0
  %3636 = vmatpush1.msra.mxu0 0.0
  %3637 = vmatprep.subr.mxu0 0.0
  %3638 = vmatpush1.msra.mxu0 0.0
  %3639 = vmatprep.subr.mxu0 0.0
  %3640 = vmatpush1.msra.mxu0 0.0
  %3641 = vmatprep.subr.mxu0 0.0
  %3642 = vmatpush1.msra.mxu0 0.0
  %3643 = vmatprep.subr.mxu0 0.0
  %3644 = vmatpush1.msra.mxu0 0.0
  %3645 = vmatprep.subr.mxu0 0.0
  %3646 = vmatpush1.msra.mxu0 0.0
  %3647 = vmatprep.subr.mxu0 0.0
  %3648 = vmatpush1.msra.mxu0 0.0
  %3649 = vmatprep.subr.mxu0 0.0
  %3650 = vmatpush1.msra.mxu0 0.0
  %3651 = vmatprep.subr.mxu0 0.0
  %3652 = vmatpush1.msra.mxu0 0.0
  %3653 = vmatprep.subr.mxu0 0.0
  %3654 = vmatpush1.msra.mxu0 0.0
  %3655 = vmatprep.subr.mxu0 0.0
  %3656 = vmatpush1.msra.mxu0 0.0
  %3657 = vmatprep.subr.mxu0 0.0
  %3658 = vmatpush1.msra.mxu0 0.0
  %3659 = vmatprep.subr.mxu0 0.0
  %3660 = vmatpush1.msra.mxu0 0.0
  %3661 = vmatprep.subr.mxu0 0.0
  %3662 = vmatpush1.msra.mxu0 0.0
  %3663 = vmatprep.subr.mxu0 0.0
  %3664 = vmatpush1.msra.mxu0 0.0
  %3665 = vmatprep.subr.mxu0 0.0
  %3666 = vmatpush1.msra.mxu0 0.0
  %3667 = vmatprep.subr.mxu0 0.0
  %3668 = vmatpush1.msra.mxu0 0.0
  %3669 = vmatprep.subr.mxu0 0.0
  %3670 = vmatpush1.msra.mxu0 0.0
  %3671 = vmatprep.subr.mxu0 0.0
  %3672 = vmatpush1.msra.mxu0 0.0
  %3673 = vmatprep.subr.mxu0 0.0
  %3674 = vmatpush1.msra.mxu0 0.0
  %3675 = vmatprep.subr.mxu0 0.0
  %3676 = vmatpush1.msra.mxu0 0.0
  %3677 = vmatprep.subr.mxu0 0.0
  %3678 = vmatpush1.msra.mxu0 0.0
  %3679 = vmatprep.subr.mxu0 0.0
  %3680 = vmatpush1.msra.mxu0 0.0
  %3681 = vmatprep.subr.mxu0 0.0
  %3682 = vmatpush1.msra.mxu0 0.0
  %3683 = vmatprep.subr.mxu0 0.0
  %3684 = vmatpush1.msra.mxu0 0.0
  %3685 = vmatprep.mubr.f32.mxu0 0.0
  %3686 = vmatmul.mubr.f32.gmra.mrb[0].mxu0 %v3619
  %v3687 = vpop.f32.mrb[0].mxu0
  %v3688 = vadd.f32 0.0, %v3687
  %v3689 = vpop.f32.mrb[0].mxu0
  %3690 = vdwg.mxu0
  %3691 = vrot.lane.b32.xlu0 %v323, 96
  %v3692 = vpop.permute.xlu0 %3691
  %v3695 = vsel %vm438, %v3134, 0
  %3697 = vmatprep.subr.mxu0 0.0
  %3698 = vmatpush1.msra.mxu0 %v3692
  %3699 = vmatprep.subr.mxu0 0.0
  %3700 = vmatpush1.msra.mxu0 0.0
  %3701 = vmatprep.subr.mxu0 0.0
  %3702 = vmatpush1.msra.mxu0 0.0
  %3703 = vmatprep.subr.mxu0 0.0
  %3704 = vmatpush1.msra.mxu0 0.0
  %3705 = vmatprep.subr.mxu0 0.0
  %3706 = vmatpush1.msra.mxu0 0.0
  %3707 = vmatprep.subr.mxu0 0.0
  %3708 = vmatpush1.msra.mxu0 0.0
  %3709 = vmatprep.subr.mxu0 0.0
  %3710 = vmatpush1.msra.mxu0 0.0
  %3711 = vmatprep.subr.mxu0 0.0
  %3712 = vmatpush1.msra.mxu0 0.0
  %3713 = vmatprep.subr.mxu0 0.0
  %3714 = vmatpush1.msra.mxu0 0.0
  %3715 = vmatprep.subr.mxu0 0.0
  %3716 = vmatpush1.msra.mxu0 0.0
  %3717 = vmatprep.subr.mxu0 0.0
  %3718 = vmatpush1.msra.mxu0 0.0
  %3719 = vmatprep.subr.mxu0 0.0
  %3720 = vmatpush1.msra.mxu0 0.0
  %3721 = vmatprep.subr.mxu0 0.0
  %3722 = vmatpush1.msra.mxu0 0.0
  %3723 = vmatprep.subr.mxu0 0.0
  %3724 = vmatpush1.msra.mxu0 0.0
  %3725 = vmatprep.subr.mxu0 0.0
  %3726 = vmatpush1.msra.mxu0 0.0
  %3727 = vmatprep.subr.mxu0 0.0
  %3728 = vmatpush1.msra.mxu0 0.0
  %3729 = vmatprep.subr.mxu0 0.0
  %3730 = vmatpush1.msra.mxu0 0.0
  %3731 = vmatprep.subr.mxu0 0.0
  %3732 = vmatpush1.msra.mxu0 0.0
  %3733 = vmatprep.subr.mxu0 0.0
  %3734 = vmatpush1.msra.mxu0 0.0
  %3735 = vmatprep.subr.mxu0 0.0
  %3736 = vmatpush1.msra.mxu0 0.0
  %3737 = vmatprep.subr.mxu0 0.0
  %3738 = vmatpush1.msra.mxu0 0.0
  %3739 = vmatprep.subr.mxu0 0.0
  %3740 = vmatpush1.msra.mxu0 0.0
  %3741 = vmatprep.subr.mxu0 0.0
  %3742 = vmatpush1.msra.mxu0 0.0
  %3743 = vmatprep.subr.mxu0 0.0
  %3744 = vmatpush1.msra.mxu0 0.0
  %3745 = vmatprep.subr.mxu0 0.0
  %3746 = vmatpush1.msra.mxu0 0.0
  %3747 = vmatprep.subr.mxu0 0.0
  %3748 = vmatpush1.msra.mxu0 0.0
  %3749 = vmatprep.subr.mxu0 0.0
  %3750 = vmatpush1.msra.mxu0 0.0
  %3751 = vmatprep.subr.mxu0 0.0
  %3752 = vmatpush1.msra.mxu0 0.0
  %3753 = vmatprep.subr.mxu0 0.0
  %3754 = vmatpush1.msra.mxu0 0.0
  %3755 = vmatprep.subr.mxu0 0.0
  %3756 = vmatpush1.msra.mxu0 0.0
  %3757 = vmatprep.subr.mxu0 0.0
  %3758 = vmatpush1.msra.mxu0 0.0
  %3759 = vmatprep.subr.mxu0 0.0
  %3760 = vmatpush1.msra.mxu0 0.0
  %3761 = vmatprep.mubr.f32.mxu0 0.0
  %3762 = vmatmul.mubr.f32.gmra.mrb[0].mxu0 %v3695
  %v3763 = vpop.f32.mrb[0].mxu0
  %v3764 = vadd.f32 0.0, %v3763
  %v3765 = vpop.f32.mrb[0].mxu0
  %3766 = vdwg.mxu0
  %3767 = vrot.lane.b32.xlu0 %v391, 96
  %v3768 = vpop.permute.xlu0 %3767
  %v3771 = vsel %vm438, %v3135, 0
  %3773 = vmatprep.subr.mxu0 0.0
  %3774 = vmatpush1.msra.mxu0 %v3768
  %3775 = vmatprep.subr.mxu0 0.0
  %3776 = vmatpush1.msra.mxu0 0.0
  %3777 = vmatprep.subr.mxu0 0.0
  %3778 = vmatpush1.msra.mxu0 0.0
  %3779 = vmatprep.subr.mxu0 0.0
  %3780 = vmatpush1.msra.mxu0 0.0
  %3781 = vmatprep.subr.mxu0 0.0
  %3782 = vmatpush1.msra.mxu0 0.0
  %3783 = vmatprep.subr.mxu0 0.0
  %3784 = vmatpush1.msra.mxu0 0.0
  %3785 = vmatprep.subr.mxu0 0.0
  %3786 = vmatpush1.msra.mxu0 0.0
  %3787 = vmatprep.subr.mxu0 0.0
  %3788 = vmatpush1.msra.mxu0 0.0
  %3789 = vmatprep.subr.mxu0 0.0
  %3790 = vmatpush1.msra.mxu0 0.0
  %3791 = vmatprep.subr.mxu0 0.0
  %3792 = vmatpush1.msra.mxu0 0.0
  %3793 = vmatprep.subr.mxu0 0.0
  %3794 = vmatpush1.msra.mxu0 0.0
  %3795 = vmatprep.subr.mxu0 0.0
  %3796 = vmatpush1.msra.mxu0 0.0
  %3797 = vmatprep.subr.mxu0 0.0
  %3798 = vmatpush1.msra.mxu0 0.0
  %3799 = vmatprep.subr.mxu0 0.0
  %3800 = vmatpush1.msra.mxu0 0.0
  %3801 = vmatprep.subr.mxu0 0.0
  %3802 = vmatpush1.msra.mxu0 0.0
  %3803 = vmatprep.subr.mxu0 0.0
  %3804 = vmatpush1.msra.mxu0 0.0
  %3805 = vmatprep.subr.mxu0 0.0
  %3806 = vmatpush1.msra.mxu0 0.0
  %3807 = vmatprep.subr.mxu0 0.0
  %3808 = vmatpush1.msra.mxu0 0.0
  %3809 = vmatprep.subr.mxu0 0.0
  %3810 = vmatpush1.msra.mxu0 0.0
  %3811 = vmatprep.subr.mxu0 0.0
  %3812 = vmatpush1.msra.mxu0 0.0
  %3813 = vmatprep.subr.mxu0 0.0
  %3814 = vmatpush1.msra.mxu0 0.0
  %3815 = vmatprep.subr.mxu0 0.0
  %3816 = vmatpush1.msra.mxu0 0.0
  %3817 = vmatprep.subr.mxu0 0.0
  %3818 = vmatpush1.msra.mxu0 0.0
  %3819 = vmatprep.subr.mxu0 0.0
  %3820 = vmatpush1.msra.mxu0 0.0
  %3821 = vmatprep.subr.mxu0 0.0
  %3822 = vmatpush1.msra.mxu0 0.0
  %3823 = vmatprep.subr.mxu0 0.0
  %3824 = vmatpush1.msra.mxu0 0.0
  %3825 = vmatprep.subr.mxu0 0.0
  %3826 = vmatpush1.msra.mxu0 0.0
  %3827 = vmatprep.subr.mxu0 0.0
  %3828 = vmatpush1.msra.mxu0 0.0
  %3829 = vmatprep.subr.mxu0 0.0
  %3830 = vmatpush1.msra.mxu0 0.0
  %3831 = vmatprep.subr.mxu0 0.0
  %3832 = vmatpush1.msra.mxu0 0.0
  %3833 = vmatprep.subr.mxu0 0.0
  %3834 = vmatpush1.msra.mxu0 0.0
  %3835 = vmatprep.subr.mxu0 0.0
  %3836 = vmatpush1.msra.mxu0 0.0
  %3837 = vmatprep.mubr.f32.mxu0 0.0
  %3838 = vmatmul.mubr.f32.gmra.mrb[0].mxu0 %v3771
  %v3839 = vpop.f32.mrb[0].mxu0
  %v3840 = vadd.f32 0.0, %v3839
  %v3841 = vpop.f32.mrb[0].mxu0
  %3842 = vdwg.mxu0
  %3843 = vrot.lane.b32.xlu0 %v393, 96
  %v3844 = vpop.permute.xlu0 %3843
  %v3847 = vsel %vm438, %v3136, 0
  %3849 = vmatprep.subr.mxu0 0.0
  %3850 = vmatpush1.msra.mxu0 %v3844
  %3851 = vmatprep.subr.mxu0 0.0
  %3852 = vmatpush1.msra.mxu0 0.0
  %3853 = vmatprep.subr.mxu0 0.0
  %3854 = vmatpush1.msra.mxu0 0.0
  %3855 = vmatprep.subr.mxu0 0.0
  %3856 = vmatpush1.msra.mxu0 0.0
  %3857 = vmatprep.subr.mxu0 0.0
  %3858 = vmatpush1.msra.mxu0 0.0
  %3859 = vmatprep.subr.mxu0 0.0
  %3860 = vmatpush1.msra.mxu0 0.0
  %3861 = vmatprep.subr.mxu0 0.0
  %3862 = vmatpush1.msra.mxu0 0.0
  %3863 = vmatprep.subr.mxu0 0.0
  %3864 = vmatpush1.msra.mxu0 0.0
  %3865 = vmatprep.subr.mxu0 0.0
  %3866 = vmatpush1.msra.mxu0 0.0
  %3867 = vmatprep.subr.mxu0 0.0
  %3868 = vmatpush1.msra.mxu0 0.0
  %3869 = vmatprep.subr.mxu0 0.0
  %3870 = vmatpush1.msra.mxu0 0.0
  %3871 = vmatprep.subr.mxu0 0.0
  %3872 = vmatpush1.msra.mxu0 0.0
  %3873 = vmatprep.subr.mxu0 0.0
  %3874 = vmatpush1.msra.mxu0 0.0
  %3875 = vmatprep.subr.mxu0 0.0
  %3876 = vmatpush1.msra.mxu0 0.0
  %3877 = vmatprep.subr.mxu0 0.0
  %3878 = vmatpush1.msra.mxu0 0.0
  %3879 = vmatprep.subr.mxu0 0.0
  %3880 = vmatpush1.msra.mxu0 0.0
  %3881 = vmatprep.subr.mxu0 0.0
  %3882 = vmatpush1.msra.mxu0 0.0
  %3883 = vmatprep.subr.mxu0 0.0
  %3884 = vmatpush1.msra.mxu0 0.0
  %3885 = vmatprep.subr.mxu0 0.0
  %3886 = vmatpush1.msra.mxu0 0.0
  %3887 = vmatprep.subr.mxu0 0.0
  %3888 = vmatpush1.msra.mxu0 0.0
  %3889 = vmatprep.subr.mxu0 0.0
  %3890 = vmatpush1.msra.mxu0 0.0
  %3891 = vmatprep.subr.mxu0 0.0
  %3892 = vmatpush1.msra.mxu0 0.0
  %3893 = vmatprep.subr.mxu0 0.0
  %3894 = vmatpush1.msra.mxu0 0.0
  %3895 = vmatprep.subr.mxu0 0.0
  %3896 = vmatpush1.msra.mxu0 0.0
  %3897 = vmatprep.subr.mxu0 0.0
  %3898 = vmatpush1.msra.mxu0 0.0
  %3899 = vmatprep.subr.mxu0 0.0
  %3900 = vmatpush1.msra.mxu0 0.0
  %3901 = vmatprep.subr.mxu0 0.0
  %3902 = vmatpush1.msra.mxu0 0.0
  %3903 = vmatprep.subr.mxu0 0.0
  %3904 = vmatpush1.msra.mxu0 0.0
  %3905 = vmatprep.subr.mxu0 0.0
  %3906 = vmatpush1.msra.mxu0 0.0
  %3907 = vmatprep.subr.mxu0 0.0
  %3908 = vmatpush1.msra.mxu0 0.0
  %3909 = vmatprep.subr.mxu0 0.0
  %3910 = vmatpush1.msra.mxu0 0.0
  %3911 = vmatprep.subr.mxu0 0.0
  %3912 = vmatpush1.msra.mxu0 0.0
  %3913 = vmatprep.mubr.f32.mxu0 0.0
  %3914 = vmatmul.mubr.f32.gmra.mrb[0].mxu0 %v3847
  %v3915 = vpop.f32.mrb[0].mxu0
  %v3916 = vadd.f32 0.0, %v3915
  %v3917 = vpop.f32.mrb[0].mxu0
  %3918 = vdwg.mxu0
  %3919 = vrot.lane.b32.xlu0 %v395, 96
  %v3920 = vpop.permute.xlu0 %3919
  %v3923 = vsel %vm438, %v3137, 0
  %3925 = vmatprep.subr.mxu0 0.0
  %3926 = vmatpush1.msra.mxu0 %v3920
  %3927 = vmatprep.subr.mxu0 0.0
  %3928 = vmatpush1.msra.mxu0 0.0
  %3929 = vmatprep.subr.mxu0 0.0
  %3930 = vmatpush1.msra.mxu0 0.0
  %3931 = vmatprep.subr.mxu0 0.0
  %3932 = vmatpush1.msra.mxu0 0.0
  %3933 = vmatprep.subr.mxu0 0.0
  %3934 = vmatpush1.msra.mxu0 0.0
  %3935 = vmatprep.subr.mxu0 0.0
  %3936 = vmatpush1.msra.mxu0 0.0
  %3937 = vmatprep.subr.mxu0 0.0
  %3938 = vmatpush1.msra.mxu0 0.0
  %3939 = vmatprep.subr.mxu0 0.0
  %3940 = vmatpush1.msra.mxu0 0.0
  %3941 = vmatprep.subr.mxu0 0.0
  %3942 = vmatpush1.msra.mxu0 0.0
  %3943 = vmatprep.subr.mxu0 0.0
  %3944 = vmatpush1.msra.mxu0 0.0
  %3945 = vmatprep.subr.mxu0 0.0
  %3946 = vmatpush1.msra.mxu0 0.0
  %3947 = vmatprep.subr.mxu0 0.0
  %3948 = vmatpush1.msra.mxu0 0.0
  %3949 = vmatprep.subr.mxu0 0.0
  %3950 = vmatpush1.msra.mxu0 0.0
  %3951 = vmatprep.subr.mxu0 0.0
  %3952 = vmatpush1.msra.mxu0 0.0
  %3953 = vmatprep.subr.mxu0 0.0
  %3954 = vmatpush1.msra.mxu0 0.0
  %3955 = vmatprep.subr.mxu0 0.0
  %3956 = vmatpush1.msra.mxu0 0.0
  %3957 = vmatprep.subr.mxu0 0.0
  %3958 = vmatpush1.msra.mxu0 0.0
  %3959 = vmatprep.subr.mxu0 0.0
  %3960 = vmatpush1.msra.mxu0 0.0
  %3961 = vmatprep.subr.mxu0 0.0
  %3962 = vmatpush1.msra.mxu0 0.0
  %3963 = vmatprep.subr.mxu0 0.0
  %3964 = vmatpush1.msra.mxu0 0.0
  %3965 = vmatprep.subr.mxu0 0.0
  %3966 = vmatpush1.msra.mxu0 0.0
  %3967 = vmatprep.subr.mxu0 0.0
  %3968 = vmatpush1.msra.mxu0 0.0
  %3969 = vmatprep.subr.mxu0 0.0
  %3970 = vmatpush1.msra.mxu0 0.0
  %3971 = vmatprep.subr.mxu0 0.0
  %3972 = vmatpush1.msra.mxu0 0.0
  %3973 = vmatprep.subr.mxu0 0.0
  %3974 = vmatpush1.msra.mxu0 0.0
  %3975 = vmatprep.subr.mxu0 0.0
  %3976 = vmatpush1.msra.mxu0 0.0
  %3977 = vmatprep.subr.mxu0 0.0
  %3978 = vmatpush1.msra.mxu0 0.0
  %3979 = vmatprep.subr.mxu0 0.0
  %3980 = vmatpush1.msra.mxu0 0.0
  %3981 = vmatprep.subr.mxu0 0.0
  %3982 = vmatpush1.msra.mxu0 0.0
  %3983 = vmatprep.subr.mxu0 0.0
  %3984 = vmatpush1.msra.mxu0 0.0
  %3985 = vmatprep.subr.mxu0 0.0
  %3986 = vmatpush1.msra.mxu0 0.0
  %3987 = vmatprep.subr.mxu0 0.0
  %3988 = vmatpush1.msra.mxu0 0.0
  %3989 = vmatprep.mubr.f32.mxu0 0.0
  %3990 = vmatmul.mubr.f32.gmra.mrb[0].mxu0 %v3923
  %v3991 = vpop.f32.mrb[0].mxu0
  %v3992 = vadd.f32 0.0, %v3991
  %v3993 = vpop.f32.mrb[0].mxu0
  %3994 = vdwg.mxu0
  %3995 = vrot.lane.b32.xlu0 %v397, 96
  %v3996 = vpop.permute.xlu0 %3995
  %v3999 = vsel %vm438, %v3138, 0
  %4001 = vmatprep.subr.mxu0 0.0
  %4002 = vmatpush1.msra.mxu0 %v3996
  %4003 = vmatprep.subr.mxu0 0.0
  %4004 = vmatpush1.msra.mxu0 0.0
  %4005 = vmatprep.subr.mxu0 0.0
  %4006 = vmatpush1.msra.mxu0 0.0
  %4007 = vmatprep.subr.mxu0 0.0
  %4008 = vmatpush1.msra.mxu0 0.0
  %4009 = vmatprep.subr.mxu0 0.0
  %4010 = vmatpush1.msra.mxu0 0.0
  %4011 = vmatprep.subr.mxu0 0.0
  %4012 = vmatpush1.msra.mxu0 0.0
  %4013 = vmatprep.subr.mxu0 0.0
  %4014 = vmatpush1.msra.mxu0 0.0
  %4015 = vmatprep.subr.mxu0 0.0
  %4016 = vmatpush1.msra.mxu0 0.0
  %4017 = vmatprep.subr.mxu0 0.0
  %4018 = vmatpush1.msra.mxu0 0.0
  %4019 = vmatprep.subr.mxu0 0.0
  %4020 = vmatpush1.msra.mxu0 0.0
  %4021 = vmatprep.subr.mxu0 0.0
  %4022 = vmatpush1.msra.mxu0 0.0
  %4023 = vmatprep.subr.mxu0 0.0
  %4024 = vmatpush1.msra.mxu0 0.0
  %4025 = vmatprep.subr.mxu0 0.0
  %4026 = vmatpush1.msra.mxu0 0.0
  %4027 = vmatprep.subr.mxu0 0.0
  %4028 = vmatpush1.msra.mxu0 0.0
  %4029 = vmatprep.subr.mxu0 0.0
  %4030 = vmatpush1.msra.mxu0 0.0
  %4031 = vmatprep.subr.mxu0 0.0
  %4032 = vmatpush1.msra.mxu0 0.0
  %4033 = vmatprep.subr.mxu0 0.0
  %4034 = vmatpush1.msra.mxu0 0.0
  %4035 = vmatprep.subr.mxu0 0.0
  %4036 = vmatpush1.msra.mxu0 0.0
  %4037 = vmatprep.subr.mxu0 0.0
  %4038 = vmatpush1.msra.mxu0 0.0
  %4039 = vmatprep.subr.mxu0 0.0
  %4040 = vmatpush1.msra.mxu0 0.0
  %4041 = vmatprep.subr.mxu0 0.0
  %4042 = vmatpush1.msra.mxu0 0.0
  %4043 = vmatprep.subr.mxu0 0.0
  %4044 = vmatpush1.msra.mxu0 0.0
  %4045 = vmatprep.subr.mxu0 0.0
  %4046 = vmatpush1.msra.mxu0 0.0
  %4047 = vmatprep.subr.mxu0 0.0
  %4048 = vmatpush1.msra.mxu0 0.0
  %4049 = vmatprep.subr.mxu0 0.0
  %4050 = vmatpush1.msra.mxu0 0.0
  %4051 = vmatprep.subr.mxu0 0.0
  %4052 = vmatpush1.msra.mxu0 0.0
  %4053 = vmatprep.subr.mxu0 0.0
  %4054 = vmatpush1.msra.mxu0 0.0
  %4055 = vmatprep.subr.mxu0 0.0
  %4056 = vmatpush1.msra.mxu0 0.0
  %4057 = vmatprep.subr.mxu0 0.0
  %4058 = vmatpush1.msra.mxu0 0.0
  %4059 = vmatprep.subr.mxu0 0.0
  %4060 = vmatpush1.msra.mxu0 0.0
  %4061 = vmatprep.subr.mxu0 0.0
  %4062 = vmatpush1.msra.mxu0 0.0
  %4063 = vmatprep.subr.mxu0 0.0
  %4064 = vmatpush1.msra.mxu0 0.0
  %4065 = vmatprep.mubr.f32.mxu0 0.0
  %4066 = vmatmul.mubr.f32.gmra.mrb[0].mxu0 %v3999
  %v4067 = vpop.f32.mrb[0].mxu0
  %v4068 = vadd.f32 0.0, %v4067
  %v4069 = vpop.f32.mrb[0].mxu0
  %4070 = vdwg.mxu0
  %4071 = vrot.lane.b32.xlu0 %v399, 96
  %v4072 = vpop.permute.xlu0 %4071
  %v4075 = vsel %vm438, %v3139, 0
  %4077 = vmatprep.subr.mxu0 0.0
  %4078 = vmatpush1.msra.mxu0 %v4072
  %4079 = vmatprep.subr.mxu0 0.0
  %4080 = vmatpush1.msra.mxu0 0.0
  %4081 = vmatprep.subr.mxu0 0.0
  %4082 = vmatpush1.msra.mxu0 0.0
  %4083 = vmatprep.subr.mxu0 0.0
  %4084 = vmatpush1.msra.mxu0 0.0
  %4085 = vmatprep.subr.mxu0 0.0
  %4086 = vmatpush1.msra.mxu0 0.0
  %4087 = vmatprep.subr.mxu0 0.0
  %4088 = vmatpush1.msra.mxu0 0.0
  %4089 = vmatprep.subr.mxu0 0.0
  %4090 = vmatpush1.msra.mxu0 0.0
  %4091 = vmatprep.subr.mxu0 0.0
  %4092 = vmatpush1.msra.mxu0 0.0
  %4093 = vmatprep.subr.mxu0 0.0
  %4094 = vmatpush1.msra.mxu0 0.0
  %4095 = vmatprep.subr.mxu0 0.0
  %4096 = vmatpush1.msra.mxu0 0.0
  %4097 = vmatprep.subr.mxu0 0.0
  %4098 = vmatpush1.msra.mxu0 0.0
  %4099 = vmatprep.subr.mxu0 0.0
  %4100 = vmatpush1.msra.mxu0 0.0
  %4101 = vmatprep.subr.mxu0 0.0
  %4102 = vmatpush1.msra.mxu0 0.0
  %4103 = vmatprep.subr.mxu0 0.0
  %4104 = vmatpush1.msra.mxu0 0.0
  %4105 = vmatprep.subr.mxu0 0.0
  %4106 = vmatpush1.msra.mxu0 0.0
  %4107 = vmatprep.subr.mxu0 0.0
  %4108 = vmatpush1.msra.mxu0 0.0
  %4109 = vmatprep.subr.mxu0 0.0
  %4110 = vmatpush1.msra.mxu0 0.0
  %4111 = vmatprep.subr.mxu0 0.0
  %4112 = vmatpush1.msra.mxu0 0.0
  %4113 = vmatprep.subr.mxu0 0.0
  %4114 = vmatpush1.msra.mxu0 0.0
  %4115 = vmatprep.subr.mxu0 0.0
  %4116 = vmatpush1.msra.mxu0 0.0
  %4117 = vmatprep.subr.mxu0 0.0
  %4118 = vmatpush1.msra.mxu0 0.0
  %4119 = vmatprep.subr.mxu0 0.0
  %4120 = vmatpush1.msra.mxu0 0.0
  %4121 = vmatprep.subr.mxu0 0.0
  %4122 = vmatpush1.msra.mxu0 0.0
  %4123 = vmatprep.subr.mxu0 0.0
  %4124 = vmatpush1.msra.mxu0 0.0
  %4125 = vmatprep.subr.mxu0 0.0
  %4126 = vmatpush1.msra.mxu0 0.0
  %4127 = vmatprep.subr.mxu0 0.0
  %4128 = vmatpush1.msra.mxu0 0.0
  %4129 = vmatprep.subr.mxu0 0.0
  %4130 = vmatpush1.msra.mxu0 0.0
  %4131 = vmatprep.subr.mxu0 0.0
  %4132 = vmatpush1.msra.mxu0 0.0
  %4133 = vmatprep.subr.mxu0 0.0
  %4134 = vmatpush1.msra.mxu0 0.0
  %4135 = vmatprep.subr.mxu0 0.0
  %4136 = vmatpush1.msra.mxu0 0.0
  %4137 = vmatprep.subr.mxu0 0.0
  %4138 = vmatpush1.msra.mxu0 0.0
  %4139 = vmatprep.subr.mxu0 0.0
  %4140 = vmatpush1.msra.mxu0 0.0
  %4141 = vmatprep.mubr.f32.mxu0 0.0
  %4142 = vmatmul.mubr.f32.gmra.mrb[0].mxu0 %v4075
  %v4143 = vpop.f32.mrb[0].mxu0
  %v4144 = vadd.f32 0.0, %v4143
  %v4145 = vpop.f32.mrb[0].mxu0
  %4146 = vdwg.mxu0
  %4147 = vrot.lane.b32.xlu0 %v401, 96
  %v4148 = vpop.permute.xlu0 %4147
  %v4151 = vsel %vm438, %v3140, 0
  %4153 = vmatprep.subr.mxu0 0.0
  %4154 = vmatpush1.msra.mxu0 %v4148
  %4155 = vmatprep.subr.mxu0 0.0
  %4156 = vmatpush1.msra.mxu0 0.0
  %4157 = vmatprep.subr.mxu0 0.0
  %4158 = vmatpush1.msra.mxu0 0.0
  %4159 = vmatprep.subr.mxu0 0.0
  %4160 = vmatpush1.msra.mxu0 0.0
  %4161 = vmatprep.subr.mxu0 0.0
  %4162 = vmatpush1.msra.mxu0 0.0
  %4163 = vmatprep.subr.mxu0 0.0
  %4164 = vmatpush1.msra.mxu0 0.0
  %4165 = vmatprep.subr.mxu0 0.0
  %4166 = vmatpush1.msra.mxu0 0.0
  %4167 = vmatprep.subr.mxu0 0.0
  %4168 = vmatpush1.msra.mxu0 0.0
  %4169 = vmatprep.subr.mxu0 0.0
  %4170 = vmatpush1.msra.mxu0 0.0
  %4171 = vmatprep.subr.mxu0 0.0
  %4172 = vmatpush1.msra.mxu0 0.0
  %4173 = vmatprep.subr.mxu0 0.0
  %4174 = vmatpush1.msra.mxu0 0.0
  %4175 = vmatprep.subr.mxu0 0.0
  %4176 = vmatpush1.msra.mxu0 0.0
  %4177 = vmatprep.subr.mxu0 0.0
  %4178 = vmatpush1.msra.mxu0 0.0
  %4179 = vmatprep.subr.mxu0 0.0
  %4180 = vmatpush1.msra.mxu0 0.0
  %4181 = vmatprep.subr.mxu0 0.0
  %4182 = vmatpush1.msra.mxu0 0.0
  %4183 = vmatprep.subr.mxu0 0.0
  %4184 = vmatpush1.msra.mxu0 0.0
  %4185 = vmatprep.subr.mxu0 0.0
  %4186 = vmatpush1.msra.mxu0 0.0
  %4187 = vmatprep.subr.mxu0 0.0
  %4188 = vmatpush1.msra.mxu0 0.0
  %4189 = vmatprep.subr.mxu0 0.0
  %4190 = vmatpush1.msra.mxu0 0.0
  %4191 = vmatprep.subr.mxu0 0.0
  %4192 = vmatpush1.msra.mxu0 0.0
  %4193 = vmatprep.subr.mxu0 0.0
  %4194 = vmatpush1.msra.mxu0 0.0
  %4195 = vmatprep.subr.mxu0 0.0
  %4196 = vmatpush1.msra.mxu0 0.0
  %4197 = vmatprep.subr.mxu0 0.0
  %4198 = vmatpush1.msra.mxu0 0.0
  %4199 = vmatprep.subr.mxu0 0.0
  %4200 = vmatpush1.msra.mxu0 0.0
  %4201 = vmatprep.subr.mxu0 0.0
  %4202 = vmatpush1.msra.mxu0 0.0
  %4203 = vmatprep.subr.mxu0 0.0
  %4204 = vmatpush1.msra.mxu0 0.0
  %4205 = vmatprep.subr.mxu0 0.0
  %4206 = vmatpush1.msra.mxu0 0.0
  %4207 = vmatprep.subr.mxu0 0.0
  %4208 = vmatpush1.msra.mxu0 0.0
  %4209 = vmatprep.subr.mxu0 0.0
  %4210 = vmatpush1.msra.mxu0 0.0
  %4211 = vmatprep.subr.mxu0 0.0
  %4212 = vmatpush1.msra.mxu0 0.0
  %4213 = vmatprep.subr.mxu0 0.0
  %4214 = vmatpush1.msra.mxu0 0.0
  %4215 = vmatprep.subr.mxu0 0.0
  %4216 = vmatpush1.msra.mxu0 0.0
  %4217 = vmatprep.mubr.f32.mxu0 0.0
  %4218 = vmatmul.mubr.f32.gmra.mrb[0].mxu0 %v4151
  %v4219 = vpop.f32.mrb[0].mxu0
  %v4220 = vadd.f32 0.0, %v4219
  %v4221 = vpop.f32.mrb[0].mxu0
  %4222 = vdwg.mxu0
  %4223 = vrot.lane.b32.xlu0 %v403, 96
  %v4224 = vpop.permute.xlu0 %4223
  %v4227 = vsel %vm438, %v3141, 0
  %4229 = vmatprep.subr.mxu0 0.0
  %4230 = vmatpush1.msra.mxu0 %v4224
  %4231 = vmatprep.subr.mxu0 0.0
  %4232 = vmatpush1.msra.mxu0 0.0
  %4233 = vmatprep.subr.mxu0 0.0
  %4234 = vmatpush1.msra.mxu0 0.0
  %4235 = vmatprep.subr.mxu0 0.0
  %4236 = vmatpush1.msra.mxu0 0.0
  %4237 = vmatprep.subr.mxu0 0.0
  %4238 = vmatpush1.msra.mxu0 0.0
  %4239 = vmatprep.subr.mxu0 0.0
  %4240 = vmatpush1.msra.mxu0 0.0
  %4241 = vmatprep.subr.mxu0 0.0
  %4242 = vmatpush1.msra.mxu0 0.0
  %4243 = vmatprep.subr.mxu0 0.0
  %4244 = vmatpush1.msra.mxu0 0.0
  %4245 = vmatprep.subr.mxu0 0.0
  %4246 = vmatpush1.msra.mxu0 0.0
  %4247 = vmatprep.subr.mxu0 0.0
  %4248 = vmatpush1.msra.mxu0 0.0
  %4249 = vmatprep.subr.mxu0 0.0
  %4250 = vmatpush1.msra.mxu0 0.0
  %4251 = vmatprep.subr.mxu0 0.0
  %4252 = vmatpush1.msra.mxu0 0.0
  %4253 = vmatprep.subr.mxu0 0.0
  %4254 = vmatpush1.msra.mxu0 0.0
  %4255 = vmatprep.subr.mxu0 0.0
  %4256 = vmatpush1.msra.mxu0 0.0
  %4257 = vmatprep.subr.mxu0 0.0
  %4258 = vmatpush1.msra.mxu0 0.0
  %4259 = vmatprep.subr.mxu0 0.0
  %4260 = vmatpush1.msra.mxu0 0.0
  %4261 = vmatprep.subr.mxu0 0.0
  %4262 = vmatpush1.msra.mxu0 0.0
  %4263 = vmatprep.subr.mxu0 0.0
  %4264 = vmatpush1.msra.mxu0 0.0
  %4265 = vmatprep.subr.mxu0 0.0
  %4266 = vmatpush1.msra.mxu0 0.0
  %4267 = vmatprep.subr.mxu0 0.0
  %4268 = vmatpush1.msra.mxu0 0.0
  %4269 = vmatprep.subr.mxu0 0.0
  %4270 = vmatpush1.msra.mxu0 0.0
  %4271 = vmatprep.subr.mxu0 0.0
  %4272 = vmatpush1.msra.mxu0 0.0
  %4273 = vmatprep.subr.mxu0 0.0
  %4274 = vmatpush1.msra.mxu0 0.0
  %4275 = vmatprep.subr.mxu0 0.0
  %4276 = vmatpush1.msra.mxu0 0.0
  %4277 = vmatprep.subr.mxu0 0.0
  %4278 = vmatpush1.msra.mxu0 0.0
  %4279 = vmatprep.subr.mxu0 0.0
  %4280 = vmatpush1.msra.mxu0 0.0
  %4281 = vmatprep.subr.mxu0 0.0
  %4282 = vmatpush1.msra.mxu0 0.0
  %4283 = vmatprep.subr.mxu0 0.0
  %4284 = vmatpush1.msra.mxu0 0.0
  %4285 = vmatprep.subr.mxu0 0.0
  %4286 = vmatpush1.msra.mxu0 0.0
  %4287 = vmatprep.subr.mxu0 0.0
  %4288 = vmatpush1.msra.mxu0 0.0
  %4289 = vmatprep.subr.mxu0 0.0
  %4290 = vmatpush1.msra.mxu0 0.0
  %4291 = vmatprep.subr.mxu0 0.0
  %4292 = vmatpush1.msra.mxu0 0.0
  %4293 = vmatprep.mubr.f32.mxu0 0.0
  %4294 = vmatmul.mubr.f32.gmra.mrb[0].mxu0 %v4227
  %v4295 = vpop.f32.mrb[0].mxu0
  %v4296 = vadd.f32 0.0, %v4295
  %v4297 = vpop.f32.mrb[0].mxu0
  %4298 = vdwg.mxu0
  %4299 = vrot.lane.b32.xlu0 %v405, 96
  %v4300 = vpop.permute.xlu0 %4299
  %v4303 = vsel %vm438, %v3142, 0
  %4305 = vmatprep.subr.mxu0 0.0
  %4306 = vmatpush1.msra.mxu0 %v4300
  %4307 = vmatprep.subr.mxu0 0.0
  %4308 = vmatpush1.msra.mxu0 0.0
  %4309 = vmatprep.subr.mxu0 0.0
  %4310 = vmatpush1.msra.mxu0 0.0
  %4311 = vmatprep.subr.mxu0 0.0
  %4312 = vmatpush1.msra.mxu0 0.0
  %4313 = vmatprep.subr.mxu0 0.0
  %4314 = vmatpush1.msra.mxu0 0.0
  %4315 = vmatprep.subr.mxu0 0.0
  %4316 = vmatpush1.msra.mxu0 0.0
  %4317 = vmatprep.subr.mxu0 0.0
  %4318 = vmatpush1.msra.mxu0 0.0
  %4319 = vmatprep.subr.mxu0 0.0
  %4320 = vmatpush1.msra.mxu0 0.0
  %4321 = vmatprep.subr.mxu0 0.0
  %4322 = vmatpush1.msra.mxu0 0.0
  %4323 = vmatprep.subr.mxu0 0.0
  %4324 = vmatpush1.msra.mxu0 0.0
  %4325 = vmatprep.subr.mxu0 0.0
  %4326 = vmatpush1.msra.mxu0 0.0
  %4327 = vmatprep.subr.mxu0 0.0
  %4328 = vmatpush1.msra.mxu0 0.0
  %4329 = vmatprep.subr.mxu0 0.0
  %4330 = vmatpush1.msra.mxu0 0.0
  %4331 = vmatprep.subr.mxu0 0.0
  %4332 = vmatpush1.msra.mxu0 0.0
  %4333 = vmatprep.subr.mxu0 0.0
  %4334 = vmatpush1.msra.mxu0 0.0
  %4335 = vmatprep.subr.mxu0 0.0
  %4336 = vmatpush1.msra.mxu0 0.0
  %4337 = vmatprep.subr.mxu0 0.0
  %4338 = vmatpush1.msra.mxu0 0.0
  %4339 = vmatprep.subr.mxu0 0.0
  %4340 = vmatpush1.msra.mxu0 0.0
  %4341 = vmatprep.subr.mxu0 0.0
  %4342 = vmatpush1.msra.mxu0 0.0
  %4343 = vmatprep.subr.mxu0 0.0
  %4344 = vmatpush1.msra.mxu0 0.0
  %4345 = vmatprep.subr.mxu0 0.0
  %4346 = vmatpush1.msra.mxu0 0.0
  %4347 = vmatprep.subr.mxu0 0.0
  %4348 = vmatpush1.msra.mxu0 0.0
  %4349 = vmatprep.subr.mxu0 0.0
  %4350 = vmatpush1.msra.mxu0 0.0
  %4351 = vmatprep.subr.mxu0 0.0
  %4352 = vmatpush1.msra.mxu0 0.0
  %4353 = vmatprep.subr.mxu0 0.0
  %4354 = vmatpush1.msra.mxu0 0.0
  %4355 = vmatprep.subr.mxu0 0.0
  %4356 = vmatpush1.msra.mxu0 0.0
  %4357 = vmatprep.subr.mxu0 0.0
  %4358 = vmatpush1.msra.mxu0 0.0
  %4359 = vmatprep.subr.mxu0 0.0
  %4360 = vmatpush1.msra.mxu0 0.0
  %4361 = vmatprep.subr.mxu0 0.0
  %4362 = vmatpush1.msra.mxu0 0.0
  %4363 = vmatprep.subr.mxu0 0.0
  %4364 = vmatpush1.msra.mxu0 0.0
  %4365 = vmatprep.subr.mxu0 0.0
  %4366 = vmatpush1.msra.mxu0 0.0
  %4367 = vmatprep.subr.mxu0 0.0
  %4368 = vmatpush1.msra.mxu0 0.0
  %4369 = vmatprep.mubr.f32.mxu0 0.0
  %4370 = vmatmul.mubr.f32.gmra.mrb[0].mxu0 %v4303
  %v4371 = vpop.f32.mrb[0].mxu0
  %v4372 = vadd.f32 0.0, %v4371
  %v4373 = vpop.f32.mrb[0].mxu0
  %4374 = vdwg.mxu0
  %4375 = vrot.lane.b32.xlu0 %v407, 96
  %v4376 = vpop.permute.xlu0 %4375
  %v4379 = vsel %vm438, %v3143, 0
  %4381 = vmatprep.subr.mxu0 0.0
  %4382 = vmatpush1.msra.mxu0 %v4376
  %4383 = vmatprep.subr.mxu0 0.0
  %4384 = vmatpush1.msra.mxu0 0.0
  %4385 = vmatprep.subr.mxu0 0.0
  %4386 = vmatpush1.msra.mxu0 0.0
  %4387 = vmatprep.subr.mxu0 0.0
  %4388 = vmatpush1.msra.mxu0 0.0
  %4389 = vmatprep.subr.mxu0 0.0
  %4390 = vmatpush1.msra.mxu0 0.0
  %4391 = vmatprep.subr.mxu0 0.0
  %4392 = vmatpush1.msra.mxu0 0.0
  %4393 = vmatprep.subr.mxu0 0.0
  %4394 = vmatpush1.msra.mxu0 0.0
  %4395 = vmatprep.subr.mxu0 0.0
  %4396 = vmatpush1.msra.mxu0 0.0
  %4397 = vmatprep.subr.mxu0 0.0
  %4398 = vmatpush1.msra.mxu0 0.0
  %4399 = vmatprep.subr.mxu0 0.0
  %4400 = vmatpush1.msra.mxu0 0.0
  %4401 = vmatprep.subr.mxu0 0.0
  %4402 = vmatpush1.msra.mxu0 0.0
  %4403 = vmatprep.subr.mxu0 0.0
  %4404 = vmatpush1.msra.mxu0 0.0
  %4405 = vmatprep.subr.mxu0 0.0
  %4406 = vmatpush1.msra.mxu0 0.0
  %4407 = vmatprep.subr.mxu0 0.0
  %4408 = vmatpush1.msra.mxu0 0.0
  %4409 = vmatprep.subr.mxu0 0.0
  %4410 = vmatpush1.msra.mxu0 0.0
  %4411 = vmatprep.subr.mxu0 0.0
  %4412 = vmatpush1.msra.mxu0 0.0
  %4413 = vmatprep.subr.mxu0 0.0
  %4414 = vmatpush1.msra.mxu0 0.0
  %4415 = vmatprep.subr.mxu0 0.0
  %4416 = vmatpush1.msra.mxu0 0.0
  %4417 = vmatprep.subr.mxu0 0.0
  %4418 = vmatpush1.msra.mxu0 0.0
  %4419 = vmatprep.subr.mxu0 0.0
  %4420 = vmatpush1.msra.mxu0 0.0
  %4421 = vmatprep.subr.mxu0 0.0
  %4422 = vmatpush1.msra.mxu0 0.0
  %4423 = vmatprep.subr.mxu0 0.0
  %4424 = vmatpush1.msra.mxu0 0.0
  %4425 = vmatprep.subr.mxu0 0.0
  %4426 = vmatpush1.msra.mxu0 0.0
  %4427 = vmatprep.subr.mxu0 0.0
  %4428 = vmatpush1.msra.mxu0 0.0
  %4429 = vmatprep.subr.mxu0 0.0
  %4430 = vmatpush1.msra.mxu0 0.0
  %4431 = vmatprep.subr.mxu0 0.0
  %4432 = vmatpush1.msra.mxu0 0.0
  %4433 = vmatprep.subr.mxu0 0.0
  %4434 = vmatpush1.msra.mxu0 0.0
  %4435 = vmatprep.subr.mxu0 0.0
  %4436 = vmatpush1.msra.mxu0 0.0
  %4437 = vmatprep.subr.mxu0 0.0
  %4438 = vmatpush1.msra.mxu0 0.0
  %4439 = vmatprep.subr.mxu0 0.0
  %4440 = vmatpush1.msra.mxu0 0.0
  %4441 = vmatprep.subr.mxu0 0.0
  %4442 = vmatpush1.msra.mxu0 0.0
  %4443 = vmatprep.subr.mxu0 0.0
  %4444 = vmatpush1.msra.mxu0 0.0
  %4445 = vmatprep.mubr.f32.mxu0 0.0
  %4446 = vmatmul.mubr.f32.gmra.mrb[0].mxu0 %v4379
  %v4447 = vpop.f32.mrb[0].mxu0
  %v4448 = vadd.f32 0.0, %v4447
  %v4449 = vpop.f32.mrb[0].mxu0
  %4450 = vdwg.mxu0
  %4451 = vrot.lane.b32.xlu0 %v409, 96
  %v4452 = vpop.permute.xlu0 %4451
  %v4455 = vsel %vm438, %v3144, 0
  %4457 = vmatprep.subr.mxu0 0.0
  %4458 = vmatpush1.msra.mxu0 %v4452
  %4459 = vmatprep.subr.mxu0 0.0
  %4460 = vmatpush1.msra.mxu0 0.0
  %4461 = vmatprep.subr.mxu0 0.0
  %4462 = vmatpush1.msra.mxu0 0.0
  %4463 = vmatprep.subr.mxu0 0.0
  %4464 = vmatpush1.msra.mxu0 0.0
  %4465 = vmatprep.subr.mxu0 0.0
  %4466 = vmatpush1.msra.mxu0 0.0
  %4467 = vmatprep.subr.mxu0 0.0
  %4468 = vmatpush1.msra.mxu0 0.0
  %4469 = vmatprep.subr.mxu0 0.0
  %4470 = vmatpush1.msra.mxu0 0.0
  %4471 = vmatprep.subr.mxu0 0.0
  %4472 = vmatpush1.msra.mxu0 0.0
  %4473 = vmatprep.subr.mxu0 0.0
  %4474 = vmatpush1.msra.mxu0 0.0
  %4475 = vmatprep.subr.mxu0 0.0
  %4476 = vmatpush1.msra.mxu0 0.0
  %4477 = vmatprep.subr.mxu0 0.0
  %4478 = vmatpush1.msra.mxu0 0.0
  %4479 = vmatprep.subr.mxu0 0.0
  %4480 = vmatpush1.msra.mxu0 0.0
  %4481 = vmatprep.subr.mxu0 0.0
  %4482 = vmatpush1.msra.mxu0 0.0
  %4483 = vmatprep.subr.mxu0 0.0
  %4484 = vmatpush1.msra.mxu0 0.0
  %4485 = vmatprep.subr.mxu0 0.0
  %4486 = vmatpush1.msra.mxu0 0.0
  %4487 = vmatprep.subr.mxu0 0.0
  %4488 = vmatpush1.msra.mxu0 0.0
  %4489 = vmatprep.subr.mxu0 0.0
  %4490 = vmatpush1.msra.mxu0 0.0
  %4491 = vmatprep.subr.mxu0 0.0
  %4492 = vmatpush1.msra.mxu0 0.0
  %4493 = vmatprep.subr.mxu0 0.0
  %4494 = vmatpush1.msra.mxu0 0.0
  %4495 = vmatprep.subr.mxu0 0.0
  %4496 = vmatpush1.msra.mxu0 0.0
  %4497 = vmatprep.subr.mxu0 0.0
  %4498 = vmatpush1.msra.mxu0 0.0
  %4499 = vmatprep.subr.mxu0 0.0
  %4500 = vmatpush1.msra.mxu0 0.0
  %4501 = vmatprep.subr.mxu0 0.0
  %4502 = vmatpush1.msra.mxu0 0.0
  %4503 = vmatprep.subr.mxu0 0.0
  %4504 = vmatpush1.msra.mxu0 0.0
  %4505 = vmatprep.subr.mxu0 0.0
  %4506 = vmatpush1.msra.mxu0 0.0
  %4507 = vmatprep.subr.mxu0 0.0
  %4508 = vmatpush1.msra.mxu0 0.0
  %4509 = vmatprep.subr.mxu0 0.0
  %4510 = vmatpush1.msra.mxu0 0.0
  %4511 = vmatprep.subr.mxu0 0.0
  %4512 = vmatpush1.msra.mxu0 0.0
  %4513 = vmatprep.subr.mxu0 0.0
  %4514 = vmatpush1.msra.mxu0 0.0
  %4515 = vmatprep.subr.mxu0 0.0
  %4516 = vmatpush1.msra.mxu0 0.0
  %4517 = vmatprep.subr.mxu0 0.0
  %4518 = vmatpush1.msra.mxu0 0.0
  %4519 = vmatprep.subr.mxu0 0.0
  %4520 = vmatpush1.msra.mxu0 0.0
  %4521 = vmatprep.mubr.f32.mxu0 0.0
  %4522 = vmatmul.mubr.f32.gmra.mrb[0].mxu0 %v4455
  %v4523 = vpop.f32.mrb[0].mxu0
  %v4524 = vadd.f32 0.0, %v4523
  %v4525 = vpop.f32.mrb[0].mxu0
  %4526 = vdwg.mxu0
  %4527 = vrot.lane.b32.xlu0 %v411, 96
  %v4528 = vpop.permute.xlu0 %4527
  %v4531 = vsel %vm438, %v3145, 0
  %4533 = vmatprep.subr.mxu0 0.0
  %4534 = vmatpush1.msra.mxu0 %v4528
  %4535 = vmatprep.subr.mxu0 0.0
  %4536 = vmatpush1.msra.mxu0 0.0
  %4537 = vmatprep.subr.mxu0 0.0
  %4538 = vmatpush1.msra.mxu0 0.0
  %4539 = vmatprep.subr.mxu0 0.0
  %4540 = vmatpush1.msra.mxu0 0.0
  %4541 = vmatprep.subr.mxu0 0.0
  %4542 = vmatpush1.msra.mxu0 0.0
  %4543 = vmatprep.subr.mxu0 0.0
  %4544 = vmatpush1.msra.mxu0 0.0
  %4545 = vmatprep.subr.mxu0 0.0
  %4546 = vmatpush1.msra.mxu0 0.0
  %4547 = vmatprep.subr.mxu0 0.0
  %4548 = vmatpush1.msra.mxu0 0.0
  %4549 = vmatprep.subr.mxu0 0.0
  %4550 = vmatpush1.msra.mxu0 0.0
  %4551 = vmatprep.subr.mxu0 0.0
  %4552 = vmatpush1.msra.mxu0 0.0
  %4553 = vmatprep.subr.mxu0 0.0
  %4554 = vmatpush1.msra.mxu0 0.0
  %4555 = vmatprep.subr.mxu0 0.0
  %4556 = vmatpush1.msra.mxu0 0.0
  %4557 = vmatprep.subr.mxu0 0.0
  %4558 = vmatpush1.msra.mxu0 0.0
  %4559 = vmatprep.subr.mxu0 0.0
  %4560 = vmatpush1.msra.mxu0 0.0
  %4561 = vmatprep.subr.mxu0 0.0
  %4562 = vmatpush1.msra.mxu0 0.0
  %4563 = vmatprep.subr.mxu0 0.0
  %4564 = vmatpush1.msra.mxu0 0.0
  %4565 = vmatprep.subr.mxu0 0.0
  %4566 = vmatpush1.msra.mxu0 0.0
  %4567 = vmatprep.subr.mxu0 0.0
  %4568 = vmatpush1.msra.mxu0 0.0
  %4569 = vmatprep.subr.mxu0 0.0
  %4570 = vmatpush1.msra.mxu0 0.0
  %4571 = vmatprep.subr.mxu0 0.0
  %4572 = vmatpush1.msra.mxu0 0.0
  %4573 = vmatprep.subr.mxu0 0.0
  %4574 = vmatpush1.msra.mxu0 0.0
  %4575 = vmatprep.subr.mxu0 0.0
  %4576 = vmatpush1.msra.mxu0 0.0
  %4577 = vmatprep.subr.mxu0 0.0
  %4578 = vmatpush1.msra.mxu0 0.0
  %4579 = vmatprep.subr.mxu0 0.0
  %4580 = vmatpush1.msra.mxu0 0.0
  %4581 = vmatprep.subr.mxu0 0.0
  %4582 = vmatpush1.msra.mxu0 0.0
  %4583 = vmatprep.subr.mxu0 0.0
  %4584 = vmatpush1.msra.mxu0 0.0
  %4585 = vmatprep.subr.mxu0 0.0
  %4586 = vmatpush1.msra.mxu0 0.0
  %4587 = vmatprep.subr.mxu0 0.0
  %4588 = vmatpush1.msra.mxu0 0.0
  %4589 = vmatprep.subr.mxu0 0.0
  %4590 = vmatpush1.msra.mxu0 0.0
  %4591 = vmatprep.subr.mxu0 0.0
  %4592 = vmatpush1.msra.mxu0 0.0
  %4593 = vmatprep.subr.mxu0 0.0
  %4594 = vmatpush1.msra.mxu0 0.0
  %4595 = vmatprep.subr.mxu0 0.0
  %4596 = vmatpush1.msra.mxu0 0.0
  %4597 = vmatprep.mubr.f32.mxu0 0.0
  %4598 = vmatmul.mubr.f32.gmra.mrb[0].mxu0 %v4531
  %v4599 = vpop.f32.mrb[0].mxu0
  %v4600 = vadd.f32 0.0, %v4599
  %v4601 = vpop.f32.mrb[0].mxu0
  %4602 = vdwg.mxu0
  %4603 = vrot.lane.b32.xlu0 %v413, 96
  %v4604 = vpop.permute.xlu0 %4603
  %v4607 = vsel %vm438, %v3146, 0
  %4609 = vmatprep.subr.mxu0 0.0
  %4610 = vmatpush1.msra.mxu0 %v4604
  %4611 = vmatprep.subr.mxu0 0.0
  %4612 = vmatpush1.msra.mxu0 0.0
  %4613 = vmatprep.subr.mxu0 0.0
  %4614 = vmatpush1.msra.mxu0 0.0
  %4615 = vmatprep.subr.mxu0 0.0
  %4616 = vmatpush1.msra.mxu0 0.0
  %4617 = vmatprep.subr.mxu0 0.0
  %4618 = vmatpush1.msra.mxu0 0.0
  %4619 = vmatprep.subr.mxu0 0.0
  %4620 = vmatpush1.msra.mxu0 0.0
  %4621 = vmatprep.subr.mxu0 0.0
  %4622 = vmatpush1.msra.mxu0 0.0
  %4623 = vmatprep.subr.mxu0 0.0
  %4624 = vmatpush1.msra.mxu0 0.0
  %4625 = vmatprep.subr.mxu0 0.0
  %4626 = vmatpush1.msra.mxu0 0.0
  %4627 = vmatprep.subr.mxu0 0.0
  %4628 = vmatpush1.msra.mxu0 0.0
  %4629 = vmatprep.subr.mxu0 0.0
  %4630 = vmatpush1.msra.mxu0 0.0
  %4631 = vmatprep.subr.mxu0 0.0
  %4632 = vmatpush1.msra.mxu0 0.0
  %4633 = vmatprep.subr.mxu0 0.0
  %4634 = vmatpush1.msra.mxu0 0.0
  %4635 = vmatprep.subr.mxu0 0.0
  %4636 = vmatpush1.msra.mxu0 0.0
  %4637 = vmatprep.subr.mxu0 0.0
  %4638 = vmatpush1.msra.mxu0 0.0
  %4639 = vmatprep.subr.mxu0 0.0
  %4640 = vmatpush1.msra.mxu0 0.0
  %4641 = vmatprep.subr.mxu0 0.0
  %4642 = vmatpush1.msra.mxu0 0.0
  %4643 = vmatprep.subr.mxu0 0.0
  %4644 = vmatpush1.msra.mxu0 0.0
  %4645 = vmatprep.subr.mxu0 0.0
  %4646 = vmatpush1.msra.mxu0 0.0
  %4647 = vmatprep.subr.mxu0 0.0
  %4648 = vmatpush1.msra.mxu0 0.0
  %4649 = vmatprep.subr.mxu0 0.0
  %4650 = vmatpush1.msra.mxu0 0.0
  %4651 = vmatprep.subr.mxu0 0.0
  %4652 = vmatpush1.msra.mxu0 0.0
  %4653 = vmatprep.subr.mxu0 0.0
  %4654 = vmatpush1.msra.mxu0 0.0
  %4655 = vmatprep.subr.mxu0 0.0
  %4656 = vmatpush1.msra.mxu0 0.0
  %4657 = vmatprep.subr.mxu0 0.0
  %4658 = vmatpush1.msra.mxu0 0.0
  %4659 = vmatprep.subr.mxu0 0.0
  %4660 = vmatpush1.msra.mxu0 0.0
  %4661 = vmatprep.subr.mxu0 0.0
  %4662 = vmatpush1.msra.mxu0 0.0
  %4663 = vmatprep.subr.mxu0 0.0
  %4664 = vmatpush1.msra.mxu0 0.0
  %4665 = vmatprep.subr.mxu0 0.0
  %4666 = vmatpush1.msra.mxu0 0.0
  %4667 = vmatprep.subr.mxu0 0.0
  %4668 = vmatpush1.msra.mxu0 0.0
  %4669 = vmatprep.subr.mxu0 0.0
  %4670 = vmatpush1.msra.mxu0 0.0
  %4671 = vmatprep.subr.mxu0 0.0
  %4672 = vmatpush1.msra.mxu0 0.0
  %4673 = vmatprep.mubr.f32.mxu0 0.0
  %4674 = vmatmul.mubr.f32.gmra.mrb[0].mxu0 %v4607
  %v4675 = vpop.f32.mrb[0].mxu0
  %v4676 = vadd.f32 0.0, %v4675
  %v4677 = vpop.f32.mrb[0].mxu0
  %4678 = vdwg.mxu0
  %4679 = vrot.lane.b32.xlu0 %v415, 96
  %v4680 = vpop.permute.xlu0 %4679
  %v4683 = vsel %vm438, %v3147, 0
  %4685 = vmatprep.subr.mxu0 0.0
  %4686 = vmatpush1.msra.mxu0 %v4680
  %4687 = vmatprep.subr.mxu0 0.0
  %4688 = vmatpush1.msra.mxu0 0.0
  %4689 = vmatprep.subr.mxu0 0.0
  %4690 = vmatpush1.msra.mxu0 0.0
  %4691 = vmatprep.subr.mxu0 0.0
  %4692 = vmatpush1.msra.mxu0 0.0
  %4693 = vmatprep.subr.mxu0 0.0
  %4694 = vmatpush1.msra.mxu0 0.0
  %4695 = vmatprep.subr.mxu0 0.0
  %4696 = vmatpush1.msra.mxu0 0.0
  %4697 = vmatprep.subr.mxu0 0.0
  %4698 = vmatpush1.msra.mxu0 0.0
  %4699 = vmatprep.subr.mxu0 0.0
  %4700 = vmatpush1.msra.mxu0 0.0
  %4701 = vmatprep.subr.mxu0 0.0
  %4702 = vmatpush1.msra.mxu0 0.0
  %4703 = vmatprep.subr.mxu0 0.0
  %4704 = vmatpush1.msra.mxu0 0.0
  %4705 = vmatprep.subr.mxu0 0.0
  %4706 = vmatpush1.msra.mxu0 0.0
  %4707 = vmatprep.subr.mxu0 0.0
  %4708 = vmatpush1.msra.mxu0 0.0
  %4709 = vmatprep.subr.mxu0 0.0
  %4710 = vmatpush1.msra.mxu0 0.0
  %4711 = vmatprep.subr.mxu0 0.0
  %4712 = vmatpush1.msra.mxu0 0.0
  %4713 = vmatprep.subr.mxu0 0.0
  %4714 = vmatpush1.msra.mxu0 0.0
  %4715 = vmatprep.subr.mxu0 0.0
  %4716 = vmatpush1.msra.mxu0 0.0
  %4717 = vmatprep.subr.mxu0 0.0
  %4718 = vmatpush1.msra.mxu0 0.0
  %4719 = vmatprep.subr.mxu0 0.0
  %4720 = vmatpush1.msra.mxu0 0.0
  %4721 = vmatprep.subr.mxu0 0.0
  %4722 = vmatpush1.msra.mxu0 0.0
  %4723 = vmatprep.subr.mxu0 0.0
  %4724 = vmatpush1.msra.mxu0 0.0
  %4725 = vmatprep.subr.mxu0 0.0
  %4726 = vmatpush1.msra.mxu0 0.0
  %4727 = vmatprep.subr.mxu0 0.0
  %4728 = vmatpush1.msra.mxu0 0.0
  %4729 = vmatprep.subr.mxu0 0.0
  %4730 = vmatpush1.msra.mxu0 0.0
  %4731 = vmatprep.subr.mxu0 0.0
  %4732 = vmatpush1.msra.mxu0 0.0
  %4733 = vmatprep.subr.mxu0 0.0
  %4734 = vmatpush1.msra.mxu0 0.0
  %4735 = vmatprep.subr.mxu0 0.0
  %4736 = vmatpush1.msra.mxu0 0.0
  %4737 = vmatprep.subr.mxu0 0.0
  %4738 = vmatpush1.msra.mxu0 0.0
  %4739 = vmatprep.subr.mxu0 0.0
  %4740 = vmatpush1.msra.mxu0 0.0
  %4741 = vmatprep.subr.mxu0 0.0
  %4742 = vmatpush1.msra.mxu0 0.0
  %4743 = vmatprep.subr.mxu0 0.0
  %4744 = vmatpush1.msra.mxu0 0.0
  %4745 = vmatprep.subr.mxu0 0.0
  %4746 = vmatpush1.msra.mxu0 0.0
  %4747 = vmatprep.subr.mxu0 0.0
  %4748 = vmatpush1.msra.mxu0 0.0
  %4749 = vmatprep.mubr.f32.mxu0 0.0
  %4750 = vmatmul.mubr.f32.gmra.mrb[0].mxu0 %v4683
  %v4751 = vpop.f32.mrb[0].mxu0
  %v4752 = vadd.f32 0.0, %v4751
  %v4753 = vpop.f32.mrb[0].mxu0
  %4754 = vdwg.mxu0
  %4755 = vrot.lane.b32.xlu0 %v417, 96
  %v4756 = vpop.permute.xlu0 %4755
  %v4759 = vsel %vm438, %v3148, 0
  %4761 = vmatprep.subr.mxu0 0.0
  %4762 = vmatpush1.msra.mxu0 %v4756
  %4763 = vmatprep.subr.mxu0 0.0
  %4764 = vmatpush1.msra.mxu0 0.0
  %4765 = vmatprep.subr.mxu0 0.0
  %4766 = vmatpush1.msra.mxu0 0.0
  %4767 = vmatprep.subr.mxu0 0.0
  %4768 = vmatpush1.msra.mxu0 0.0
  %4769 = vmatprep.subr.mxu0 0.0
  %4770 = vmatpush1.msra.mxu0 0.0
  %4771 = vmatprep.subr.mxu0 0.0
  %4772 = vmatpush1.msra.mxu0 0.0
  %4773 = vmatprep.subr.mxu0 0.0
  %4774 = vmatpush1.msra.mxu0 0.0
  %4775 = vmatprep.subr.mxu0 0.0
  %4776 = vmatpush1.msra.mxu0 0.0
  %4777 = vmatprep.subr.mxu0 0.0
  %4778 = vmatpush1.msra.mxu0 0.0
  %4779 = vmatprep.subr.mxu0 0.0
  %4780 = vmatpush1.msra.mxu0 0.0
  %4781 = vmatprep.subr.mxu0 0.0
  %4782 = vmatpush1.msra.mxu0 0.0
  %4783 = vmatprep.subr.mxu0 0.0
  %4784 = vmatpush1.msra.mxu0 0.0
  %4785 = vmatprep.subr.mxu0 0.0
  %4786 = vmatpush1.msra.mxu0 0.0
  %4787 = vmatprep.subr.mxu0 0.0
  %4788 = vmatpush1.msra.mxu0 0.0
  %4789 = vmatprep.subr.mxu0 0.0
  %4790 = vmatpush1.msra.mxu0 0.0
  %4791 = vmatprep.subr.mxu0 0.0
  %4792 = vmatpush1.msra.mxu0 0.0
  %4793 = vmatprep.subr.mxu0 0.0
  %4794 = vmatpush1.msra.mxu0 0.0
  %4795 = vmatprep.subr.mxu0 0.0
  %4796 = vmatpush1.msra.mxu0 0.0
  %4797 = vmatprep.subr.mxu0 0.0
  %4798 = vmatpush1.msra.mxu0 0.0
  %4799 = vmatprep.subr.mxu0 0.0
  %4800 = vmatpush1.msra.mxu0 0.0
  %4801 = vmatprep.subr.mxu0 0.0
  %4802 = vmatpush1.msra.mxu0 0.0
  %4803 = vmatprep.subr.mxu0 0.0
  %4804 = vmatpush1.msra.mxu0 0.0
  %4805 = vmatprep.subr.mxu0 0.0
  %4806 = vmatpush1.msra.mxu0 0.0
  %4807 = vmatprep.subr.mxu0 0.0
  %4808 = vmatpush1.msra.mxu0 0.0
  %4809 = vmatprep.subr.mxu0 0.0
  %4810 = vmatpush1.msra.mxu0 0.0
  %4811 = vmatprep.subr.mxu0 0.0
  %4812 = vmatpush1.msra.mxu0 0.0
  %4813 = vmatprep.subr.mxu0 0.0
  %4814 = vmatpush1.msra.mxu0 0.0
  %4815 = vmatprep.subr.mxu0 0.0
  %4816 = vmatpush1.msra.mxu0 0.0
  %4817 = vmatprep.subr.mxu0 0.0
  %4818 = vmatpush1.msra.mxu0 0.0
  %4819 = vmatprep.subr.mxu0 0.0
  %4820 = vmatpush1.msra.mxu0 0.0
  %4821 = vmatprep.subr.mxu0 0.0
  %4822 = vmatpush1.msra.mxu0 0.0
  %4823 = vmatprep.subr.mxu0 0.0
  %4824 = vmatpush1.msra.mxu0 0.0
  %4825 = vmatprep.mubr.f32.mxu0 0.0
  %4826 = vmatmul.mubr.f32.gmra.mrb[0].mxu0 %v4759
  %v4827 = vpop.f32.mrb[0].mxu0
  %v4828 = vadd.f32 0.0, %v4827
  %v4829 = vpop.f32.mrb[0].mxu0
  %4830 = vdwg.mxu0
  %4831 = vrot.lane.b32.xlu0 %v419, 96
  %v4832 = vpop.permute.xlu0 %4831
  %v4835 = vsel %vm438, %v3149, 0
  %4837 = vmatprep.subr.mxu0 0.0
  %4838 = vmatpush1.msra.mxu0 %v4832
  %4839 = vmatprep.subr.mxu0 0.0
  %4840 = vmatpush1.msra.mxu0 0.0
  %4841 = vmatprep.subr.mxu0 0.0
  %4842 = vmatpush1.msra.mxu0 0.0
  %4843 = vmatprep.subr.mxu0 0.0
  %4844 = vmatpush1.msra.mxu0 0.0
  %4845 = vmatprep.subr.mxu0 0.0
  %4846 = vmatpush1.msra.mxu0 0.0
  %4847 = vmatprep.subr.mxu0 0.0
  %4848 = vmatpush1.msra.mxu0 0.0
  %4849 = vmatprep.subr.mxu0 0.0
  %4850 = vmatpush1.msra.mxu0 0.0
  %4851 = vmatprep.subr.mxu0 0.0
  %4852 = vmatpush1.msra.mxu0 0.0
  %4853 = vmatprep.subr.mxu0 0.0
  %4854 = vmatpush1.msra.mxu0 0.0
  %4855 = vmatprep.subr.mxu0 0.0
  %4856 = vmatpush1.msra.mxu0 0.0
  %4857 = vmatprep.subr.mxu0 0.0
  %4858 = vmatpush1.msra.mxu0 0.0
  %4859 = vmatprep.subr.mxu0 0.0
  %4860 = vmatpush1.msra.mxu0 0.0
  %4861 = vmatprep.subr.mxu0 0.0
  %4862 = vmatpush1.msra.mxu0 0.0
  %4863 = vmatprep.subr.mxu0 0.0
  %4864 = vmatpush1.msra.mxu0 0.0
  %4865 = vmatprep.subr.mxu0 0.0
  %4866 = vmatpush1.msra.mxu0 0.0
  %4867 = vmatprep.subr.mxu0 0.0
  %4868 = vmatpush1.msra.mxu0 0.0
  %4869 = vmatprep.subr.mxu0 0.0
  %4870 = vmatpush1.msra.mxu0 0.0
  %4871 = vmatprep.subr.mxu0 0.0
  %4872 = vmatpush1.msra.mxu0 0.0
  %4873 = vmatprep.subr.mxu0 0.0
  %4874 = vmatpush1.msra.mxu0 0.0
  %4875 = vmatprep.subr.mxu0 0.0
  %4876 = vmatpush1.msra.mxu0 0.0
  %4877 = vmatprep.subr.mxu0 0.0
  %4878 = vmatpush1.msra.mxu0 0.0
  %4879 = vmatprep.subr.mxu0 0.0
  %4880 = vmatpush1.msra.mxu0 0.0
  %4881 = vmatprep.subr.mxu0 0.0
  %4882 = vmatpush1.msra.mxu0 0.0
  %4883 = vmatprep.subr.mxu0 0.0
  %4884 = vmatpush1.msra.mxu0 0.0
  %4885 = vmatprep.subr.mxu0 0.0
  %4886 = vmatpush1.msra.mxu0 0.0
  %4887 = vmatprep.subr.mxu0 0.0
  %4888 = vmatpush1.msra.mxu0 0.0
  %4889 = vmatprep.subr.mxu0 0.0
  %4890 = vmatpush1.msra.mxu0 0.0
  %4891 = vmatprep.subr.mxu0 0.0
  %4892 = vmatpush1.msra.mxu0 0.0
  %4893 = vmatprep.subr.mxu0 0.0
  %4894 = vmatpush1.msra.mxu0 0.0
  %4895 = vmatprep.subr.mxu0 0.0
  %4896 = vmatpush1.msra.mxu0 0.0
  %4897 = vmatprep.subr.mxu0 0.0
  %4898 = vmatpush1.msra.mxu0 0.0
  %4899 = vmatprep.subr.mxu0 0.0
  %4900 = vmatpush1.msra.mxu0 0.0
  %4901 = vmatprep.mubr.f32.mxu0 0.0
  %4902 = vmatmul.mubr.f32.gmra.mrb[0].mxu0 %v4835
  %v4903 = vpop.f32.mrb[0].mxu0
  %v4904 = vadd.f32 0.0, %v4903
  %v4905 = vpop.f32.mrb[0].mxu0
  %4906 = vdwg.mxu0
  %4907 = vrot.lane.b32.xlu0 %v421, 96
  %v4908 = vpop.permute.xlu0 %4907
  %v4911 = vsel %vm438, %v3150, 0
  %4913 = vmatprep.subr.mxu0 0.0
  %4914 = vmatpush1.msra.mxu0 %v4908
  %4915 = vmatprep.subr.mxu0 0.0
  %4916 = vmatpush1.msra.mxu0 0.0
  %4917 = vmatprep.subr.mxu0 0.0
  %4918 = vmatpush1.msra.mxu0 0.0
  %4919 = vmatprep.subr.mxu0 0.0
  %4920 = vmatpush1.msra.mxu0 0.0
  %4921 = vmatprep.subr.mxu0 0.0
  %4922 = vmatpush1.msra.mxu0 0.0
  %4923 = vmatprep.subr.mxu0 0.0
  %4924 = vmatpush1.msra.mxu0 0.0
  %4925 = vmatprep.subr.mxu0 0.0
  %4926 = vmatpush1.msra.mxu0 0.0
  %4927 = vmatprep.subr.mxu0 0.0
  %4928 = vmatpush1.msra.mxu0 0.0
  %4929 = vmatprep.subr.mxu0 0.0
  %4930 = vmatpush1.msra.mxu0 0.0
  %4931 = vmatprep.subr.mxu0 0.0
  %4932 = vmatpush1.msra.mxu0 0.0
  %4933 = vmatprep.subr.mxu0 0.0
  %4934 = vmatpush1.msra.mxu0 0.0
  %4935 = vmatprep.subr.mxu0 0.0
  %4936 = vmatpush1.msra.mxu0 0.0
  %4937 = vmatprep.subr.mxu0 0.0
  %4938 = vmatpush1.msra.mxu0 0.0
  %4939 = vmatprep.subr.mxu0 0.0
  %4940 = vmatpush1.msra.mxu0 0.0
  %4941 = vmatprep.subr.mxu0 0.0
  %4942 = vmatpush1.msra.mxu0 0.0
  %4943 = vmatprep.subr.mxu0 0.0
  %4944 = vmatpush1.msra.mxu0 0.0
  %4945 = vmatprep.subr.mxu0 0.0
  %4946 = vmatpush1.msra.mxu0 0.0
  %4947 = vmatprep.subr.mxu0 0.0
  %4948 = vmatpush1.msra.mxu0 0.0
  %4949 = vmatprep.subr.mxu0 0.0
  %4950 = vmatpush1.msra.mxu0 0.0
  %4951 = vmatprep.subr.mxu0 0.0
  %4952 = vmatpush1.msra.mxu0 0.0
  %4953 = vmatprep.subr.mxu0 0.0
  %4954 = vmatpush1.msra.mxu0 0.0
  %4955 = vmatprep.subr.mxu0 0.0
  %4956 = vmatpush1.msra.mxu0 0.0
  %4957 = vmatprep.subr.mxu0 0.0
  %4958 = vmatpush1.msra.mxu0 0.0
  %4959 = vmatprep.subr.mxu0 0.0
  %4960 = vmatpush1.msra.mxu0 0.0
  %4961 = vmatprep.subr.mxu0 0.0
  %4962 = vmatpush1.msra.mxu0 0.0
  %4963 = vmatprep.subr.mxu0 0.0
  %4964 = vmatpush1.msra.mxu0 0.0
  %4965 = vmatprep.subr.mxu0 0.0
  %4966 = vmatpush1.msra.mxu0 0.0
  %4967 = vmatprep.subr.mxu0 0.0
  %4968 = vmatpush1.msra.mxu0 0.0
  %4969 = vmatprep.subr.mxu0 0.0
  %4970 = vmatpush1.msra.mxu0 0.0
  %4971 = vmatprep.subr.mxu0 0.0
  %4972 = vmatpush1.msra.mxu0 0.0
  %4973 = vmatprep.subr.mxu0 0.0
  %4974 = vmatpush1.msra.mxu0 0.0
  %4975 = vmatprep.subr.mxu0 0.0
  %4976 = vmatpush1.msra.mxu0 0.0
  %4977 = vmatprep.mubr.f32.mxu0 0.0
  %4978 = vmatmul.mubr.f32.gmra.mrb[0].mxu0 %v4911
  %v4979 = vpop.f32.mrb[0].mxu0
  %v4980 = vadd.f32 0.0, %v4979
  %v4981 = vpop.f32.mrb[0].mxu0
  %4982 = vdwg.mxu0
  %4983 = vrot.lane.b32.xlu0 %v423, 96
  %v4984 = vpop.permute.xlu0 %4983
  %v4987 = vsel %vm438, %v3151, 0
  %4989 = vmatprep.subr.mxu0 0.0
  %4990 = vmatpush1.msra.mxu0 %v4984
  %4991 = vmatprep.subr.mxu0 0.0
  %4992 = vmatpush1.msra.mxu0 0.0
  %4993 = vmatprep.subr.mxu0 0.0
  %4994 = vmatpush1.msra.mxu0 0.0
  %4995 = vmatprep.subr.mxu0 0.0
  %4996 = vmatpush1.msra.mxu0 0.0
  %4997 = vmatprep.subr.mxu0 0.0
  %4998 = vmatpush1.msra.mxu0 0.0
  %4999 = vmatprep.subr.mxu0 0.0
  %5000 = vmatpush1.msra.mxu0 0.0
  %5001 = vmatprep.subr.mxu0 0.0
  %5002 = vmatpush1.msra.mxu0 0.0
  %5003 = vmatprep.subr.mxu0 0.0
  %5004 = vmatpush1.msra.mxu0 0.0
  %5005 = vmatprep.subr.mxu0 0.0
  %5006 = vmatpush1.msra.mxu0 0.0
  %5007 = vmatprep.subr.mxu0 0.0
  %5008 = vmatpush1.msra.mxu0 0.0
  %5009 = vmatprep.subr.mxu0 0.0
  %5010 = vmatpush1.msra.mxu0 0.0
  %5011 = vmatprep.subr.mxu0 0.0
  %5012 = vmatpush1.msra.mxu0 0.0
  %5013 = vmatprep.subr.mxu0 0.0
  %5014 = vmatpush1.msra.mxu0 0.0
  %5015 = vmatprep.subr.mxu0 0.0
  %5016 = vmatpush1.msra.mxu0 0.0
  %5017 = vmatprep.subr.mxu0 0.0
  %5018 = vmatpush1.msra.mxu0 0.0
  %5019 = vmatprep.subr.mxu0 0.0
  %5020 = vmatpush1.msra.mxu0 0.0
  %5021 = vmatprep.subr.mxu0 0.0
  %5022 = vmatpush1.msra.mxu0 0.0
  %5023 = vmatprep.subr.mxu0 0.0
  %5024 = vmatpush1.msra.mxu0 0.0
  %5025 = vmatprep.subr.mxu0 0.0
  %5026 = vmatpush1.msra.mxu0 0.0
  %5027 = vmatprep.subr.mxu0 0.0
  %5028 = vmatpush1.msra.mxu0 0.0
  %5029 = vmatprep.subr.mxu0 0.0
  %5030 = vmatpush1.msra.mxu0 0.0
  %5031 = vmatprep.subr.mxu0 0.0
  %5032 = vmatpush1.msra.mxu0 0.0
  %5033 = vmatprep.subr.mxu0 0.0
  %5034 = vmatpush1.msra.mxu0 0.0
  %5035 = vmatprep.subr.mxu0 0.0
  %5036 = vmatpush1.msra.mxu0 0.0
  %5037 = vmatprep.subr.mxu0 0.0
  %5038 = vmatpush1.msra.mxu0 0.0
  %5039 = vmatprep.subr.mxu0 0.0
  %5040 = vmatpush1.msra.mxu0 0.0
  %5041 = vmatprep.subr.mxu0 0.0
  %5042 = vmatpush1.msra.mxu0 0.0
  %5043 = vmatprep.subr.mxu0 0.0
  %5044 = vmatpush1.msra.mxu0 0.0
  %5045 = vmatprep.subr.mxu0 0.0
  %5046 = vmatpush1.msra.mxu0 0.0
  %5047 = vmatprep.subr.mxu0 0.0
  %5048 = vmatpush1.msra.mxu0 0.0
  %5049 = vmatprep.subr.mxu0 0.0
  %5050 = vmatpush1.msra.mxu0 0.0
  %5051 = vmatprep.subr.mxu0 0.0
  %5052 = vmatpush1.msra.mxu0 0.0
  %5053 = vmatprep.mubr.f32.mxu0 0.0
  %5054 = vmatmul.mubr.f32.gmra.mrb[0].mxu0 %v4987
  %v5055 = vpop.f32.mrb[0].mxu0
  %v5056 = vadd.f32 0.0, %v5055
  %v5057 = vpop.f32.mrb[0].mxu0
  %5058 = vdwg.mxu0
  %5059 = vrot.lane.b32.xlu0 %v425, 96
  %v5060 = vpop.permute.xlu0 %5059
  %v5063 = vsel %vm438, %v3152, 0
  %5065 = vmatprep.subr.mxu0 0.0
  %5066 = vmatpush1.msra.mxu0 %v5060
  %5067 = vmatprep.subr.mxu0 0.0
  %5068 = vmatpush1.msra.mxu0 0.0
  %5069 = vmatprep.subr.mxu0 0.0
  %5070 = vmatpush1.msra.mxu0 0.0
  %5071 = vmatprep.subr.mxu0 0.0
  %5072 = vmatpush1.msra.mxu0 0.0
  %5073 = vmatprep.subr.mxu0 0.0
  %5074 = vmatpush1.msra.mxu0 0.0
  %5075 = vmatprep.subr.mxu0 0.0
  %5076 = vmatpush1.msra.mxu0 0.0
  %5077 = vmatprep.subr.mxu0 0.0
  %5078 = vmatpush1.msra.mxu0 0.0
  %5079 = vmatprep.subr.mxu0 0.0
  %5080 = vmatpush1.msra.mxu0 0.0
  %5081 = vmatprep.subr.mxu0 0.0
  %5082 = vmatpush1.msra.mxu0 0.0
  %5083 = vmatprep.subr.mxu0 0.0
  %5084 = vmatpush1.msra.mxu0 0.0
  %5085 = vmatprep.subr.mxu0 0.0
  %5086 = vmatpush1.msra.mxu0 0.0
  %5087 = vmatprep.subr.mxu0 0.0
  %5088 = vmatpush1.msra.mxu0 0.0
  %5089 = vmatprep.subr.mxu0 0.0
  %5090 = vmatpush1.msra.mxu0 0.0
  %5091 = vmatprep.subr.mxu0 0.0
  %5092 = vmatpush1.msra.mxu0 0.0
  %5093 = vmatprep.subr.mxu0 0.0
  %5094 = vmatpush1.msra.mxu0 0.0
  %5095 = vmatprep.subr.mxu0 0.0
  %5096 = vmatpush1.msra.mxu0 0.0
  %5097 = vmatprep.subr.mxu0 0.0
  %5098 = vmatpush1.msra.mxu0 0.0
  %5099 = vmatprep.subr.mxu0 0.0
  %5100 = vmatpush1.msra.mxu0 0.0
  %5101 = vmatprep.subr.mxu0 0.0
  %5102 = vmatpush1.msra.mxu0 0.0
  %5103 = vmatprep.subr.mxu0 0.0
  %5104 = vmatpush1.msra.mxu0 0.0
  %5105 = vmatprep.subr.mxu0 0.0
  %5106 = vmatpush1.msra.mxu0 0.0
  %5107 = vmatprep.subr.mxu0 0.0
  %5108 = vmatpush1.msra.mxu0 0.0
  %5109 = vmatprep.subr.mxu0 0.0
  %5110 = vmatpush1.msra.mxu0 0.0
  %5111 = vmatprep.subr.mxu0 0.0
  %5112 = vmatpush1.msra.mxu0 0.0
  %5113 = vmatprep.subr.mxu0 0.0
  %5114 = vmatpush1.msra.mxu0 0.0
  %5115 = vmatprep.subr.mxu0 0.0
  %5116 = vmatpush1.msra.mxu0 0.0
  %5117 = vmatprep.subr.mxu0 0.0
  %5118 = vmatpush1.msra.mxu0 0.0
  %5119 = vmatprep.subr.mxu0 0.0
  %5120 = vmatpush1.msra.mxu0 0.0
  %5121 = vmatprep.subr.mxu0 0.0
  %5122 = vmatpush1.msra.mxu0 0.0
  %5123 = vmatprep.subr.mxu0 0.0
  %5124 = vmatpush1.msra.mxu0 0.0
  %5125 = vmatprep.subr.mxu0 0.0
  %5126 = vmatpush1.msra.mxu0 0.0
  %5127 = vmatprep.subr.mxu0 0.0
  %5128 = vmatpush1.msra.mxu0 0.0
  %5129 = vmatprep.mubr.f32.mxu0 0.0
  %5130 = vmatmul.mubr.f32.gmra.mrb[0].mxu0 %v5063
  %v5131 = vpop.f32.mrb[0].mxu0
  %v5132 = vadd.f32 0.0, %v5131
  %v5133 = vpop.f32.mrb[0].mxu0
  %5134 = vdwg.mxu0
  %5135 = vrot.lane.b32.xlu0 %v427, 96
  %v5136 = vpop.permute.xlu0 %5135
  %v5139 = vsel %vm438, %v3153, 0
  %5141 = vmatprep.subr.mxu0 0.0
  %5142 = vmatpush1.msra.mxu0 %v5136
  %5143 = vmatprep.subr.mxu0 0.0
  %5144 = vmatpush1.msra.mxu0 0.0
  %5145 = vmatprep.subr.mxu0 0.0
  %5146 = vmatpush1.msra.mxu0 0.0
  %5147 = vmatprep.subr.mxu0 0.0
  %5148 = vmatpush1.msra.mxu0 0.0
  %5149 = vmatprep.subr.mxu0 0.0
  %5150 = vmatpush1.msra.mxu0 0.0
  %5151 = vmatprep.subr.mxu0 0.0
  %5152 = vmatpush1.msra.mxu0 0.0
  %5153 = vmatprep.subr.mxu0 0.0
  %5154 = vmatpush1.msra.mxu0 0.0
  %5155 = vmatprep.subr.mxu0 0.0
  %5156 = vmatpush1.msra.mxu0 0.0
  %5157 = vmatprep.subr.mxu0 0.0
  %5158 = vmatpush1.msra.mxu0 0.0
  %5159 = vmatprep.subr.mxu0 0.0
  %5160 = vmatpush1.msra.mxu0 0.0
  %5161 = vmatprep.subr.mxu0 0.0
  %5162 = vmatpush1.msra.mxu0 0.0
  %5163 = vmatprep.subr.mxu0 0.0
  %5164 = vmatpush1.msra.mxu0 0.0
  %5165 = vmatprep.subr.mxu0 0.0
  %5166 = vmatpush1.msra.mxu0 0.0
  %5167 = vmatprep.subr.mxu0 0.0
  %5168 = vmatpush1.msra.mxu0 0.0
  %5169 = vmatprep.subr.mxu0 0.0
  %5170 = vmatpush1.msra.mxu0 0.0
  %5171 = vmatprep.subr.mxu0 0.0
  %5172 = vmatpush1.msra.mxu0 0.0
  %5173 = vmatprep.subr.mxu0 0.0
  %5174 = vmatpush1.msra.mxu0 0.0
  %5175 = vmatprep.subr.mxu0 0.0
  %5176 = vmatpush1.msra.mxu0 0.0
  %5177 = vmatprep.subr.mxu0 0.0
  %5178 = vmatpush1.msra.mxu0 0.0
  %5179 = vmatprep.subr.mxu0 0.0
  %5180 = vmatpush1.msra.mxu0 0.0
  %5181 = vmatprep.subr.mxu0 0.0
  %5182 = vmatpush1.msra.mxu0 0.0
  %5183 = vmatprep.subr.mxu0 0.0
  %5184 = vmatpush1.msra.mxu0 0.0
  %5185 = vmatprep.subr.mxu0 0.0
  %5186 = vmatpush1.msra.mxu0 0.0
  %5187 = vmatprep.subr.mxu0 0.0
  %5188 = vmatpush1.msra.mxu0 0.0
  %5189 = vmatprep.subr.mxu0 0.0
  %5190 = vmatpush1.msra.mxu0 0.0
  %5191 = vmatprep.subr.mxu0 0.0
  %5192 = vmatpush1.msra.mxu0 0.0
  %5193 = vmatprep.subr.mxu0 0.0
  %5194 = vmatpush1.msra.mxu0 0.0
  %5195 = vmatprep.subr.mxu0 0.0
  %5196 = vmatpush1.msra.mxu0 0.0
  %5197 = vmatprep.subr.mxu0 0.0
  %5198 = vmatpush1.msra.mxu0 0.0
  %5199 = vmatprep.subr.mxu0 0.0
  %5200 = vmatpush1.msra.mxu0 0.0
  %5201 = vmatprep.subr.mxu0 0.0
  %5202 = vmatpush1.msra.mxu0 0.0
  %5203 = vmatprep.subr.mxu0 0.0
  %5204 = vmatpush1.msra.mxu0 0.0
  %5205 = vmatprep.mubr.f32.mxu0 0.0
  %5206 = vmatmul.mubr.f32.gmra.mrb[0].mxu0 %v5139
  %v5207 = vpop.f32.mrb[0].mxu0
  %v5208 = vadd.f32 0.0, %v5207
  %v5209 = vpop.f32.mrb[0].mxu0
  %5210 = vdwg.mxu0
  %5211 = vrot.lane.b32.xlu0 %v429, 96
  %v5212 = vpop.permute.xlu0 %5211
  %v5215 = vsel %vm438, %v3154, 0
  %5217 = vmatprep.subr.mxu0 0.0
  %5218 = vmatpush1.msra.mxu0 %v5212
  %5219 = vmatprep.subr.mxu0 0.0
  %5220 = vmatpush1.msra.mxu0 0.0
  %5221 = vmatprep.subr.mxu0 0.0
  %5222 = vmatpush1.msra.mxu0 0.0
  %5223 = vmatprep.subr.mxu0 0.0
  %5224 = vmatpush1.msra.mxu0 0.0
  %5225 = vmatprep.subr.mxu0 0.0
  %5226 = vmatpush1.msra.mxu0 0.0
  %5227 = vmatprep.subr.mxu0 0.0
  %5228 = vmatpush1.msra.mxu0 0.0
  %5229 = vmatprep.subr.mxu0 0.0
  %5230 = vmatpush1.msra.mxu0 0.0
  %5231 = vmatprep.subr.mxu0 0.0
  %5232 = vmatpush1.msra.mxu0 0.0
  %5233 = vmatprep.subr.mxu0 0.0
  %5234 = vmatpush1.msra.mxu0 0.0
  %5235 = vmatprep.subr.mxu0 0.0
  %5236 = vmatpush1.msra.mxu0 0.0
  %5237 = vmatprep.subr.mxu0 0.0
  %5238 = vmatpush1.msra.mxu0 0.0
  %5239 = vmatprep.subr.mxu0 0.0
  %5240 = vmatpush1.msra.mxu0 0.0
  %5241 = vmatprep.subr.mxu0 0.0
  %5242 = vmatpush1.msra.mxu0 0.0
  %5243 = vmatprep.subr.mxu0 0.0
  %5244 = vmatpush1.msra.mxu0 0.0
  %5245 = vmatprep.subr.mxu0 0.0
  %5246 = vmatpush1.msra.mxu0 0.0
  %5247 = vmatprep.subr.mxu0 0.0
  %5248 = vmatpush1.msra.mxu0 0.0
  %5249 = vmatprep.subr.mxu0 0.0
  %5250 = vmatpush1.msra.mxu0 0.0
  %5251 = vmatprep.subr.mxu0 0.0
  %5252 = vmatpush1.msra.mxu0 0.0
  %5253 = vmatprep.subr.mxu0 0.0
  %5254 = vmatpush1.msra.mxu0 0.0
  %5255 = vmatprep.subr.mxu0 0.0
  %5256 = vmatpush1.msra.mxu0 0.0
  %5257 = vmatprep.subr.mxu0 0.0
  %5258 = vmatpush1.msra.mxu0 0.0
  %5259 = vmatprep.subr.mxu0 0.0
  %5260 = vmatpush1.msra.mxu0 0.0
  %5261 = vmatprep.subr.mxu0 0.0
  %5262 = vmatpush1.msra.mxu0 0.0
  %5263 = vmatprep.subr.mxu0 0.0
  %5264 = vmatpush1.msra.mxu0 0.0
  %5265 = vmatprep.subr.mxu0 0.0
  %5266 = vmatpush1.msra.mxu0 0.0
  %5267 = vmatprep.subr.mxu0 0.0
  %5268 = vmatpush1.msra.mxu0 0.0
  %5269 = vmatprep.subr.mxu0 0.0
  %5270 = vmatpush1.msra.mxu0 0.0
  %5271 = vmatprep.subr.mxu0 0.0
  %5272 = vmatpush1.msra.mxu0 0.0
  %5273 = vmatprep.subr.mxu0 0.0
  %5274 = vmatpush1.msra.mxu0 0.0
  %5275 = vmatprep.subr.mxu0 0.0
  %5276 = vmatpush1.msra.mxu0 0.0
  %5277 = vmatprep.subr.mxu0 0.0
  %5278 = vmatpush1.msra.mxu0 0.0
  %5279 = vmatprep.subr.mxu0 0.0
  %5280 = vmatpush1.msra.mxu0 0.0
  %5281 = vmatprep.mubr.f32.mxu0 0.0
  %5282 = vmatmul.mubr.f32.gmra.mrb[0].mxu0 %v5215
  %v5283 = vpop.f32.mrb[0].mxu0
  %v5284 = vadd.f32 0.0, %v5283
  %v5285 = vpop.f32.mrb[0].mxu0
  %5286 = vdwg.mxu0
  %5287 = vrot.lane.b32.xlu0 %v431, 96
  %v5288 = vpop.permute.xlu0 %5287
  %v5291 = vsel %vm438, %v3155, 0
  %5293 = vmatprep.subr.mxu0 0.0
  %5294 = vmatpush1.msra.mxu0 %v5288
  %5295 = vmatprep.subr.mxu0 0.0
  %5296 = vmatpush1.msra.mxu0 0.0
  %5297 = vmatprep.subr.mxu0 0.0
  %5298 = vmatpush1.msra.mxu0 0.0
  %5299 = vmatprep.subr.mxu0 0.0
  %5300 = vmatpush1.msra.mxu0 0.0
  %5301 = vmatprep.subr.mxu0 0.0
  %5302 = vmatpush1.msra.mxu0 0.0
  %5303 = vmatprep.subr.mxu0 0.0
  %5304 = vmatpush1.msra.mxu0 0.0
  %5305 = vmatprep.subr.mxu0 0.0
  %5306 = vmatpush1.msra.mxu0 0.0
  %5307 = vmatprep.subr.mxu0 0.0
  %5308 = vmatpush1.msra.mxu0 0.0
  %5309 = vmatprep.subr.mxu0 0.0
  %5310 = vmatpush1.msra.mxu0 0.0
  %5311 = vmatprep.subr.mxu0 0.0
  %5312 = vmatpush1.msra.mxu0 0.0
  %5313 = vmatprep.subr.mxu0 0.0
  %5314 = vmatpush1.msra.mxu0 0.0
  %5315 = vmatprep.subr.mxu0 0.0
  %5316 = vmatpush1.msra.mxu0 0.0
  %5317 = vmatprep.subr.mxu0 0.0
  %5318 = vmatpush1.msra.mxu0 0.0
  %5319 = vmatprep.subr.mxu0 0.0
  %5320 = vmatpush1.msra.mxu0 0.0
  %5321 = vmatprep.subr.mxu0 0.0
  %5322 = vmatpush1.msra.mxu0 0.0
  %5323 = vmatprep.subr.mxu0 0.0
  %5324 = vmatpush1.msra.mxu0 0.0
  %5325 = vmatprep.subr.mxu0 0.0
  %5326 = vmatpush1.msra.mxu0 0.0
  %5327 = vmatprep.subr.mxu0 0.0
  %5328 = vmatpush1.msra.mxu0 0.0
  %5329 = vmatprep.subr.mxu0 0.0
  %5330 = vmatpush1.msra.mxu0 0.0
  %5331 = vmatprep.subr.mxu0 0.0
  %5332 = vmatpush1.msra.mxu0 0.0
  %5333 = vmatprep.subr.mxu0 0.0
  %5334 = vmatpush1.msra.mxu0 0.0
  %5335 = vmatprep.subr.mxu0 0.0
  %5336 = vmatpush1.msra.mxu0 0.0
  %5337 = vmatprep.subr.mxu0 0.0
  %5338 = vmatpush1.msra.mxu0 0.0
  %5339 = vmatprep.subr.mxu0 0.0
  %5340 = vmatpush1.msra.mxu0 0.0
  %5341 = vmatprep.subr.mxu0 0.0
  %5342 = vmatpush1.msra.mxu0 0.0
  %5343 = vmatprep.subr.mxu0 0.0
  %5344 = vmatpush1.msra.mxu0 0.0
  %5345 = vmatprep.subr.mxu0 0.0
  %5346 = vmatpush1.msra.mxu0 0.0
  %5347 = vmatprep.subr.mxu0 0.0
  %5348 = vmatpush1.msra.mxu0 0.0
  %5349 = vmatprep.subr.mxu0 0.0
  %5350 = vmatpush1.msra.mxu0 0.0
  %5351 = vmatprep.subr.mxu0 0.0
  %5352 = vmatpush1.msra.mxu0 0.0
  %5353 = vmatprep.subr.mxu0 0.0
  %5354 = vmatpush1.msra.mxu0 0.0
  %5355 = vmatprep.subr.mxu0 0.0
  %5356 = vmatpush1.msra.mxu0 0.0
  %5357 = vmatprep.mubr.f32.mxu0 0.0
  %5358 = vmatmul.mubr.f32.gmra.mrb[0].mxu0 %v5291
  %v5359 = vpop.f32.mrb[0].mxu0
  %v5360 = vadd.f32 0.0, %v5359
  %v5361 = vpop.f32.mrb[0].mxu0
  %5362 = vdwg.mxu0
  %5363 = vrot.lane.b32.xlu0 %v433, 96
  %v5364 = vpop.permute.xlu0 %5363
  %v5367 = vsel %vm438, %v3156, 0
  %5369 = vmatprep.subr.mxu0 0.0
  %5370 = vmatpush1.msra.mxu0 %v5364
  %5371 = vmatprep.subr.mxu0 0.0
  %5372 = vmatpush1.msra.mxu0 0.0
  %5373 = vmatprep.subr.mxu0 0.0
  %5374 = vmatpush1.msra.mxu0 0.0
  %5375 = vmatprep.subr.mxu0 0.0
  %5376 = vmatpush1.msra.mxu0 0.0
  %5377 = vmatprep.subr.mxu0 0.0
  %5378 = vmatpush1.msra.mxu0 0.0
  %5379 = vmatprep.subr.mxu0 0.0
  %5380 = vmatpush1.msra.mxu0 0.0
  %5381 = vmatprep.subr.mxu0 0.0
  %5382 = vmatpush1.msra.mxu0 0.0
  %5383 = vmatprep.subr.mxu0 0.0
  %5384 = vmatpush1.msra.mxu0 0.0
  %5385 = vmatprep.subr.mxu0 0.0
  %5386 = vmatpush1.msra.mxu0 0.0
  %5387 = vmatprep.subr.mxu0 0.0
  %5388 = vmatpush1.msra.mxu0 0.0
  %5389 = vmatprep.subr.mxu0 0.0
  %5390 = vmatpush1.msra.mxu0 0.0
  %5391 = vmatprep.subr.mxu0 0.0
  %5392 = vmatpush1.msra.mxu0 0.0
  %5393 = vmatprep.subr.mxu0 0.0
  %5394 = vmatpush1.msra.mxu0 0.0
  %5395 = vmatprep.subr.mxu0 0.0
  %5396 = vmatpush1.msra.mxu0 0.0
  %5397 = vmatprep.subr.mxu0 0.0
  %5398 = vmatpush1.msra.mxu0 0.0
  %5399 = vmatprep.subr.mxu0 0.0
  %5400 = vmatpush1.msra.mxu0 0.0
  %5401 = vmatprep.subr.mxu0 0.0
  %5402 = vmatpush1.msra.mxu0 0.0
  %5403 = vmatprep.subr.mxu0 0.0
  %5404 = vmatpush1.msra.mxu0 0.0
  %5405 = vmatprep.subr.mxu0 0.0
  %5406 = vmatpush1.msra.mxu0 0.0
  %5407 = vmatprep.subr.mxu0 0.0
  %5408 = vmatpush1.msra.mxu0 0.0
  %5409 = vmatprep.subr.mxu0 0.0
  %5410 = vmatpush1.msra.mxu0 0.0
  %5411 = vmatprep.subr.mxu0 0.0
  %5412 = vmatpush1.msra.mxu0 0.0
  %5413 = vmatprep.subr.mxu0 0.0
  %5414 = vmatpush1.msra.mxu0 0.0
  %5415 = vmatprep.subr.mxu0 0.0
  %5416 = vmatpush1.msra.mxu0 0.0
  %5417 = vmatprep.subr.mxu0 0.0
  %5418 = vmatpush1.msra.mxu0 0.0
  %5419 = vmatprep.subr.mxu0 0.0
  %5420 = vmatpush1.msra.mxu0 0.0
  %5421 = vmatprep.subr.mxu0 0.0
  %5422 = vmatpush1.msra.mxu0 0.0
  %5423 = vmatprep.subr.mxu0 0.0
  %5424 = vmatpush1.msra.mxu0 0.0
  %5425 = vmatprep.subr.mxu0 0.0
  %5426 = vmatpush1.msra.mxu0 0.0
  %5427 = vmatprep.subr.mxu0 0.0
  %5428 = vmatpush1.msra.mxu0 0.0
  %5429 = vmatprep.subr.mxu0 0.0
  %5430 = vmatpush1.msra.mxu0 0.0
  %5431 = vmatprep.subr.mxu0 0.0
  %5432 = vmatpush1.msra.mxu0 0.0
  %5433 = vmatprep.mubr.f32.mxu0 0.0
  %5434 = vmatmul.mubr.f32.gmra.mrb[0].mxu0 %v5367
  %v5435 = vpop.f32.mrb[0].mxu0
  %v5436 = vadd.f32 0.0, %v5435
  %v5437 = vpop.f32.mrb[0].mxu0
  %5438 = vdwg.mxu0
  %5439 = vrot.lane.b32.xlu0 %v435, 96
  %v5440 = vpop.permute.xlu0 %5439
  %v5443 = vsel %vm438, %v3157, 0
  %5445 = vmatprep.subr.mxu0 0.0
  %5446 = vmatpush1.msra.mxu0 %v5440
  %5447 = vmatprep.subr.mxu0 0.0
  %5448 = vmatpush1.msra.mxu0 0.0
  %5449 = vmatprep.subr.mxu0 0.0
  %5450 = vmatpush1.msra.mxu0 0.0
  %5451 = vmatprep.subr.mxu0 0.0
  %5452 = vmatpush1.msra.mxu0 0.0
  %5453 = vmatprep.subr.mxu0 0.0
  %5454 = vmatpush1.msra.mxu0 0.0
  %5455 = vmatprep.subr.mxu0 0.0
  %5456 = vmatpush1.msra.mxu0 0.0
  %5457 = vmatprep.subr.mxu0 0.0
  %5458 = vmatpush1.msra.mxu0 0.0
  %5459 = vmatprep.subr.mxu0 0.0
  %5460 = vmatpush1.msra.mxu0 0.0
  %5461 = vmatprep.subr.mxu0 0.0
  %5462 = vmatpush1.msra.mxu0 0.0
  %5463 = vmatprep.subr.mxu0 0.0
  %5464 = vmatpush1.msra.mxu0 0.0
  %5465 = vmatprep.subr.mxu0 0.0
  %5466 = vmatpush1.msra.mxu0 0.0
  %5467 = vmatprep.subr.mxu0 0.0
  %5468 = vmatpush1.msra.mxu0 0.0
  %5469 = vmatprep.subr.mxu0 0.0
  %5470 = vmatpush1.msra.mxu0 0.0
  %5471 = vmatprep.subr.mxu0 0.0
  %5472 = vmatpush1.msra.mxu0 0.0
  %5473 = vmatprep.subr.mxu0 0.0
  %5474 = vmatpush1.msra.mxu0 0.0
  %5475 = vmatprep.subr.mxu0 0.0
  %5476 = vmatpush1.msra.mxu0 0.0
  %5477 = vmatprep.subr.mxu0 0.0
  %5478 = vmatpush1.msra.mxu0 0.0
  %5479 = vmatprep.subr.mxu0 0.0
  %5480 = vmatpush1.msra.mxu0 0.0
  %5481 = vmatprep.subr.mxu0 0.0
  %5482 = vmatpush1.msra.mxu0 0.0
  %5483 = vmatprep.subr.mxu0 0.0
  %5484 = vmatpush1.msra.mxu0 0.0
  %5485 = vmatprep.subr.mxu0 0.0
  %5486 = vmatpush1.msra.mxu0 0.0
  %5487 = vmatprep.subr.mxu0 0.0
  %5488 = vmatpush1.msra.mxu0 0.0
  %5489 = vmatprep.subr.mxu0 0.0
  %5490 = vmatpush1.msra.mxu0 0.0
  %5491 = vmatprep.subr.mxu0 0.0
  %5492 = vmatpush1.msra.mxu0 0.0
  %5493 = vmatprep.subr.mxu0 0.0
  %5494 = vmatpush1.msra.mxu0 0.0
  %5495 = vmatprep.subr.mxu0 0.0
  %5496 = vmatpush1.msra.mxu0 0.0
  %5497 = vmatprep.subr.mxu0 0.0
  %5498 = vmatpush1.msra.mxu0 0.0
  %5499 = vmatprep.subr.mxu0 0.0
  %5500 = vmatpush1.msra.mxu0 0.0
  %5501 = vmatprep.subr.mxu0 0.0
  %5502 = vmatpush1.msra.mxu0 0.0
  %5503 = vmatprep.subr.mxu0 0.0
  %5504 = vmatpush1.msra.mxu0 0.0
  %5505 = vmatprep.subr.mxu0 0.0
  %5506 = vmatpush1.msra.mxu0 0.0
  %5507 = vmatprep.subr.mxu0 0.0
  %5508 = vmatpush1.msra.mxu0 0.0
  %5509 = vmatprep.mubr.f32.mxu0 0.0
  %5510 = vmatmul.mubr.f32.gmra.mrb[0].mxu0 %v5443
  %v5511 = vpop.f32.mrb[0].mxu0
  %v5512 = vadd.f32 0.0, %v5511
  %v5513 = vpop.f32.mrb[0].mxu0
  %5514 = vdwg.mxu0
  %5515 = vrot.lane.b32.xlu0 %v437, 96
  %v5516 = vpop.permute.xlu0 %5515
  %v5519 = vsel %vm438, %v3158, 0
  %5521 = vmatprep.subr.mxu0 0.0
  %5522 = vmatpush1.msra.mxu0 %v5516
  %5523 = vmatprep.subr.mxu0 0.0
  %5524 = vmatpush1.msra.mxu0 0.0
  %5525 = vmatprep.subr.mxu0 0.0
  %5526 = vmatpush1.msra.mxu0 0.0
  %5527 = vmatprep.subr.mxu0 0.0
  %5528 = vmatpush1.msra.mxu0 0.0
  %5529 = vmatprep.subr.mxu0 0.0
  %5530 = vmatpush1.msra.mxu0 0.0
  %5531 = vmatprep.subr.mxu0 0.0
  %5532 = vmatpush1.msra.mxu0 0.0
  %5533 = vmatprep.subr.mxu0 0.0
  %5534 = vmatpush1.msra.mxu0 0.0
  %5535 = vmatprep.subr.mxu0 0.0
  %5536 = vmatpush1.msra.mxu0 0.0
  %5537 = vmatprep.subr.mxu0 0.0
  %5538 = vmatpush1.msra.mxu0 0.0
  %5539 = vmatprep.subr.mxu0 0.0
  %5540 = vmatpush1.msra.mxu0 0.0
  %5541 = vmatprep.subr.mxu0 0.0
  %5542 = vmatpush1.msra.mxu0 0.0
  %5543 = vmatprep.subr.mxu0 0.0
  %5544 = vmatpush1.msra.mxu0 0.0
  %5545 = vmatprep.subr.mxu0 0.0
  %5546 = vmatpush1.msra.mxu0 0.0
  %5547 = vmatprep.subr.mxu0 0.0
  %5548 = vmatpush1.msra.mxu0 0.0
  %5549 = vmatprep.subr.mxu0 0.0
  %5550 = vmatpush1.msra.mxu0 0.0
  %5551 = vmatprep.subr.mxu0 0.0
  %5552 = vmatpush1.msra.mxu0 0.0
  %5553 = vmatprep.subr.mxu0 0.0
  %5554 = vmatpush1.msra.mxu0 0.0
  %5555 = vmatprep.subr.mxu0 0.0
  %5556 = vmatpush1.msra.mxu0 0.0
  %5557 = vmatprep.subr.mxu0 0.0
  %5558 = vmatpush1.msra.mxu0 0.0
  %5559 = vmatprep.subr.mxu0 0.0
  %5560 = vmatpush1.msra.mxu0 0.0
  %5561 = vmatprep.subr.mxu0 0.0
  %5562 = vmatpush1.msra.mxu0 0.0
  %5563 = vmatprep.subr.mxu0 0.0
  %5564 = vmatpush1.msra.mxu0 0.0
  %5565 = vmatprep.subr.mxu0 0.0
  %5566 = vmatpush1.msra.mxu0 0.0
  %5567 = vmatprep.subr.mxu0 0.0
  %5568 = vmatpush1.msra.mxu0 0.0
  %5569 = vmatprep.subr.mxu0 0.0
  %5570 = vmatpush1.msra.mxu0 0.0
  %5571 = vmatprep.subr.mxu0 0.0
  %5572 = vmatpush1.msra.mxu0 0.0
  %5573 = vmatprep.subr.mxu0 0.0
  %5574 = vmatpush1.msra.mxu0 0.0
  %5575 = vmatprep.subr.mxu0 0.0
  %5576 = vmatpush1.msra.mxu0 0.0
  %5577 = vmatprep.subr.mxu0 0.0
  %5578 = vmatpush1.msra.mxu0 0.0
  %5579 = vmatprep.subr.mxu0 0.0
  %5580 = vmatpush1.msra.mxu0 0.0
  %5581 = vmatprep.subr.mxu0 0.0
  %5582 = vmatpush1.msra.mxu0 0.0
  %5583 = vmatprep.subr.mxu0 0.0
  %5584 = vmatpush1.msra.mxu0 0.0
  %5585 = vmatprep.mubr.f32.mxu0 0.0
  %5586 = vmatmul.mubr.f32.gmra.mrb[0].mxu0 %v5519
  %v5587 = vpop.f32.mrb[0].mxu0
  %v5588 = vadd.f32 0.0, %v5587
  %v5589 = vpop.f32.mrb[0].mxu0
  %5590 = vdwg.mxu0
  %5599 = vrot.lane.b32.xlu0 %v3840, 8
  %v5600 = vpop.permute.xlu0 %5599
  %5601 = vrot.lane.b32.xlu0 %v3916, 8
  %v5602 = vpop.permute.xlu0 %5601
  %5603 = vrot.lane.b32.xlu0 %v3992, 8
  %v5604 = vpop.permute.xlu0 %5603
  %5605 = vrot.lane.b32.xlu0 %v4068, 8
  %v5606 = vpop.permute.xlu0 %5605
  %5607 = vrot.lane.b32.xlu0 %v4144, 8
  %v5608 = vpop.permute.xlu0 %5607
  %5609 = vrot.lane.b32.xlu0 %v4220, 8
  %v5610 = vpop.permute.xlu0 %5609
  %5611 = vrot.lane.b32.xlu0 %v4296, 8
  %v5612 = vpop.permute.xlu0 %5611
  %5613 = vrot.lane.b32.xlu0 %v4372, 8
  %v5614 = vpop.permute.xlu0 %5613
  %5631 = vrot.lane.b32.xlu0 %v4448, 16
  %v5632 = vpop.permute.xlu0 %5631
  %5633 = vrot.lane.b32.xlu0 %v4524, 16
  %v5634 = vpop.permute.xlu0 %5633
  %5635 = vrot.lane.b32.xlu0 %v4600, 16
  %v5636 = vpop.permute.xlu0 %5635
  %5637 = vrot.lane.b32.xlu0 %v4676, 16
  %v5638 = vpop.permute.xlu0 %5637
  %5639 = vrot.lane.b32.xlu0 %v4752, 16
  %v5640 = vpop.permute.xlu0 %5639
  %5641 = vrot.lane.b32.xlu0 %v4828, 16
  %v5642 = vpop.permute.xlu0 %5641
  %5643 = vrot.lane.b32.xlu0 %v4904, 16
  %v5644 = vpop.permute.xlu0 %5643
  %5645 = vrot.lane.b32.xlu0 %v4980, 16
  %v5646 = vpop.permute.xlu0 %5645
  %5663 = vrot.lane.b32.xlu0 %v5056, 24
  %v5664 = vpop.permute.xlu0 %5663
  %5665 = vrot.lane.b32.xlu0 %v5132, 24
  %v5666 = vpop.permute.xlu0 %5665
  %5667 = vrot.lane.b32.xlu0 %v5208, 24
  %v5668 = vpop.permute.xlu0 %5667
  %5669 = vrot.lane.b32.xlu0 %v5284, 24
  %v5670 = vpop.permute.xlu0 %5669
  %5671 = vrot.lane.b32.xlu0 %v5360, 24
  %v5672 = vpop.permute.xlu0 %5671
  %5673 = vrot.lane.b32.xlu0 %v5436, 24
  %v5674 = vpop.permute.xlu0 %5673
  %5675 = vrot.lane.b32.xlu0 %v5512, 24
  %v5676 = vpop.permute.xlu0 %5675
  %5677 = vrot.lane.b32.xlu0 %v5588, 24
  %v5678 = vpop.permute.xlu0 %5677
  %v5687 = vsel %vm438, %v3232, %v5600
  %v5688 = vsel %vm438, %v3308, %v5602
  %v5689 = vsel %vm438, %v3384, %v5604
  %v5690 = vsel %vm438, %v3460, %v5606
  %v5691 = vsel %vm438, %v3536, %v5608
  %v5692 = vsel %vm438, %v3612, %v5610
  %v5693 = vsel %vm438, %v3688, %v5612
  %v5694 = vsel %vm438, %v3764, %v5614
  %vm5695 = vcmask 130048
  %v5696 = vsel %vm5695, %v5687, %v5632
  %v5697 = vsel %vm5695, %v5688, %v5634
  %v5698 = vsel %vm5695, %v5689, %v5636
  %v5699 = vsel %vm5695, %v5690, %v5638
  %v5700 = vsel %vm5695, %v5691, %v5640
  %v5701 = vsel %vm5695, %v5692, %v5642
  %v5702 = vsel %vm5695, %v5693, %v5644
  %v5703 = vsel %vm5695, %v5694, %v5646
  %vm5704 = vcmask 195584
  %v5705 = vsel %vm5704, %v5696, %v5664
  %v5706 = vsel %vm5704, %v5697, %v5666
  %v5707 = vsel %vm5704, %v5698, %v5668
  %v5708 = vsel %vm5704, %v5699, %v5670
  %v5709 = vsel %vm5704, %v5700, %v5672
  %v5710 = vsel %vm5704, %v5701, %v5674
  %v5711 = vsel %vm5704, %v5702, %v5676
  %v5712 = vsel %vm5704, %v5703, %v5678
  %v5713 = vadd.f32 %v148, %v5705
  %v5714 = vadd.f32 %v153, %v5706
  %v5715 = vadd.f32 %v158, %v5707
  %v5716 = vadd.f32 %v163, %v5708
  %v5717 = vadd.f32 %v168, %v5709
  %v5718 = vadd.f32 %v173, %v5710
  %v5719 = vadd.f32 %v178, %v5711
  %v5720 = vadd.f32 %v183, %v5712
  %v5721 = vld [vmem:[%s6] sm:$0xff]
  %v5722 = vld [vmem:[%s6 + $0x8] sm:$0xff]
  %v5723 = vld [vmem:[%s6 + $0x10] sm:$0xff]
  %v5724 = vld [vmem:[%s6 + $0x18] sm:$0xff]
  %v5725 = vld [vmem:[%s7] sm:$0x1]
  %v5727 = vlaneseq
  %v5728 = vshrl.u32 %v5727, 7
  %v5729 = vsub.s32 0, %v5728
  %v5730 = vrot.slane %v5725, %v5729
  %v5733 = vsel %vm56, %v5713, 0
  %v5736 = vsel %vm56, %v5714, 0
  %v5739 = vsel %vm56, %v5715, 0
  %v5742 = vsel %vm56, %v5716, 0
  %v5745 = vsel %vm56, %v5717, 0
  %v5748 = vsel %vm56, %v5718, 0
  %v5751 = vsel %vm56, %v5719, 0
  %v5754 = vsel %vm56, %v5720, 0
  %5756 = vmatprep.subr.mxu0 0.0
  %5757 = vmatpush1.msra.mxu0 %v5721
  %5758 = vmatprep.subr.mxu0 0.0
  %5759 = vmatpush1.msra.mxu0 %v5722
  %5760 = vmatprep.subr.mxu0 0.0
  %5761 = vmatpush1.msra.mxu0 %v5723
  %5762 = vmatprep.subr.mxu0 0.0
  %5763 = vmatpush1.msra.mxu0 %v5724
  %5764 = vmatprep.subr.mxu0 0.0
  %5765 = vmatpush1.msra.mxu0 0.0
  %5766 = vmatprep.subr.mxu0 0.0
  %5767 = vmatpush1.msra.mxu0 0.0
  %5768 = vmatprep.subr.mxu0 0.0
  %5769 = vmatpush1.msra.mxu0 0.0
  %5770 = vmatprep.subr.mxu0 0.0
  %5771 = vmatpush1.msra.mxu0 0.0
  %5772 = vmatprep.subr.mxu0 0.0
  %5773 = vmatpush1.msra.mxu0 0.0
  %5774 = vmatprep.subr.mxu0 0.0
  %5775 = vmatpush1.msra.mxu0 0.0
  %5776 = vmatprep.subr.mxu0 0.0
  %5777 = vmatpush1.msra.mxu0 0.0
  %5778 = vmatprep.subr.mxu0 0.0
  %5779 = vmatpush1.msra.mxu0 0.0
  %5780 = vmatprep.subr.mxu0 0.0
  %5781 = vmatpush1.msra.mxu0 0.0
  %5782 = vmatprep.subr.mxu0 0.0
  %5783 = vmatpush1.msra.mxu0 0.0
  %5784 = vmatprep.subr.mxu0 0.0
  %5785 = vmatpush1.msra.mxu0 0.0
  %5786 = vmatprep.subr.mxu0 0.0
  %5787 = vmatpush1.msra.mxu0 0.0
  %5788 = vmatprep.subr.mxu0 0.0
  %5789 = vmatpush1.msra.mxu0 0.0
  %5790 = vmatprep.subr.mxu0 0.0
  %5791 = vmatpush1.msra.mxu0 0.0
  %5792 = vmatprep.subr.mxu0 0.0
  %5793 = vmatpush1.msra.mxu0 0.0
  %5794 = vmatprep.subr.mxu0 0.0
  %5795 = vmatpush1.msra.mxu0 0.0
  %5796 = vmatprep.subr.mxu0 0.0
  %5797 = vmatpush1.msra.mxu0 0.0
  %5798 = vmatprep.subr.mxu0 0.0
  %5799 = vmatpush1.msra.mxu0 0.0
  %5800 = vmatprep.subr.mxu0 0.0
  %5801 = vmatpush1.msra.mxu0 0.0
  %5802 = vmatprep.subr.mxu0 0.0
  %5803 = vmatpush1.msra.mxu0 0.0
  %5804 = vmatprep.subr.mxu0 0.0
  %5805 = vmatpush1.msra.mxu0 0.0
  %5806 = vmatprep.subr.mxu0 0.0
  %5807 = vmatpush1.msra.mxu0 0.0
  %5808 = vmatprep.subr.mxu0 0.0
  %5809 = vmatpush1.msra.mxu0 0.0
  %5810 = vmatprep.subr.mxu0 0.0
  %5811 = vmatpush1.msra.mxu0 0.0
  %5812 = vmatprep.subr.mxu0 0.0
  %5813 = vmatpush1.msra.mxu0 0.0
  %5814 = vmatprep.subr.mxu0 0.0
  %5815 = vmatpush1.msra.mxu0 0.0
  %5816 = vmatprep.subr.mxu0 0.0
  %5817 = vmatpush1.msra.mxu0 0.0
  %5818 = vmatprep.subr.mxu0 0.0
  %5819 = vmatpush1.msra.mxu0 0.0
  %5820 = vmatprep.mubr.f32.mxu0 0.0
  %5821 = vmatmul.mubr.f32.gmra.mrb[0].mxu0 %v5733
  %v5822 = vpop.f32.mrb[0].mxu0
  %v5823 = vadd.f32 %v5730, %v5822
  %v5824 = vpop.f32.mrb[0].mxu0
  %5825 = vmatprep.mubr.f32.mxu0 0.0
  %5826 = vmatmul.mubr.f32.gmra.mrb[0].mxu0 %v5736
  %v5827 = vpop.f32.mrb[0].mxu0
  %v5828 = vadd.f32 %v5730, %v5827
  %v5829 = vpop.f32.mrb[0].mxu0
  %5830 = vmatprep.mubr.f32.mxu0 0.0
  %5831 = vmatmul.mubr.f32.gmra.mrb[0].mxu0 %v5739
  %v5832 = vpop.f32.mrb[0].mxu0
  %v5833 = vadd.f32 %v5730, %v5832
  %v5834 = vpop.f32.mrb[0].mxu0
  %5835 = vmatprep.mubr.f32.mxu0 0.0
  %5836 = vmatmul.mubr.f32.gmra.mrb[0].mxu0 %v5742
  %v5837 = vpop.f32.mrb[0].mxu0
  %v5838 = vadd.f32 %v5730, %v5837
  %v5839 = vpop.f32.mrb[0].mxu0
  %5840 = vmatprep.mubr.f32.mxu0 0.0
  %5841 = vmatmul.mubr.f32.gmra.mrb[0].mxu0 %v5745
  %v5842 = vpop.f32.mrb[0].mxu0
  %v5843 = vadd.f32 %v5730, %v5842
  %v5844 = vpop.f32.mrb[0].mxu0
  %5845 = vmatprep.mubr.f32.mxu0 0.0
  %5846 = vmatmul.mubr.f32.gmra.mrb[0].mxu0 %v5748
  %v5847 = vpop.f32.mrb[0].mxu0
  %v5848 = vadd.f32 %v5730, %v5847
  %v5849 = vpop.f32.mrb[0].mxu0
  %5850 = vmatprep.mubr.f32.mxu0 0.0
  %5851 = vmatmul.mubr.f32.gmra.mrb[0].mxu0 %v5751
  %v5852 = vpop.f32.mrb[0].mxu0
  %v5853 = vadd.f32 %v5730, %v5852
  %v5854 = vpop.f32.mrb[0].mxu0
  %5855 = vmatprep.mubr.f32.mxu0 0.0
  %5856 = vmatmul.mubr.f32.gmra.mrb[0].mxu0 %v5754
  %v5857 = vpop.f32.mrb[0].mxu0
  %v5858 = vadd.f32 %v5730, %v5857
  %v5859 = vpop.f32.mrb[0].mxu0
  %5860 = vdwg.mxu0
  %v5861 = vmax.f32 %v5823, 0.0
  %v5862 = vmax.f32 %v5828, 0.0
  %v5863 = vmax.f32 %v5833, 0.0
  %v5864 = vmax.f32 %v5838, 0.0
  %v5865 = vmax.f32 %v5843, 0.0
  %v5866 = vmax.f32 %v5848, 0.0
  %v5867 = vmax.f32 %v5853, 0.0
  %v5868 = vmax.f32 %v5858, 0.0
  %v5869 = vadd.f32 %v5713, %v5861
  %v5870 = vadd.f32 %v5714, %v5862
  %v5871 = vadd.f32 %v5715, %v5863
  %v5872 = vadd.f32 %v5716, %v5864
  %v5873 = vadd.f32 %v5717, %v5865
  %v5874 = vadd.f32 %v5718, %v5866
  %v5875 = vadd.f32 %v5719, %v5867
  %v5876 = vadd.f32 %v5720, %v5868
  %5877 = vst.msk [vmem:[%s8] sm:$0xff] %vm56, %v5869
  %5878 = vst.msk [vmem:[%s8 + $0x8] sm:$0xff] %vm56, %v5870
  %5879 = vst.msk [vmem:[%s8 + $0x10] sm:$0xff] %vm56, %v5871
  %5880 = vst.msk [vmem:[%s8 + $0x18] sm:$0xff] %vm56, %v5872
  %5881 = vst.msk [vmem:[%s8 + $0x20] sm:$0xff] %vm56, %v5873
  %5882 = vst.msk [vmem:[%s8 + $0x28] sm:$0xff] %vm56, %v5874
  %5883 = vst.msk [vmem:[%s8 + $0x30] sm:$0xff] %vm56, %v5875
  %5884 = vst.msk [vmem:[%s8 + $0x38] sm:$0xff] %vm56, %v5876
  // Predicated region
  $region34: #{tpu_custom_call.1} parent=0 // pred_check
    _
  $region35: #{tpu_custom_call.1} parent=0 // pred_check_branch
    %5886 = sbr.rel (0) target = $region37
  $region36: #{tpu_custom_call.1} parent=0 // pred_region
    _
  $region37: #{tpu_custom_call.1} parent=0 // pred_fallthru
    _
  // Predicated region
  $region38: #{tpu_custom_call.1} parent=0 // pred_check
    _
  $region39: #{tpu_custom_call.1} parent=0 // pred_check_branch
    %5888 = sbr.rel (0) target = $region41
  $region40: #{tpu_custom_call.1} parent=0 // pred_region
    _
  $region41: #{tpu_custom_call.1} parent=0 // pred_fallthru
    _

</llo_original>
